<compile_context>
chip_gen: v6e
topology: v6e:2x2x1
jax: 0.10.0
libtpu: 0.0.40
codegen_flags: <defaults>
</compile_context>

<pallas_src>
import math
import functools

import jax
import jax.numpy as jnp
from jax.experimental import pallas as pl
from jax.experimental.pallas import tpu as pltpu


# ------------------------------ small helpers --------------------------------

def _round_up(x, m):
    return ((x + m - 1) // m) * m


def _layer_norm(x, g, b, eps=1e-5):
    mu = jnp.mean(x, axis=-1, keepdims=True)
    var = jnp.mean(jnp.square(x - mu), axis=-1, keepdims=True)
    return (x - mu) * jax.lax.rsqrt(var + eps) * g + b


def _gelu(x):
    c = 0.7978845608028654
    return 0.5 * x * (1.0 + jnp.tanh(c * (x + 0.044715 * x * x * x)))


# const_vec packed row indices (see prepare_params)
_R_WR, _R_BR, _R_WA, _R_BA = 0, 1, 2, 3        # embed_return / embed_action (1->E)
_R_LNG, _R_LNB = 4, 5                          # embed_ln
_R_LN1G, _R_LN1B, _R_LN2G, _R_LN2B = 6, 7, 8, 9   # transformer block LNs
_R_BO, _R_BM2 = 10, 11                         # attn out proj bias, mlp out bias
_R_BENC, _R_BS, _R_BQKV, _R_BM1, _R_HEADB = 12, 13, 14, 15, 16
_NUM_CONST_ROWS = 17


# --------------------------------- kernel ------------------------------------
#
# Token rows are stored TYPE-MAJOR: row k*T + t  (k=0 return, k=1..7 states,
# k=8 action).  The true interleaved sequence position of that row is t*9 + k;
# causality is enforced in that interleaved order via an in-kernel mask, so the
# result equals the interleaved computation up to a row permutation (all other
# ops are row-wise, attention is permutation-equivariant).  The rows the
# reference gathers -- interleaved positions (i+1)*9 - 2 (the s7 tokens) -- are
# exactly the static contiguous rows [7T, 8T).

def _make_kernel(residual):
    def kernel(dyn_ref,      # (2T, E) f32: rows [0,T)=time_emb; rows [T,2T): cols
               #              [0,D7p)=states (zero-padded), col D7p=return, D7p+1=action
               cv_ref,       # (17, WC) f32 packed constant vectors (see prepare_params)
               w_enc_ref,    # (D7p, F7p) bf16  block-diag shared state encoder (padded)
               w_s_ref,      # (F7p, 7E)  bf16  block-diag embed_state1..6,6 (padded rows)
               w_qkv_ref,    # (E, 3E) bf16   (Q columns pre-scaled by 1/sqrt(E))
               w_o_ref,      # (E, E)  bf16
               w_m1_ref,     # (E, 4E) bf16
               w_m2_ref,     # (4E, E) bf16
               head_w_ref,   # (E, A_pad) bf16  lane-padded action head
               out_ref,      # (T, A_pad) f32
               tok_ref):     # scratch (9T, E) f32 -- holds x0 = embed_ln(stacked tokens)
        f32 = jnp.float32
        bf16 = jnp.bfloat16
        L, E = tok_ref.shape
        T = L // 9
        D7p, F7p = w_enc_ref.shape
        A_pad = head_w_ref.shape[1]

        time_emb = dyn_ref[0:T, :]                                   # (T, E)
        states = dyn_ref[T:2 * T, 0:D7p]                             # (T, D7p)
        returns = dyn_ref[T:2 * T, D7p:D7p + 1]                      # (T, 1)
        actions = dyn_ref[T:2 * T, D7p + 1:D7p + 2]                  # (T, 1)

        g_ln = cv_ref[_R_LNG:_R_LNG + 1, 0:E]
        b_ln = cv_ref[_R_LNB:_R_LNB + 1, 0:E]

        # ---- embed_return / embed_action: Linear(1 -> E) as broadcast mul,
        #      embed_ln applied per block (row-wise LN => exact) ----
        tok_ref[0:T, :] = _layer_norm(
            returns * cv_ref[_R_WR:_R_WR + 1, 0:E] + cv_ref[_R_BR:_R_BR + 1, 0:E] + time_emb,
            g_ln, b_ln)
        tok_ref[8 * T:9 * T, :] = _layer_norm(
            actions * cv_ref[_R_WA:_R_WA + 1, 0:E] + cv_ref[_R_BA:_R_BA + 1, 0:E] + time_emb,
            g_ln, b_ln)

        # ---- state_encoder stand-in + embed_state1..7 as two fused block-diag matmuls ----
        # TODO(synk): real state_encoder is an injected nn.Module; deterministic shared
        # Linear(D_in->F)+ReLU stand-in (all 7 feature groups in one padded matmul).
        # The 7 embed_stateK projections (feature 7 reuses embed_state6's weights, as in
        # the reference forward) form the second block-diagonal matmul.
        feats = jnp.maximum(
            jnp.dot(states.astype(bf16), w_enc_ref[...], preferred_element_type=f32)
            + cv_ref[_R_BENC:_R_BENC + 1, 0:F7p],
            0.0)                                                     # (T, F7p)
        s_emb = jnp.dot(feats.astype(bf16), w_s_ref[...], preferred_element_type=f32) \
            + cv_ref[_R_BS:_R_BS + 1, 0:7 * E]                       # (T, 7E)
        for k in range(7):                                           # static slices
            tok_ref[(1 + k) * T:(2 + k) * T, :] = _layer_norm(
                s_emb[:, k * E:(k + 1) * E] + time_emb, g_ln, b_ln)

        x0 = tok_ref[...]                      # == embed_ln(stacked_inputs)   (9T, E)

        # ---- PLM stand-in: single pre-LN causal transformer block (1 head) ----
        # TODO(synk): real plm is an injected pretrained LM; a deterministic single-block
        # causal transformer stand-in is used (which_layer=-1 -> all layers).  A real
        # multi-layer PLM should stream per-layer bf16 weights (grid axis over layers /
        # pltpu.emit_pipeline) and split the (L,4E) MLP hidden into halves to stay inside
        # v7x's 64 MiB VMEM; batch>1 would add a leading "parallel" grid axis for the
        # two v7x TensorCores.
        h = _layer_norm(x0, cv_ref[_R_LN1G:_R_LN1G + 1, 0:E], cv_ref[_R_LN1B:_R_LN1B + 1, 0:E])
        qkv = jnp.dot(h.astype(bf16), w_qkv_ref[...], preferred_element_type=f32) \
            + cv_ref[_R_BQKV:_R_BQKV + 1, 0:3 * E]                   # (9T, 3E)
        q = qkv[:, 0:E]                       # already scaled by 1/sqrt(E) (folded in w_qkv)
        k_ = qkv[:, E:2 * E]
        v = qkv[:, 2 * E:3 * E]

        scores = jax.lax.dot_general(q.astype(bf16), k_.astype(bf16),
                                     (((1,), (1,)), ((), ())),
                                     preferred_element_type=f32)     # (L, L)

        # ---- in-kernel permuted causal mask (type-major row r -> interleaved pos) ----
        # pos(r) = (r % T)*9 + r // T.  Floor-div by T via exact f32 trick:
        # floor((r+0.5)/T) == r // T for 0 <= r < 9T (distance to any integer >= 0.5/T,
        # far above f32 rounding error at these magnitudes).  Avoids vector int div.
        ri = jax.lax.broadcasted_iota(jnp.int32, (L, L), 0).astype(f32)
        ci = jax.lax.broadcasted_iota(jnp.int32, (L, L), 1).astype(f32)
        inv_t = 1.0 / T
        kr = jnp.floor((ri + 0.5) * inv_t)
        kc = jnp.floor((ci + 0.5) * inv_t)
        pos_r = (ri - kr * T) * 9.0 + kr
        pos_c = (ci - kc * T) * 9.0 + kc
        scores = jnp.where(pos_r >= pos_c, scores, jnp.float32(-1e30))

        m = jnp.max(scores, axis=-1, keepdims=True)
        p = jnp.exp(scores - m)
        p = p * pl.reciprocal(jnp.sum(p, axis=-1, keepdims=True), approx=True)
        attn = jnp.dot(p.astype(bf16), v.astype(bf16), preferred_element_type=f32)
        attn = jnp.dot(attn.astype(bf16), w_o_ref[...], preferred_element_type=f32) \
            + cv_ref[_R_BO:_R_BO + 1, 0:E]
        x1 = x0 + attn
        h2 = _layer_norm(x1, cv_ref[_R_LN2G:_R_LN2G + 1, 0:E], cv_ref[_R_LN2B:_R_LN2B + 1, 0:E])
        mlp = jnp.dot(
            _gelu(jnp.dot(h2.astype(bf16), w_m1_ref[...], preferred_element_type=f32)
                  + cv_ref[_R_BM1:_R_BM1 + 1, 0:4 * E]).astype(bf16),
            w_m2_ref[...], preferred_element_type=f32) + cv_ref[_R_BM2:_R_BM2 + 1, 0:E]
        logits = x1 + mlp                                            # last_hidden_state

        if residual:
            logits = logits + x0

        # ---- gather: interleaved positions (i+1)*9 - 2  ==  type-major rows [7T, 8T) ----
        logits_used = logits[7 * T:8 * T, :]                         # (T, E), static slice

        # ---- action_head: Linear(E -> action_levels), lane-padded to A_pad ----
        out_ref[...] = (jnp.dot(logits_used.astype(bf16), head_w_ref[...],
                                preferred_element_type=f32)
                        + cv_ref[_R_HEADB:_R_HEADB + 1, 0:A_pad])
    return kernel


# ------------------------ host-side constants & folding ----------------------

def prepare_params(params):
    """One-time fold of module parameters into the fused-kernel layout:
    tile-padded block-diagonal encoder / embed_state weights (embed_state6 reused
    for feature 7, as in the reference forward), bf16 casts of all large matrices,
    attention scale folded into the Q columns of w_qkv, lane-padded action head,
    and all small f32 vectors packed into one const_vec array."""
    f32, bf16 = jnp.float32, jnp.bfloat16
    E = params['time_table'].shape[1]
    d_in, F = params['w_enc'].shape
    A = params['head_w'].shape[1]
    A_pad = _round_up(A, 128)
    D7, F7 = 7 * d_in, 7 * F
    D7_pad = _round_up(D7, 64)          # e.g. 56 -> 64
    F7_pad = _round_up(F7, 128)         # e.g. 112 -> 128

    # block-diag shared state encoder, zero-padded to hardware tiles
    w_enc_bd = jnp.zeros((D7_pad, F7_pad), f32)
    for k in range(7):
        w_enc_bd = w_enc_bd.at[k * d_in:(k + 1) * d_in, k * F:(k + 1) * F].set(params['w_enc'])
    w_enc_bd = w_enc_bd.astype(bf16)
    b_enc_pad = jnp.zeros((F7_pad,), f32).at[:F7].set(jnp.tile(params['b_enc'][0], 7))

    idx = [0, 1, 2, 3, 4, 5, 5]   # embed_state1..6, then embed_state6 again (reference forward)
    w_s_bd = jnp.zeros((F7_pad, 7 * E), f32)
    for j, i in enumerate(idx):
        w_s_bd = w_s_bd.at[j * F:(j + 1) * F, j * E:(j + 1) * E].set(params['w_s'][i])
    w_s_bd = w_s_bd.astype(bf16)
    b_s_flat = jnp.concatenate([params['b_s'][i][0] for i in idx], axis=0)   # (7E,)

    # fold 1/sqrt(E) attention scale into Q columns of w_qkv / b_qkv
    scale = 1.0 / math.sqrt(E)
    w_qkv = params['w_qkv'].at[:, :E].multiply(scale).astype(bf16)
    b_qkv = params['b_qkv'][0].at[:E].multiply(scale)

    head_w = jnp.zeros((E, A_pad), f32).at[:, :A].set(params['head_w']).astype(bf16)

    # packed small constants: rows [0..11] are E-wide, rest wider (see _R_* indices)
    WC = max(E, F7_pad, 7 * E, 4 * E, 3 * E, A_pad)
    cv = jnp.zeros((_NUM_CONST_ROWS, WC), f32)
    cv = cv.at[_R_WR, :E].set(params['w_r'][0])
    cv = cv.at[_R_BR, :E].set(params['b_r'][0])
    cv = cv.at[_R_WA, :E].set(params['w_a'][0])
    cv = cv.at[_R_BA, :E].set(params['b_a'][0])
    cv = cv.at[_R_LNG, :E].set(params['ln_g'][0])
    cv = cv.at[_R_LNB, :E].set(params['ln_b'][0])
    cv = cv.at[_R_LN1G, :E].set(params['ln1_g'][0])
    cv = cv.at[_R_LN1B, :E].set(params['ln1_b'][0])
    cv = cv.at[_R_LN2G, :E].set(params['ln2_g'][0])
    cv = cv.at[_R_LN2B, :E].set(params['ln2_b'][0])
    cv = cv.at[_R_BO, :E].set(params['b_o'][0])
    cv = cv.at[_R_BM2, :E].set(params['b_m2'][0])
    cv = cv.at[_R_BENC, :F7_pad].set(b_enc_pad)
    cv = cv.at[_R_BS, :7 * E].set(b_s_flat)
    cv = cv.at[_R_BQKV, :3 * E].set(b_qkv)
    cv = cv.at[_R_BM1, :4 * E].set(params['b_m1'][0])
    cv = cv.at[_R_HEADB, :A].set(params['head_b'][0])

    return dict(
        time_table=params['time_table'].astype(f32),
        const_vec=cv,
        w_enc_bd=w_enc_bd, w_s_bd=w_s_bd,
        w_qkv=w_qkv, w_o=params['w_o'].astype(bf16),
        w_m1=params['w_m1'].astype(bf16), w_m2=params['w_m2'].astype(bf16),
        head_w=head_w)


# --------------------------------- wrapper -----------------------------------

@functools.partial(jax.jit, static_argnames=('action_levels', 'residual'))
def offline_rl_policy_forward(prepared, states, actions, returns, timesteps,
                              action_levels, residual=False):
    # Batch is fixed at 1 by the reference module; with a real batch dim a leading
    # "parallel" grid axis would shard across v7x's two TensorCores.
    assert actions.shape[0] == 1, "batch size should be 1 (as in the reference)"
    T = actions.shape[1]
    E = prepared['time_table'].shape[1]
    D7_pad, F7_pad = prepared['w_enc_bd'].shape
    A_pad = prepared['head_w'].shape[1]
    L = 9 * T
    # The reference slices stacked tokens to the last plm_embed_size positions and then
    # indexes with (i+1)*9 - 2, which is only consistent when 9*T <= plm_embed_size.
    assert L <= E, "need 9*T <= plm_embed_size for the reference indexing to be valid"
    assert D7_pad + 2 <= E, "padded state width + 2 scalar columns must fit in E"

    ts = jnp.clip(timesteps.reshape(T).astype(jnp.int32), 0,
                  prepared['time_table'].shape[0] - 1)
    time_emb = jnp.take(prepared['time_table'], ts, axis=0)                  # (T, E)

    # pack all per-call dynamic inputs into one (2T, E) f32 array (one input DMA):
    #   rows [0,T)  : time embeddings
    #   rows [T,2T) : cols [0,D7_pad)=flattened states (zero-padded),
    #                 col D7_pad=return, col D7_pad+1=action
    D7 = states.shape[2] * states.shape[3]
    dyn = jnp.zeros((2 * T, E), jnp.float32)
    dyn = dyn.at[0:T, :].set(time_emb)
    dyn = dyn.at[T:2 * T, 0:D7].set(states[0].astype(jnp.float32).reshape(T, D7))
    dyn = dyn.at[T:2 * T, D7_pad].set(returns[0, :, 0].astype(jnp.float32))
    dyn = dyn.at[T:2 * T, D7_pad + 1].set(actions[0, :, 0].astype(jnp.float32))

    # advisory cost estimate so XLA can overlap the custom call with the packing ops
    flops = 2 * (T * D7_pad * F7_pad + T * F7_pad * 7 * E + L * E * 3 * E
                 + 2 * L * L * E + L * E * E + 2 * L * E * 4 * E + T * E * A_pad)
    transcendentals = L * L + L * 4 * E + 4 * L
    weight_keys = ('const_vec', 'w_enc_bd', 'w_s_bd', 'w_qkv', 'w_o', 'w_m1', 'w_m2', 'head_w')
    bytes_accessed = (sum(int(prepared[k].size) * prepared[k].dtype.itemsize
                          for k in weight_keys)
                      + int(dyn.size) * 4 + T * A_pad * 4)

    vmem = pl.BlockSpec(memory_space=pltpu.MemorySpace.VMEM)
    out = pl.pallas_call(
        _make_kernel(residual),
        out_shape=jax.ShapeDtypeStruct((T, A_pad), jnp.float32),
        in_specs=[vmem] * 9,
        out_specs=vmem,
        scratch_shapes=[pltpu.VMEM((L, E), jnp.float32)],
        compiler_params=pltpu.CompilerParams(vmem_limit_bytes=32 * 1024 * 1024),
        cost_estimate=pl.CostEstimate(flops=flops, transcendentals=transcendentals,
                                      bytes_accessed=bytes_accessed),
    )(dyn, prepared['const_vec'],
      prepared['w_enc_bd'], prepared['w_s_bd'],
      prepared['w_qkv'], prepared['w_o'], prepared['w_m1'], prepared['w_m2'],
      prepared['head_w'])

    return out[None, :, :action_levels]                                      # (1, T, A)


# --------------------------- deterministic parameters ------------------------

def init_params(seed, d_in, feat_dim, embed_size, action_levels, max_ep_len=100):
    E, F = embed_size, feat_dim
    key = jax.random.PRNGKey(seed)
    ks = iter(jax.random.split(key, 64))

    def w(shape, scale):
        return jax.random.normal(next(ks), shape, jnp.float32) * scale

    s_state = 1.0 / math.sqrt(F)
    params = dict(
        time_table=w((max_ep_len + 1, E), 0.02),
        w_r=w((1, E), 1.0), b_r=w((1, E), 0.1),
        w_a=w((1, E), 1.0), b_a=w((1, E), 0.1),
        # state_encoder stand-in: shared Linear(d_in -> F) + ReLU
        w_enc=w((d_in, F), 1.0 / math.sqrt(d_in)), b_enc=w((1, F), 0.1),
        # embed_state1..7 (module 7 exists but is unused by the reference forward)
        w_s=jnp.stack([w((F, E), s_state) for _ in range(7)], axis=0),
        b_s=jnp.stack([w((1, E), s_state) for _ in range(7)], axis=0),
        ln_g=jnp.ones((1, E), jnp.float32), ln_b=jnp.zeros((1, E), jnp.float32),
        w_qkv=w((E, 3 * E), 1.0 / math.sqrt(E)), b_qkv=jnp.zeros((1, 3 * E), jnp.float32),
        w_o=w((E, E), 1.0 / math.sqrt(E)), b_o=jnp.zeros((1, E), jnp.float32),
        ln1_g=jnp.ones((1, E), jnp.float32), ln1_b=jnp.zeros((1, E), jnp.float32),
        ln2_g=jnp.ones((1, E), jnp.float32), ln2_b=jnp.zeros((1, E), jnp.float32),
        w_m1=w((E, 4 * E), 1.0 / math.sqrt(E)), b_m1=jnp.zeros((1, 4 * E), jnp.float32),
        w_m2=w((4 * E, E), 1.0 / math.sqrt(4 * E)), b_m2=jnp.zeros((1, E), jnp.float32),
        head_w=w((E, action_levels), 1.0 / math.sqrt(E)),
        head_b=jnp.zeros((1, action_levels), jnp.float32),
    )
    return params


# ----------------------------------- main -------------------------------------

if __name__ == "__main__":
    T = 8            # sequence length (timesteps)
    E = 128          # plm_embed_size  (must satisfy 9*T <= E)
    F = 16           # state_feature_dim
    D_IN = 8         # raw per-feature state dim (input to stand-in state encoder)
    A = 6            # action_levels

    key = jax.random.PRNGKey(0)
    k1, k2, k3 = jax.random.split(key, 3)
    states = jax.random.normal(k1, (1, T, 7, D_IN), jnp.float32)
    actions = jax.random.uniform(k2, (1, T, 1), jnp.float32)
    returns = jax.random.normal(k3, (1, T, 1), jnp.float32)
    timesteps = jnp.arange(T, dtype=jnp.int32)[None, :]

    params = init_params(0, D_IN, F, E, A, max_ep_len=100)
    prepared = prepare_params(params)          # one-time weight folding / bf16 cast / packing

    out = offline_rl_policy_forward(prepared, states, actions, returns, timesteps,
                                    action_levels=A, residual=False)
    out = jax.block_until_ready(out)
    assert out.shape == (1, T, A)
    assert bool(jnp.all(jnp.isfinite(out)))
    print("KERNEL_OK")
</pallas_src>

<mosaic_0001>
module attributes {stable_mosaic.version = 11 : i64} {
  func.func @kernel(%arg0: memref<16x128xf32, #tpu.memory_space<vmem>>, %arg1: memref<17x896xf32, #tpu.memory_space<vmem>>, %arg2: memref<64x128xbf16, #tpu.memory_space<vmem>>, %arg3: memref<128x896xbf16, #tpu.memory_space<vmem>>, %arg4: memref<128x384xbf16, #tpu.memory_space<vmem>>, %arg5: memref<128x128xbf16, #tpu.memory_space<vmem>>, %arg6: memref<128x512xbf16, #tpu.memory_space<vmem>>, %arg7: memref<512x128xbf16, #tpu.memory_space<vmem>>, %arg8: memref<128x128xbf16, #tpu.memory_space<vmem>>, %arg9: memref<8x128xf32, #tpu.memory_space<vmem>>, %arg10: memref<72x128xf32, #tpu.memory_space<vmem>>) attributes {dimension_semantics = [], scalar_prefetch = 0 : i64, scratch_operands = 1 : i64, tpu.core_type = #tpu.core_type<tc>} {
    %c0 = arith.constant 0 : index
    %c0_0 = arith.constant 0 : index
    %0 = vector.load %arg0[%c0, %c0_0] : memref<16x128xf32, #tpu.memory_space<vmem>>, vector<8x128xf32>
    %c8 = arith.constant 8 : index
    %c0_1 = arith.constant 0 : index
    %1 = vector.load %arg0[%c8, %c0_1] : memref<16x128xf32, #tpu.memory_space<vmem>>, vector<8x64xf32>
    %c8_2 = arith.constant 8 : index
    %c64 = arith.constant 64 : index
    %2 = vector.load %arg0[%c8_2, %c64] : memref<16x128xf32, #tpu.memory_space<vmem>>, vector<8x1xf32>
    %c8_3 = arith.constant 8 : index
    %c65 = arith.constant 65 : index
    %3 = vector.load %arg0[%c8_3, %c65] : memref<16x128xf32, #tpu.memory_space<vmem>>, vector<8x1xf32>
    %c4 = arith.constant 4 : index
    %c0_4 = arith.constant 0 : index
    %4 = vector.load %arg1[%c4, %c0_4] : memref<17x896xf32, #tpu.memory_space<vmem>>, vector<1x128xf32>
    %c5 = arith.constant 5 : index
    %c0_5 = arith.constant 0 : index
    %5 = vector.load %arg1[%c5, %c0_5] : memref<17x896xf32, #tpu.memory_space<vmem>>, vector<1x128xf32>
    %c0_6 = arith.constant 0 : index
    %c0_7 = arith.constant 0 : index
    %6 = vector.load %arg1[%c0_6, %c0_7] : memref<17x896xf32, #tpu.memory_space<vmem>>, vector<1x128xf32>
    %7 = vector.broadcast %2 : vector<8x1xf32> to vector<8x128xf32>
    %8 = vector.broadcast %6 : vector<1x128xf32> to vector<8x128xf32>
    %9 = arith.mulf %7, %8 : vector<8x128xf32>
    %c1 = arith.constant 1 : index
    %c0_8 = arith.constant 0 : index
    %10 = vector.load %arg1[%c1, %c0_8] : memref<17x896xf32, #tpu.memory_space<vmem>>, vector<1x128xf32>
    %11 = vector.broadcast %10 : vector<1x128xf32> to vector<8x128xf32>
    %12 = arith.addf %9, %11 : vector<8x128xf32>
    %13 = arith.addf %12, %0 : vector<8x128xf32>
    %cst = arith.constant dense<0.000000e+00> : vector<8xf32>
    %14 = vector.multi_reduction <add>, %13, %cst [1] : vector<8x128xf32> to vector<8xf32>
    %15 = vector.shape_cast %14 : vector<8xf32> to vector<8x1xf32>
    %cst_9 = arith.constant 1.280000e+02 : f32
    %16 = vector.broadcast %cst_9 : f32 to vector<8x1xf32>
    %17 = arith.divf %15, %16 : vector<8x1xf32>
    %18 = vector.broadcast %17 : vector<8x1xf32> to vector<8x128xf32>
    %19 = arith.subf %13, %18 : vector<8x128xf32>
    %20 = arith.mulf %19, %19 : vector<8x128xf32>
    %cst_10 = arith.constant dense<0.000000e+00> : vector<8xf32>
    %21 = vector.multi_reduction <add>, %20, %cst_10 [1] : vector<8x128xf32> to vector<8xf32>
    %22 = vector.shape_cast %21 : vector<8xf32> to vector<8x1xf32>
    %cst_11 = arith.constant 1.280000e+02 : f32
    %23 = vector.broadcast %cst_11 : f32 to vector<8x1xf32>
    %24 = arith.divf %22, %23 : vector<8x1xf32>
    %25 = vector.broadcast %17 : vector<8x1xf32> to vector<8x128xf32>
    %26 = arith.subf %13, %25 : vector<8x128xf32>
    %cst_12 = arith.constant 9.99999974E-6 : f32
    %27 = vector.broadcast %cst_12 : f32 to vector<8x1xf32>
    %28 = arith.addf %24, %27 : vector<8x1xf32>
    %29 = math.rsqrt %28 : vector<8x1xf32>
    %30 = vector.broadcast %29 : vector<8x1xf32> to vector<8x128xf32>
    %31 = arith.mulf %26, %30 : vector<8x128xf32>
    %32 = vector.broadcast %4 : vector<1x128xf32> to vector<8x128xf32>
    %33 = arith.mulf %31, %32 : vector<8x128xf32>
    %34 = vector.broadcast %5 : vector<1x128xf32> to vector<8x128xf32>
    %35 = arith.addf %33, %34 : vector<8x128xf32>
    %c0_13 = arith.constant 0 : index
    %c0_14 = arith.constant 0 : index
    %36 = vector.load %arg10[%c0_13, %c0_14] : memref<72x128xf32, #tpu.memory_space<vmem>>, vector<8x128xf32>
    tpu.vector_store %arg10[%c0_13, %c0_14], %35 {strides = array<i32>} : memref<72x128xf32, #tpu.memory_space<vmem>>, vector<8x128xf32>,
    %c2 = arith.constant 2 : index
    %c0_15 = arith.constant 0 : index
    %37 = vector.load %arg1[%c2, %c0_15] : memref<17x896xf32, #tpu.memory_space<vmem>>, vector<1x128xf32>
    %38 = vector.broadcast %3 : vector<8x1xf32> to vector<8x128xf32>
    %39 = vector.broadcast %37 : vector<1x128xf32> to vector<8x128xf32>
    %40 = arith.mulf %38, %39 : vector<8x128xf32>
    %c3 = arith.constant 3 : index
    %c0_16 = arith.constant 0 : index
    %41 = vector.load %arg1[%c3, %c0_16] : memref<17x896xf32, #tpu.memory_space<vmem>>, vector<1x128xf32>
    %42 = vector.broadcast %41 : vector<1x128xf32> to vector<8x128xf32>
    %43 = arith.addf %40, %42 : vector<8x128xf32>
    %44 = arith.addf %43, %0 : vector<8x128xf32>
    %cst_17 = arith.constant dense<0.000000e+00> : vector<8xf32>
    %45 = vector.multi_reduction <add>, %44, %cst_17 [1] : vector<8x128xf32> to vector<8xf32>
    %46 = vector.shape_cast %45 : vector<8xf32> to vector<8x1xf32>
    %cst_18 = arith.constant 1.280000e+02 : f32
    %47 = vector.broadcast %cst_18 : f32 to vector<8x1xf32>
    %48 = arith.divf %46, %47 : vector<8x1xf32>
    %49 = vector.broadcast %48 : vector<8x1xf32> to vector<8x128xf32>
    %50 = arith.subf %44, %49 : vector<8x128xf32>
    %51 = arith.mulf %50, %50 : vector<8x128xf32>
    %cst_19 = arith.constant dense<0.000000e+00> : vector<8xf32>
    %52 = vector.multi_reduction <add>, %51, %cst_19 [1] : vector<8x128xf32> to vector<8xf32>
    %53 = vector.shape_cast %52 : vector<8xf32> to vector<8x1xf32>
    %cst_20 = arith.constant 1.280000e+02 : f32
    %54 = vector.broadcast %cst_20 : f32 to vector<8x1xf32>
    %55 = arith.divf %53, %54 : vector<8x1xf32>
    %56 = vector.broadcast %48 : vector<8x1xf32> to vector<8x128xf32>
    %57 = arith.subf %44, %56 : vector<8x128xf32>
    %cst_21 = arith.constant 9.99999974E-6 : f32
    %58 = vector.broadcast %cst_21 : f32 to vector<8x1xf32>
    %59 = arith.addf %55, %58 : vector<8x1xf32>
    %60 = math.rsqrt %59 : vector<8x1xf32>
    %61 = vector.broadcast %60 : vector<8x1xf32> to vector<8x128xf32>
    %62 = arith.mulf %57, %61 : vector<8x128xf32>
    %63 = vector.broadcast %4 : vector<1x128xf32> to vector<8x128xf32>
    %64 = arith.mulf %62, %63 : vector<8x128xf32>
    %65 = vector.broadcast %5 : vector<1x128xf32> to vector<8x128xf32>
    %66 = arith.addf %64, %65 : vector<8x128xf32>
    %c64_22 = arith.constant 64 : index
    %c0_23 = arith.constant 0 : index
    %67 = vector.load %arg10[%c64_22, %c0_23] : memref<72x128xf32, #tpu.memory_space<vmem>>, vector<8x128xf32>
    tpu.vector_store %arg10[%c64_22, %c0_23], %66 {strides = array<i32>} : memref<72x128xf32, #tpu.memory_space<vmem>>, vector<8x128xf32>,
    %68 = arith.truncf %1 : vector<8x64xf32> to vector<8x64xbf16>
    %c0_24 = arith.constant 0 : index
    %c0_25 = arith.constant 0 : index
    %69 = vector.load %arg2[%c0_24, %c0_25] : memref<64x128xbf16, #tpu.memory_space<vmem>>, vector<64x128xbf16>
    %cst_26 = arith.constant dense<0.000000e+00> : vector<8x128xf32>
    %70 = tpu.matmul %68, %69, %cst_26 {dimension_numbers = #tpu.dot_dimension_numbers<[1], [0], [0], [1], [0, 0, 1, 1], [], []>} : vector<8x64xbf16>, vector<64x128xbf16>, vector<8x128xf32> -> vector<8x128xf32>
    %c12 = arith.constant 12 : index
    %c0_27 = arith.constant 0 : index
    %71 = vector.load %arg1[%c12, %c0_27] : memref<17x896xf32, #tpu.memory_space<vmem>>, vector<1x128xf32>
    %72 = vector.broadcast %71 : vector<1x128xf32> to vector<8x128xf32>
    %73 = arith.addf %70, %72 : vector<8x128xf32>
    %cst_28 = arith.constant 0.000000e+00 : f32
    %74 = vector.broadcast %cst_28 : f32 to vector<8x128xf32>
    %75 = arith.maximumf %73, %74 : vector<8x128xf32>
    %76 = arith.truncf %75 : vector<8x128xf32> to vector<8x128xbf16>
    %c0_29 = arith.constant 0 : index
    %c0_30 = arith.constant 0 : index
    %77 = vector.load %arg3[%c0_29, %c0_30] : memref<128x896xbf16, #tpu.memory_space<vmem>>, vector<128x896xbf16>
    %cst_31 = arith.constant dense<0.000000e+00> : vector<8x896xf32>
    %78 = tpu.matmul %76, %77, %cst_31 {dimension_numbers = #tpu.dot_dimension_numbers<[1], [0], [0], [1], [0, 0, 1, 1], [], []>} : vector<8x128xbf16>, vector<128x896xbf16>, vector<8x896xf32> -> vector<8x896xf32>
    %c13 = arith.constant 13 : index
    %c0_32 = arith.constant 0 : index
    %79 = vector.load %arg1[%c13, %c0_32] : memref<17x896xf32, #tpu.memory_space<vmem>>, vector<1x896xf32>
    %80 = vector.broadcast %79 : vector<1x896xf32> to vector<8x896xf32>
    %81 = arith.addf %78, %80 : vector<8x896xf32>
    %82 = vector.extract_strided_slice %81 {offsets = [0, 0], sizes = [8, 128], strides = [1, 1]} : vector<8x896xf32> to vector<8x128xf32>
    %83 = arith.addf %82, %0 : vector<8x128xf32>
    %cst_33 = arith.constant dense<0.000000e+00> : vector<8xf32>
    %84 = vector.multi_reduction <add>, %83, %cst_33 [1] : vector<8x128xf32> to vector<8xf32>
    %85 = vector.shape_cast %84 : vector<8xf32> to vector<8x1xf32>
    %cst_34 = arith.constant 1.280000e+02 : f32
    %86 = vector.broadcast %cst_34 : f32 to vector<8x1xf32>
    %87 = arith.divf %85, %86 : vector<8x1xf32>
    %88 = vector.broadcast %87 : vector<8x1xf32> to vector<8x128xf32>
    %89 = arith.subf %83, %88 : vector<8x128xf32>
    %90 = arith.mulf %89, %89 : vector<8x128xf32>
    %cst_35 = arith.constant dense<0.000000e+00> : vector<8xf32>
    %91 = vector.multi_reduction <add>, %90, %cst_35 [1] : vector<8x128xf32> to vector<8xf32>
    %92 = vector.shape_cast %91 : vector<8xf32> to vector<8x1xf32>
    %cst_36 = arith.constant 1.280000e+02 : f32
    %93 = vector.broadcast %cst_36 : f32 to vector<8x1xf32>
    %94 = arith.divf %92, %93 : vector<8x1xf32>
    %95 = vector.broadcast %87 : vector<8x1xf32> to vector<8x128xf32>
    %96 = arith.subf %83, %95 : vector<8x128xf32>
    %cst_37 = arith.constant 9.99999974E-6 : f32
    %97 = vector.broadcast %cst_37 : f32 to vector<8x1xf32>
    %98 = arith.addf %94, %97 : vector<8x1xf32>
    %99 = math.rsqrt %98 : vector<8x1xf32>
    %100 = vector.broadcast %99 : vector<8x1xf32> to vector<8x128xf32>
    %101 = arith.mulf %96, %100 : vector<8x128xf32>
    %102 = vector.broadcast %4 : vector<1x128xf32> to vector<8x128xf32>
    %103 = arith.mulf %101, %102 : vector<8x128xf32>
    %104 = vector.broadcast %5 : vector<1x128xf32> to vector<8x128xf32>
    %105 = arith.addf %103, %104 : vector<8x128xf32>
    %c8_38 = arith.constant 8 : index
    %c0_39 = arith.constant 0 : index
    %106 = vector.load %arg10[%c8_38, %c0_39] : memref<72x128xf32, #tpu.memory_space<vmem>>, vector<8x128xf32>
    tpu.vector_store %arg10[%c8_38, %c0_39], %105 {strides = array<i32>} : memref<72x128xf32, #tpu.memory_space<vmem>>, vector<8x128xf32>,
    %107 = vector.extract_strided_slice %81 {offsets = [0, 128], sizes = [8, 128], strides = [1, 1]} : vector<8x896xf32> to vector<8x128xf32>
    %108 = arith.addf %107, %0 : vector<8x128xf32>
    %cst_40 = arith.constant dense<0.000000e+00> : vector<8xf32>
    %109 = vector.multi_reduction <add>, %108, %cst_40 [1] : vector<8x128xf32> to vector<8xf32>
    %110 = vector.shape_cast %109 : vector<8xf32> to vector<8x1xf32>
    %cst_41 = arith.constant 1.280000e+02 : f32
    %111 = vector.broadcast %cst_41 : f32 to vector<8x1xf32>
    %112 = arith.divf %110, %111 : vector<8x1xf32>
    %113 = vector.broadcast %112 : vector<8x1xf32> to vector<8x128xf32>
    %114 = arith.subf %108, %113 : vector<8x128xf32>
    %115 = arith.mulf %114, %114 : vector<8x128xf32>
    %cst_42 = arith.constant dense<0.000000e+00> : vector<8xf32>
    %116 = vector.multi_reduction <add>, %115, %cst_42 [1] : vector<8x128xf32> to vector<8xf32>
    %117 = vector.shape_cast %116 : vector<8xf32> to vector<8x1xf32>
    %cst_43 = arith.constant 1.280000e+02 : f32
    %118 = vector.broadcast %cst_43 : f32 to vector<8x1xf32>
    %119 = arith.divf %117, %118 : vector<8x1xf32>
    %120 = vector.broadcast %112 : vector<8x1xf32> to vector<8x128xf32>
    %121 = arith.subf %108, %120 : vector<8x128xf32>
    %cst_44 = arith.constant 9.99999974E-6 : f32
    %122 = vector.broadcast %cst_44 : f32 to vector<8x1xf32>
    %123 = arith.addf %119, %122 : vector<8x1xf32>
    %124 = math.rsqrt %123 : vector<8x1xf32>
    %125 = vector.broadcast %124 : vector<8x1xf32> to vector<8x128xf32>
    %126 = arith.mulf %121, %125 : vector<8x128xf32>
    %127 = vector.broadcast %4 : vector<1x128xf32> to vector<8x128xf32>
    %128 = arith.mulf %126, %127 : vector<8x128xf32>
    %129 = vector.broadcast %5 : vector<1x128xf32> to vector<8x128xf32>
    %130 = arith.addf %128, %129 : vector<8x128xf32>
    %c16 = arith.constant 16 : index
    %c0_45 = arith.constant 0 : index
    %131 = vector.load %arg10[%c16, %c0_45] : memref<72x128xf32, #tpu.memory_space<vmem>>, vector<8x128xf32>
    tpu.vector_store %arg10[%c16, %c0_45], %130 {strides = array<i32>} : memref<72x128xf32, #tpu.memory_space<vmem>>, vector<8x128xf32>,
    %132 = vector.extract_strided_slice %81 {offsets = [0, 256], sizes = [8, 128], strides = [1, 1]} : vector<8x896xf32> to vector<8x128xf32>
    %133 = arith.addf %132, %0 : vector<8x128xf32>
    %cst_46 = arith.constant dense<0.000000e+00> : vector<8xf32>
    %134 = vector.multi_reduction <add>, %133, %cst_46 [1] : vector<8x128xf32> to vector<8xf32>
    %135 = vector.shape_cast %134 : vector<8xf32> to vector<8x1xf32>
    %cst_47 = arith.constant 1.280000e+02 : f32
    %136 = vector.broadcast %cst_47 : f32 to vector<8x1xf32>
    %137 = arith.divf %135, %136 : vector<8x1xf32>
    %138 = vector.broadcast %137 : vector<8x1xf32> to vector<8x128xf32>
    %139 = arith.subf %133, %138 : vector<8x128xf32>
    %140 = arith.mulf %139, %139 : vector<8x128xf32>
    %cst_48 = arith.constant dense<0.000000e+00> : vector<8xf32>
    %141 = vector.multi_reduction <add>, %140, %cst_48 [1] : vector<8x128xf32> to vector<8xf32>
    %142 = vector.shape_cast %141 : vector<8xf32> to vector<8x1xf32>
    %cst_49 = arith.constant 1.280000e+02 : f32
    %143 = vector.broadcast %cst_49 : f32 to vector<8x1xf32>
    %144 = arith.divf %142, %143 : vector<8x1xf32>
    %145 = vector.broadcast %137 : vector<8x1xf32> to vector<8x128xf32>
    %146 = arith.subf %133, %145 : vector<8x128xf32>
    %cst_50 = arith.constant 9.99999974E-6 : f32
    %147 = vector.broadcast %cst_50 : f32 to vector<8x1xf32>
    %148 = arith.addf %144, %147 : vector<8x1xf32>
    %149 = math.rsqrt %148 : vector<8x1xf32>
    %150 = vector.broadcast %149 : vector<8x1xf32> to vector<8x128xf32>
    %151 = arith.mulf %146, %150 : vector<8x128xf32>
    %152 = vector.broadcast %4 : vector<1x128xf32> to vector<8x128xf32>
    %153 = arith.mulf %151, %152 : vector<8x128xf32>
    %154 = vector.broadcast %5 : vector<1x128xf32> to vector<8x128xf32>
    %155 = arith.addf %153, %154 : vector<8x128xf32>
    %c24 = arith.constant 24 : index
    %c0_51 = arith.constant 0 : index
    %156 = vector.load %arg10[%c24, %c0_51] : memref<72x128xf32, #tpu.memory_space<vmem>>, vector<8x128xf32>
    tpu.vector_store %arg10[%c24, %c0_51], %155 {strides = array<i32>} : memref<72x128xf32, #tpu.memory_space<vmem>>, vector<8x128xf32>,
    %157 = vector.extract_strided_slice %81 {offsets = [0, 384], sizes = [8, 128], strides = [1, 1]} : vector<8x896xf32> to vector<8x128xf32>
    %158 = arith.addf %157, %0 : vector<8x128xf32>
    %cst_52 = arith.constant dense<0.000000e+00> : vector<8xf32>
    %159 = vector.multi_reduction <add>, %158, %cst_52 [1] : vector<8x128xf32> to vector<8xf32>
    %160 = vector.shape_cast %159 : vector<8xf32> to vector<8x1xf32>
    %cst_53 = arith.constant 1.280000e+02 : f32
    %161 = vector.broadcast %cst_53 : f32 to vector<8x1xf32>
    %162 = arith.divf %160, %161 : vector<8x1xf32>
    %163 = vector.broadcast %162 : vector<8x1xf32> to vector<8x128xf32>
    %164 = arith.subf %158, %163 : vector<8x128xf32>
    %165 = arith.mulf %164, %164 : vector<8x128xf32>
    %cst_54 = arith.constant dense<0.000000e+00> : vector<8xf32>
    %166 = vector.multi_reduction <add>, %165, %cst_54 [1] : vector<8x128xf32> to vector<8xf32>
    %167 = vector.shape_cast %166 : vector<8xf32> to vector<8x1xf32>
    %cst_55 = arith.constant 1.280000e+02 : f32
    %168 = vector.broadcast %cst_55 : f32 to vector<8x1xf32>
    %169 = arith.divf %167, %168 : vector<8x1xf32>
    %170 = vector.broadcast %162 : vector<8x1xf32> to vector<8x128xf32>
    %171 = arith.subf %158, %170 : vector<8x128xf32>
    %cst_56 = arith.constant 9.99999974E-6 : f32
    %172 = vector.broadcast %cst_56 : f32 to vector<8x1xf32>
    %173 = arith.addf %169, %172 : vector<8x1xf32>
    %174 = math.rsqrt %173 : vector<8x1xf32>
    %175 = vector.broadcast %174 : vector<8x1xf32> to vector<8x128xf32>
    %176 = arith.mulf %171, %175 : vector<8x128xf32>
    %177 = vector.broadcast %4 : vector<1x128xf32> to vector<8x128xf32>
    %178 = arith.mulf %176, %177 : vector<8x128xf32>
    %179 = vector.broadcast %5 : vector<1x128xf32> to vector<8x128xf32>
    %180 = arith.addf %178, %179 : vector<8x128xf32>
    %c32 = arith.constant 32 : index
    %c0_57 = arith.constant 0 : index
    %181 = vector.load %arg10[%c32, %c0_57] : memref<72x128xf32, #tpu.memory_space<vmem>>, vector<8x128xf32>
    tpu.vector_store %arg10[%c32, %c0_57], %180 {strides = array<i32>} : memref<72x128xf32, #tpu.memory_space<vmem>>, vector<8x128xf32>,
    %182 = vector.extract_strided_slice %81 {offsets = [0, 512], sizes = [8, 128], strides = [1, 1]} : vector<8x896xf32> to vector<8x128xf32>
    %183 = arith.addf %182, %0 : vector<8x128xf32>
    %cst_58 = arith.constant dense<0.000000e+00> : vector<8xf32>
    %184 = vector.multi_reduction <add>, %183, %cst_58 [1] : vector<8x128xf32> to vector<8xf32>
    %185 = vector.shape_cast %184 : vector<8xf32> to vector<8x1xf32>
    %cst_59 = arith.constant 1.280000e+02 : f32
    %186 = vector.broadcast %cst_59 : f32 to vector<8x1xf32>
    %187 = arith.divf %185, %186 : vector<8x1xf32>
    %188 = vector.broadcast %187 : vector<8x1xf32> to vector<8x128xf32>
    %189 = arith.subf %183, %188 : vector<8x128xf32>
    %190 = arith.mulf %189, %189 : vector<8x128xf32>
    %cst_60 = arith.constant dense<0.000000e+00> : vector<8xf32>
    %191 = vector.multi_reduction <add>, %190, %cst_60 [1] : vector<8x128xf32> to vector<8xf32>
    %192 = vector.shape_cast %191 : vector<8xf32> to vector<8x1xf32>
    %cst_61 = arith.constant 1.280000e+02 : f32
    %193 = vector.broadcast %cst_61 : f32 to vector<8x1xf32>
    %194 = arith.divf %192, %193 : vector<8x1xf32>
    %195 = vector.broadcast %187 : vector<8x1xf32> to vector<8x128xf32>
    %196 = arith.subf %183, %195 : vector<8x128xf32>
    %cst_62 = arith.constant 9.99999974E-6 : f32
    %197 = vector.broadcast %cst_62 : f32 to vector<8x1xf32>
    %198 = arith.addf %194, %197 : vector<8x1xf32>
    %199 = math.rsqrt %198 : vector<8x1xf32>
    %200 = vector.broadcast %199 : vector<8x1xf32> to vector<8x128xf32>
    %201 = arith.mulf %196, %200 : vector<8x128xf32>
    %202 = vector.broadcast %4 : vector<1x128xf32> to vector<8x128xf32>
    %203 = arith.mulf %201, %202 : vector<8x128xf32>
    %204 = vector.broadcast %5 : vector<1x128xf32> to vector<8x128xf32>
    %205 = arith.addf %203, %204 : vector<8x128xf32>
    %c40 = arith.constant 40 : index
    %c0_63 = arith.constant 0 : index
    %206 = vector.load %arg10[%c40, %c0_63] : memref<72x128xf32, #tpu.memory_space<vmem>>, vector<8x128xf32>
    tpu.vector_store %arg10[%c40, %c0_63], %205 {strides = array<i32>} : memref<72x128xf32, #tpu.memory_space<vmem>>, vector<8x128xf32>,
    %207 = vector.extract_strided_slice %81 {offsets = [0, 640], sizes = [8, 128], strides = [1, 1]} : vector<8x896xf32> to vector<8x128xf32>
    %208 = arith.addf %207, %0 : vector<8x128xf32>
    %cst_64 = arith.constant dense<0.000000e+00> : vector<8xf32>
    %209 = vector.multi_reduction <add>, %208, %cst_64 [1] : vector<8x128xf32> to vector<8xf32>
    %210 = vector.shape_cast %209 : vector<8xf32> to vector<8x1xf32>
    %cst_65 = arith.constant 1.280000e+02 : f32
    %211 = vector.broadcast %cst_65 : f32 to vector<8x1xf32>
    %212 = arith.divf %210, %211 : vector<8x1xf32>
    %213 = vector.broadcast %212 : vector<8x1xf32> to vector<8x128xf32>
    %214 = arith.subf %208, %213 : vector<8x128xf32>
    %215 = arith.mulf %214, %214 : vector<8x128xf32>
    %cst_66 = arith.constant dense<0.000000e+00> : vector<8xf32>
    %216 = vector.multi_reduction <add>, %215, %cst_66 [1] : vector<8x128xf32> to vector<8xf32>
    %217 = vector.shape_cast %216 : vector<8xf32> to vector<8x1xf32>
    %cst_67 = arith.constant 1.280000e+02 : f32
    %218 = vector.broadcast %cst_67 : f32 to vector<8x1xf32>
    %219 = arith.divf %217, %218 : vector<8x1xf32>
    %220 = vector.broadcast %212 : vector<8x1xf32> to vector<8x128xf32>
    %221 = arith.subf %208, %220 : vector<8x128xf32>
    %cst_68 = arith.constant 9.99999974E-6 : f32
    %222 = vector.broadcast %cst_68 : f32 to vector<8x1xf32>
    %223 = arith.addf %219, %222 : vector<8x1xf32>
    %224 = math.rsqrt %223 : vector<8x1xf32>
    %225 = vector.broadcast %224 : vector<8x1xf32> to vector<8x128xf32>
    %226 = arith.mulf %221, %225 : vector<8x128xf32>
    %227 = vector.broadcast %4 : vector<1x128xf32> to vector<8x128xf32>
    %228 = arith.mulf %226, %227 : vector<8x128xf32>
    %229 = vector.broadcast %5 : vector<1x128xf32> to vector<8x128xf32>
    %230 = arith.addf %228, %229 : vector<8x128xf32>
    %c48 = arith.constant 48 : index
    %c0_69 = arith.constant 0 : index
    %231 = vector.load %arg10[%c48, %c0_69] : memref<72x128xf32, #tpu.memory_space<vmem>>, vector<8x128xf32>
    tpu.vector_store %arg10[%c48, %c0_69], %230 {strides = array<i32>} : memref<72x128xf32, #tpu.memory_space<vmem>>, vector<8x128xf32>,
    %232 = vector.extract_strided_slice %81 {offsets = [0, 768], sizes = [8, 128], strides = [1, 1]} : vector<8x896xf32> to vector<8x128xf32>
    %233 = arith.addf %232, %0 : vector<8x128xf32>
    %cst_70 = arith.constant dense<0.000000e+00> : vector<8xf32>
    %234 = vector.multi_reduction <add>, %233, %cst_70 [1] : vector<8x128xf32> to vector<8xf32>
    %235 = vector.shape_cast %234 : vector<8xf32> to vector<8x1xf32>
    %cst_71 = arith.constant 1.280000e+02 : f32
    %236 = vector.broadcast %cst_71 : f32 to vector<8x1xf32>
    %237 = arith.divf %235, %236 : vector<8x1xf32>
    %238 = vector.broadcast %237 : vector<8x1xf32> to vector<8x128xf32>
    %239 = arith.subf %233, %238 : vector<8x128xf32>
    %240 = arith.mulf %239, %239 : vector<8x128xf32>
    %cst_72 = arith.constant dense<0.000000e+00> : vector<8xf32>
    %241 = vector.multi_reduction <add>, %240, %cst_72 [1] : vector<8x128xf32> to vector<8xf32>
    %242 = vector.shape_cast %241 : vector<8xf32> to vector<8x1xf32>
    %cst_73 = arith.constant 1.280000e+02 : f32
    %243 = vector.broadcast %cst_73 : f32 to vector<8x1xf32>
    %244 = arith.divf %242, %243 : vector<8x1xf32>
    %245 = vector.broadcast %237 : vector<8x1xf32> to vector<8x128xf32>
    %246 = arith.subf %233, %245 : vector<8x128xf32>
    %cst_74 = arith.constant 9.99999974E-6 : f32
    %247 = vector.broadcast %cst_74 : f32 to vector<8x1xf32>
    %248 = arith.addf %244, %247 : vector<8x1xf32>
    %249 = math.rsqrt %248 : vector<8x1xf32>
    %250 = vector.broadcast %249 : vector<8x1xf32> to vector<8x128xf32>
    %251 = arith.mulf %246, %250 : vector<8x128xf32>
    %252 = vector.broadcast %4 : vector<1x128xf32> to vector<8x128xf32>
    %253 = arith.mulf %251, %252 : vector<8x128xf32>
    %254 = vector.broadcast %5 : vector<1x128xf32> to vector<8x128xf32>
    %255 = arith.addf %253, %254 : vector<8x128xf32>
    %c56 = arith.constant 56 : index
    %c0_75 = arith.constant 0 : index
    %256 = vector.load %arg10[%c56, %c0_75] : memref<72x128xf32, #tpu.memory_space<vmem>>, vector<8x128xf32>
    tpu.vector_store %arg10[%c56, %c0_75], %255 {strides = array<i32>} : memref<72x128xf32, #tpu.memory_space<vmem>>, vector<8x128xf32>,
    %c0_76 = arith.constant 0 : index
    %c0_77 = arith.constant 0 : index
    %257 = vector.load %arg10[%c0_76, %c0_77] : memref<72x128xf32, #tpu.memory_space<vmem>>, vector<72x128xf32>
    %c6 = arith.constant 6 : index
    %c0_78 = arith.constant 0 : index
    %258 = vector.load %arg1[%c6, %c0_78] : memref<17x896xf32, #tpu.memory_space<vmem>>, vector<1x128xf32>
    %c7 = arith.constant 7 : index
    %c0_79 = arith.constant 0 : index
    %259 = vector.load %arg1[%c7, %c0_79] : memref<17x896xf32, #tpu.memory_space<vmem>>, vector<1x128xf32>
    %cst_80 = arith.constant dense<0.000000e+00> : vector<72xf32>
    %260 = vector.multi_reduction <add>, %257, %cst_80 [1] : vector<72x128xf32> to vector<72xf32>
    %261 = vector.shape_cast %260 : vector<72xf32> to vector<72x1xf32>
    %cst_81 = arith.constant 1.280000e+02 : f32
    %262 = vector.broadcast %cst_81 : f32 to vector<72x1xf32>
    %263 = arith.divf %261, %262 : vector<72x1xf32>
    %264 = vector.broadcast %263 : vector<72x1xf32> to vector<72x128xf32>
    %265 = arith.subf %257, %264 : vector<72x128xf32>
    %266 = arith.mulf %265, %265 : vector<72x128xf32>
    %cst_82 = arith.constant dense<0.000000e+00> : vector<72xf32>
    %267 = vector.multi_reduction <add>, %266, %cst_82 [1] : vector<72x128xf32> to vector<72xf32>
    %268 = vector.shape_cast %267 : vector<72xf32> to vector<72x1xf32>
    %cst_83 = arith.constant 1.280000e+02 : f32
    %269 = vector.broadcast %cst_83 : f32 to vector<72x1xf32>
    %270 = arith.divf %268, %269 : vector<72x1xf32>
    %271 = vector.broadcast %263 : vector<72x1xf32> to vector<72x128xf32>
    %272 = arith.subf %257, %271 : vector<72x128xf32>
    %cst_84 = arith.constant 9.99999974E-6 : f32
    %273 = vector.broadcast %cst_84 : f32 to vector<72x1xf32>
    %274 = arith.addf %270, %273 : vector<72x1xf32>
    %275 = math.rsqrt %274 : vector<72x1xf32>
    %276 = vector.broadcast %275 : vector<72x1xf32> to vector<72x128xf32>
    %277 = arith.mulf %272, %276 : vector<72x128xf32>
    %278 = vector.broadcast %258 : vector<1x128xf32> to vector<72x128xf32>
    %279 = arith.mulf %277, %278 : vector<72x128xf32>
    %280 = vector.broadcast %259 : vector<1x128xf32> to vector<72x128xf32>
    %281 = arith.addf %279, %280 : vector<72x128xf32>
    %282 = arith.truncf %281 : vector<72x128xf32> to vector<72x128xbf16>
    %c0_85 = arith.constant 0 : index
    %c0_86 = arith.constant 0 : index
    %283 = vector.load %arg4[%c0_85, %c0_86] : memref<128x384xbf16, #tpu.memory_space<vmem>>, vector<128x384xbf16>
    %cst_87 = arith.constant dense<0.000000e+00> : vector<72x384xf32>
    %284 = tpu.matmul %282, %283, %cst_87 {dimension_numbers = #tpu.dot_dimension_numbers<[1], [0], [0], [1], [0, 0, 1, 1], [], []>} : vector<72x128xbf16>, vector<128x384xbf16>, vector<72x384xf32> -> vector<72x384xf32>
    %c14 = arith.constant 14 : index
    %c0_88 = arith.constant 0 : index
    %285 = vector.load %arg1[%c14, %c0_88] : memref<17x896xf32, #tpu.memory_space<vmem>>, vector<1x384xf32>
    %286 = vector.broadcast %285 : vector<1x384xf32> to vector<72x384xf32>
    %287 = arith.addf %284, %286 : vector<72x384xf32>
    %288 = vector.extract_strided_slice %287 {offsets = [0, 0], sizes = [72, 128], strides = [1, 1]} : vector<72x384xf32> to vector<72x128xf32>
    %289 = vector.extract_strided_slice %287 {offsets = [0, 128], sizes = [72, 128], strides = [1, 1]} : vector<72x384xf32> to vector<72x128xf32>
    %290 = vector.extract_strided_slice %287 {offsets = [0, 256], sizes = [72, 128], strides = [1, 1]} : vector<72x384xf32> to vector<72x128xf32>
    %291 = arith.truncf %288 : vector<72x128xf32> to vector<72x128xbf16>
    %292 = arith.truncf %289 : vector<72x128xf32> to vector<72x128xbf16>
    %cst_89 = arith.constant dense<0.000000e+00> : vector<72x72xf32>
    %293 = tpu.matmul %291, %292, %cst_89 {dimension_numbers = #tpu.dot_dimension_numbers<[1], [1], [0], [0], [0, 0, 1, 0], [], []>} : vector<72x128xbf16>, vector<72x128xbf16>, vector<72x72xf32> -> vector<72x72xf32>
    %294 = tpu.iota {dimensions = array<i32: 0>} : vector<72x72xi32>
    %295 = arith.sitofp %294 : vector<72x72xi32> to vector<72x72xf32>
    %296 = tpu.iota {dimensions = array<i32: 1>} : vector<72x72xi32>
    %297 = arith.sitofp %296 : vector<72x72xi32> to vector<72x72xf32>
    %cst_90 = arith.constant 5.000000e-01 : f32
    %298 = vector.broadcast %cst_90 : f32 to vector<72x72xf32>
    %299 = arith.addf %295, %298 : vector<72x72xf32>
    %cst_91 = arith.constant 1.250000e-01 : f32
    %300 = vector.broadcast %cst_91 : f32 to vector<72x72xf32>
    %301 = arith.mulf %299, %300 : vector<72x72xf32>
    %302 = math.floor %301 : vector<72x72xf32>
    %cst_92 = arith.constant 5.000000e-01 : f32
    %303 = vector.broadcast %cst_92 : f32 to vector<72x72xf32>
    %304 = arith.addf %297, %303 : vector<72x72xf32>
    %cst_93 = arith.constant 1.250000e-01 : f32
    %305 = vector.broadcast %cst_93 : f32 to vector<72x72xf32>
    %306 = arith.mulf %304, %305 : vector<72x72xf32>
    %307 = math.floor %306 : vector<72x72xf32>
    %cst_94 = arith.constant 8.000000e+00 : f32
    %308 = vector.broadcast %cst_94 : f32 to vector<72x72xf32>
    %309 = arith.mulf %302, %308 : vector<72x72xf32>
    %310 = arith.subf %295, %309 : vector<72x72xf32>
    %cst_95 = arith.constant 9.000000e+00 : f32
    %311 = vector.broadcast %cst_95 : f32 to vector<72x72xf32>
    %312 = arith.mulf %310, %311 : vector<72x72xf32>
    %313 = arith.addf %312, %302 : vector<72x72xf32>
    %cst_96 = arith.constant 8.000000e+00 : f32
    %314 = vector.broadcast %cst_96 : f32 to vector<72x72xf32>
    %315 = arith.mulf %307, %314 : vector<72x72xf32>
    %316 = arith.subf %297, %315 : vector<72x72xf32>
    %cst_97 = arith.constant 9.000000e+00 : f32
    %317 = vector.broadcast %cst_97 : f32 to vector<72x72xf32>
    %318 = arith.mulf %316, %317 : vector<72x72xf32>
    %319 = arith.addf %318, %307 : vector<72x72xf32>
    %320 = arith.cmpf oge, %313, %319 : vector<72x72xf32>
    %cst_98 = arith.constant -1.000000e+30 : f32
    %321 = vector.broadcast %cst_98 : f32 to vector<72x72xf32>
    %322 = arith.select %320, %293, %321 : vector<72x72xi1>, vector<72x72xf32>
    %cst_99 = arith.constant dense<0xFF800000> : vector<72xf32>
    %323 = vector.multi_reduction <maximumf>, %322, %cst_99 [1] : vector<72x72xf32> to vector<72xf32>
    %324 = vector.shape_cast %323 : vector<72xf32> to vector<72x1xf32>
    %325 = vector.broadcast %324 : vector<72x1xf32> to vector<72x72xf32>
    %326 = arith.subf %322, %325 : vector<72x72xf32>
    %327 = math.exp %326 : vector<72x72xf32>
    %cst_100 = arith.constant dense<0.000000e+00> : vector<72xf32>
    %328 = vector.multi_reduction <add>, %327, %cst_100 [1] : vector<72x72xf32> to vector<72xf32>
    %329 = vector.shape_cast %328 : vector<72xf32> to vector<72x1xf32>
    %330 = tpu.reciprocal %329 {approx = true} : vector<72x1xf32> -> vector<72x1xf32>
    %331 = vector.broadcast %330 : vector<72x1xf32> to vector<72x72xf32>
    %332 = arith.mulf %327, %331 : vector<72x72xf32>
    %333 = arith.truncf %332 : vector<72x72xf32> to vector<72x72xbf16>
    %334 = arith.truncf %290 : vector<72x128xf32> to vector<72x128xbf16>
    %cst_101 = arith.constant dense<0.000000e+00> : vector<72x128xf32>
    %335 = tpu.matmul %333, %334, %cst_101 {dimension_numbers = #tpu.dot_dimension_numbers<[1], [0], [0], [1], [0, 0, 1, 1], [], []>} : vector<72x72xbf16>, vector<72x128xbf16>, vector<72x128xf32> -> vector<72x128xf32>
    %336 = arith.truncf %335 : vector<72x128xf32> to vector<72x128xbf16>
    %c0_102 = arith.constant 0 : index
    %c0_103 = arith.constant 0 : index
    %337 = vector.load %arg5[%c0_102, %c0_103] : memref<128x128xbf16, #tpu.memory_space<vmem>>, vector<128x128xbf16>
    %cst_104 = arith.constant dense<0.000000e+00> : vector<72x128xf32>
    %338 = tpu.matmul %336, %337, %cst_104 {dimension_numbers = #tpu.dot_dimension_numbers<[1], [0], [0], [1], [0, 0, 1, 1], [], []>} : vector<72x128xbf16>, vector<128x128xbf16>, vector<72x128xf32> -> vector<72x128xf32>
    %c10 = arith.constant 10 : index
    %c0_105 = arith.constant 0 : index
    %339 = vector.load %arg1[%c10, %c0_105] : memref<17x896xf32, #tpu.memory_space<vmem>>, vector<1x128xf32>
    %340 = vector.broadcast %339 : vector<1x128xf32> to vector<72x128xf32>
    %341 = arith.addf %338, %340 : vector<72x128xf32>
    %342 = arith.addf %257, %341 : vector<72x128xf32>
    %c8_106 = arith.constant 8 : index
    %c0_107 = arith.constant 0 : index
    %343 = vector.load %arg1[%c8_106, %c0_107] : memref<17x896xf32, #tpu.memory_space<vmem>>, vector<1x128xf32>
    %c9 = arith.constant 9 : index
    %c0_108 = arith.constant 0 : index
    %344 = vector.load %arg1[%c9, %c0_108] : memref<17x896xf32, #tpu.memory_space<vmem>>, vector<1x128xf32>
    %cst_109 = arith.constant dense<0.000000e+00> : vector<72xf32>
    %345 = vector.multi_reduction <add>, %342, %cst_109 [1] : vector<72x128xf32> to vector<72xf32>
    %346 = vector.shape_cast %345 : vector<72xf32> to vector<72x1xf32>
    %cst_110 = arith.constant 1.280000e+02 : f32
    %347 = vector.broadcast %cst_110 : f32 to vector<72x1xf32>
    %348 = arith.divf %346, %347 : vector<72x1xf32>
    %349 = vector.broadcast %348 : vector<72x1xf32> to vector<72x128xf32>
    %350 = arith.subf %342, %349 : vector<72x128xf32>
    %351 = arith.mulf %350, %350 : vector<72x128xf32>
    %cst_111 = arith.constant dense<0.000000e+00> : vector<72xf32>
    %352 = vector.multi_reduction <add>, %351, %cst_111 [1] : vector<72x128xf32> to vector<72xf32>
    %353 = vector.shape_cast %352 : vector<72xf32> to vector<72x1xf32>
    %cst_112 = arith.constant 1.280000e+02 : f32
    %354 = vector.broadcast %cst_112 : f32 to vector<72x1xf32>
    %355 = arith.divf %353, %354 : vector<72x1xf32>
    %356 = vector.broadcast %348 : vector<72x1xf32> to vector<72x128xf32>
    %357 = arith.subf %342, %356 : vector<72x128xf32>
    %cst_113 = arith.constant 9.99999974E-6 : f32
    %358 = vector.broadcast %cst_113 : f32 to vector<72x1xf32>
    %359 = arith.addf %355, %358 : vector<72x1xf32>
    %360 = math.rsqrt %359 : vector<72x1xf32>
    %361 = vector.broadcast %360 : vector<72x1xf32> to vector<72x128xf32>
    %362 = arith.mulf %357, %361 : vector<72x128xf32>
    %363 = vector.broadcast %343 : vector<1x128xf32> to vector<72x128xf32>
    %364 = arith.mulf %362, %363 : vector<72x128xf32>
    %365 = vector.broadcast %344 : vector<1x128xf32> to vector<72x128xf32>
    %366 = arith.addf %364, %365 : vector<72x128xf32>
    %367 = arith.truncf %366 : vector<72x128xf32> to vector<72x128xbf16>
    %c0_114 = arith.constant 0 : index
    %c0_115 = arith.constant 0 : index
    %368 = vector.load %arg6[%c0_114, %c0_115] : memref<128x512xbf16, #tpu.memory_space<vmem>>, vector<128x512xbf16>
    %cst_116 = arith.constant dense<0.000000e+00> : vector<72x512xf32>
    %369 = tpu.matmul %367, %368, %cst_116 {dimension_numbers = #tpu.dot_dimension_numbers<[1], [0], [0], [1], [0, 0, 1, 1], [], []>} : vector<72x128xbf16>, vector<128x512xbf16>, vector<72x512xf32> -> vector<72x512xf32>
    %c15 = arith.constant 15 : index
    %c0_117 = arith.constant 0 : index
    %370 = vector.load %arg1[%c15, %c0_117] : memref<17x896xf32, #tpu.memory_space<vmem>>, vector<1x512xf32>
    %371 = vector.broadcast %370 : vector<1x512xf32> to vector<72x512xf32>
    %372 = arith.addf %369, %371 : vector<72x512xf32>
    %cst_118 = arith.constant 5.000000e-01 : f32
    %373 = vector.broadcast %cst_118 : f32 to vector<72x512xf32>
    %374 = arith.mulf %373, %372 : vector<72x512xf32>
    %cst_119 = arith.constant 4.471500e-02 : f32
    %375 = vector.broadcast %cst_119 : f32 to vector<72x512xf32>
    %376 = arith.mulf %375, %372 : vector<72x512xf32>
    %377 = arith.mulf %376, %372 : vector<72x512xf32>
    %378 = arith.mulf %377, %372 : vector<72x512xf32>
    %379 = arith.addf %372, %378 : vector<72x512xf32>
    %cst_120 = arith.constant 0.797884583 : f32
    %380 = vector.broadcast %cst_120 : f32 to vector<72x512xf32>
    %381 = arith.mulf %380, %379 : vector<72x512xf32>
    %382 = math.tanh %381 : vector<72x512xf32>
    %cst_121 = arith.constant 1.000000e+00 : f32
    %383 = vector.broadcast %cst_121 : f32 to vector<72x512xf32>
    %384 = arith.addf %383, %382 : vector<72x512xf32>
    %385 = arith.mulf %374, %384 : vector<72x512xf32>
    %386 = arith.truncf %385 : vector<72x512xf32> to vector<72x512xbf16>
    %c0_122 = arith.constant 0 : index
    %c0_123 = arith.constant 0 : index
    %387 = vector.load %arg7[%c0_122, %c0_123] : memref<512x128xbf16, #tpu.memory_space<vmem>>, vector<512x128xbf16>
    %cst_124 = arith.constant dense<0.000000e+00> : vector<72x128xf32>
    %388 = tpu.matmul %386, %387, %cst_124 {dimension_numbers = #tpu.dot_dimension_numbers<[1], [0], [0], [1], [0, 0, 1, 1], [], []>} : vector<72x512xbf16>, vector<512x128xbf16>, vector<72x128xf32> -> vector<72x128xf32>
    %c11 = arith.constant 11 : index
    %c0_125 = arith.constant 0 : index
    %389 = vector.load %arg1[%c11, %c0_125] : memref<17x896xf32, #tpu.memory_space<vmem>>, vector<1x128xf32>
    %390 = vector.broadcast %389 : vector<1x128xf32> to vector<72x128xf32>
    %391 = arith.addf %388, %390 : vector<72x128xf32>
    %392 = arith.addf %342, %391 : vector<72x128xf32>
    %393 = vector.extract_strided_slice %392 {offsets = [56, 0], sizes = [8, 128], strides = [1, 1]} : vector<72x128xf32> to vector<8x128xf32>
    %394 = arith.truncf %393 : vector<8x128xf32> to vector<8x128xbf16>
    %c0_126 = arith.constant 0 : index
    %c0_127 = arith.constant 0 : index
    %395 = vector.load %arg8[%c0_126, %c0_127] : memref<128x128xbf16, #tpu.memory_space<vmem>>, vector<128x128xbf16>
    %cst_128 = arith.constant dense<0.000000e+00> : vector<8x128xf32>
    %396 = tpu.matmul %394, %395, %cst_128 {dimension_numbers = #tpu.dot_dimension_numbers<[1], [0], [0], [1], [0, 0, 1, 1], [], []>} : vector<8x128xbf16>, vector<128x128xbf16>, vector<8x128xf32> -> vector<8x128xf32>
    %c16_129 = arith.constant 16 : index
    %c0_130 = arith.constant 0 : index
    %397 = vector.load %arg1[%c16_129, %c0_130] : memref<17x896xf32, #tpu.memory_space<vmem>>, vector<1x128xf32>
    %398 = vector.broadcast %397 : vector<1x128xf32> to vector<8x128xf32>
    %399 = arith.addf %396, %398 : vector<8x128xf32>
    %c0_131 = arith.constant 0 : index
    %c0_132 = arith.constant 0 : index
    %400 = vector.load %arg9[%c0_131, %c0_132] : memref<8x128xf32, #tpu.memory_space<vmem>>, vector<8x128xf32>
    tpu.vector_store %arg9[%c0_131, %c0_132], %399 {strides = array<i32>} : memref<8x128xf32, #tpu.memory_space<vmem>>, vector<8x128xf32>,
    return
  }
}

</mosaic_0001>

<llo_original>
// kernel: offline_rl_policy_forward.1
$region0: #{offline_rl_policy_forward.1}
  #allocation0 [shape = 'u32[]', space=smem, size = 0x4, offset = 0x4, fixed_abs, tag = 'smem constant byte address 0x4 - core index']
  #allocation1 [shape = 'u32[144,128]{1,0:T(1,128)}', space=vmem, size = 0x12000, scoped, tag = 'internal scratch']
  #allocation2 [shape = 'f32[72,128]{1,0:T(8,128)}', space=vmem, size = 0x9000, scoped, tag = 'scratch operand']
  %s0 = inlined_call_operand.vmem [shape: f32[16,128], index: 0, kind: input, shape index: {}]
  %s1 = inlined_call_operand.hbm [shape: f32[17,896], index: 1, kind: input, shape index: {}]
  %s2 = inlined_call_operand.hbm [shape: bf16[64,128], index: 2, kind: input, shape index: {}]
  %s3 = inlined_call_operand.hbm [shape: bf16[128,896], index: 3, kind: input, shape index: {}]
  %s4 = inlined_call_operand.hbm [shape: bf16[128,384], index: 4, kind: input, shape index: {}]
  %s5 = inlined_call_operand.vmem [shape: bf16[128,128], index: 5, kind: input, shape index: {}]
  %s6 = inlined_call_operand.vmem [shape: bf16[128,512], index: 6, kind: input, shape index: {}]
  %s7 = inlined_call_operand.hbm [shape: bf16[512,128], index: 7, kind: input, shape index: {}]
  %s8 = inlined_call_operand.vmem [shape: bf16[128,128], index: 8, kind: input, shape index: {}]
  %s9 = inlined_call_operand.vmem [shape: f32[8,128], index: 9, kind: output, shape index: {}]
  %s10 = sld [smem:[#allocation0]]
  $region66: #{offline_rl_policy_forward.1} parent=0
    _
  %s12 = ssub.s32 1, %s10
  %s13 = scalar_select 0, %s12, %s10
  $region1: #{offline_rl_policy_forward.1} parent=0
    #allocation3 [shape = 'u8[86016]{0}', space=vmem, size = 0x15000, scoped, tag = 'input window, operand 1, single buffered']
    #allocation4 [shape = 's32[1]{0}', space=sflag, size = 0x4, scoped, tag = 'scoped memory for offline_rl_policy_forward.1']
    #allocation5 [shape = 'u8[16384]{0}', space=vmem, size = 0x4000, scoped, tag = 'input window, operand 2, single buffered']
    #allocation6 [shape = 's32[1]{0}', space=sflag, size = 0x4, scoped, tag = 'scoped memory for offline_rl_policy_forward.1']
    #allocation7 [shape = 'u8[229376]{0}', space=vmem, size = 0x38000, scoped, tag = 'input window, operand 3, single buffered']
    #allocation8 [shape = 'u8[98304]{0}', space=vmem, size = 0x18000, scoped, tag = 'input window, operand 4, single buffered']
    #allocation9 [shape = 's32[1]{0}', space=sflag, size = 0x4, scoped, tag = 'scoped memory for offline_rl_policy_forward.1']
    #allocation10 [shape = 'u8[131072]{0}', space=vmem, size = 0x20000, scoped, tag = 'input window, operand 7, single buffered']
    %14 = vsyncpa [#allocation4], 0
    %15 = vsyncpa [#allocation6], 0
    %16 = vsyncpa [#allocation9], 0
    // Predicated region
    $region2: #{offline_rl_policy_forward.1} parent=1 // pred_check
      _
    $region3: #{offline_rl_policy_forward.1} parent=1 // pred_check_branch
      %18 = sbr.rel (0) target = $region5
    $region4: #{offline_rl_policy_forward.1} parent=1 // pred_region
      _
    $region5: #{offline_rl_policy_forward.1} parent=1 // pred_fallthru
      _
    // Predicated region
    $region6: #{offline_rl_policy_forward.1} parent=1 // pred_check
      _
    $region7: #{offline_rl_policy_forward.1} parent=1 // pred_check_branch
      %20 = sbr.rel (0) target = $region9
    $region8: #{offline_rl_policy_forward.1} parent=1 // pred_region
      %s22 = ssub.s32 2688, 2688
      %23 = vsyncadd [#allocation4], %s22
      %s24 = sshll.u32 [#allocation3], 4
      %s25 = int_to_ptr.vmem [resolvable:$true] %s24
      %30 = dma.hbm_to_vmem [thread:$0]  %s1, 2688, %s25, [#allocation4], 896, 896, 56
    $region9: #{offline_rl_policy_forward.1} parent=1 // pred_fallthru
      _
    // Predicated region
    $region10: #{offline_rl_policy_forward.1} parent=1 // pred_check
      _
    $region11: #{offline_rl_policy_forward.1} parent=1 // pred_check_branch
      %32 = sbr.rel (0) target = $region13
    $region12: #{offline_rl_policy_forward.1} parent=1 // pred_region
      %s34 = ssub.s32 512, 512
      %35 = vsyncadd [#allocation6], %s34
      %s36 = sshll.u32 [#allocation5], 4
      %s37 = int_to_ptr.vmem [resolvable:$true] %s36
      %42 = dma.hbm_to_vmem [thread:$0]  %s2, 512, %s37, [#allocation6], 64, 64, 4
    $region13: #{offline_rl_policy_forward.1} parent=1 // pred_fallthru
      _
    // Predicated region
    $region14: #{offline_rl_policy_forward.1} parent=1 // pred_check
      _
    $region15: #{offline_rl_policy_forward.1} parent=1 // pred_check_branch
      %44 = sbr.rel (0) target = $region17
    $region16: #{offline_rl_policy_forward.1} parent=1 // pred_region
      %s46 = ssub.s32 7168, 7168
      %47 = vsyncadd [#allocation6], %s46
      %s48 = sshll.u32 [#allocation7], 4
      %s49 = int_to_ptr.vmem [resolvable:$true] %s48
      %54 = dma.hbm_to_vmem [thread:$0]  %s3, 7168, %s49, [#allocation6], 448, 448, 28
    $region17: #{offline_rl_policy_forward.1} parent=1 // pred_fallthru
      _
    // Predicated region
    $region18: #{offline_rl_policy_forward.1} parent=1 // pred_check
      _
    $region19: #{offline_rl_policy_forward.1} parent=1 // pred_check_branch
      %56 = sbr.rel (0) target = $region21
    $region20: #{offline_rl_policy_forward.1} parent=1 // pred_region
      %s58 = ssub.s32 3072, 3072
      %59 = vsyncadd [#allocation9], %s58
      %s60 = sshll.u32 [#allocation8], 4
      %s61 = int_to_ptr.vmem [resolvable:$true] %s60
      %66 = dma.hbm_to_vmem [thread:$0]  %s4, 3072, %s61, [#allocation9], 192, 192, 12
    $region21: #{offline_rl_policy_forward.1} parent=1 // pred_fallthru
      _
    // Predicated region
    $region22: #{offline_rl_policy_forward.1} parent=1 // pred_check
      _
    $region23: #{offline_rl_policy_forward.1} parent=1 // pred_check_branch
      %68 = sbr.rel (0) target = $region25
    $region24: #{offline_rl_policy_forward.1} parent=1 // pred_region
      _
    $region25: #{offline_rl_policy_forward.1} parent=1 // pred_fallthru
      _
    // Predicated region
    $region26: #{offline_rl_policy_forward.1} parent=1 // pred_check
      _
    $region27: #{offline_rl_policy_forward.1} parent=1 // pred_check_branch
      %70 = sbr.rel (0) target = $region29
    $region28: #{offline_rl_policy_forward.1} parent=1 // pred_region
      _
    $region29: #{offline_rl_policy_forward.1} parent=1 // pred_fallthru
      _
    // Predicated region
    $region30: #{offline_rl_policy_forward.1} parent=1 // pred_check
      _
    $region31: #{offline_rl_policy_forward.1} parent=1 // pred_check_branch
      %72 = sbr.rel (0) target = $region33
    $region32: #{offline_rl_policy_forward.1} parent=1 // pred_region
      %s74 = ssub.s32 4096, 4096
      %75 = vsyncadd [#allocation9], %s74
      %s76 = sshll.u32 [#allocation10], 4
      %s77 = int_to_ptr.vmem [resolvable:$true] %s76
      %82 = dma.hbm_to_vmem [thread:$0]  %s7, 4096, %s77, [#allocation9], 64, 64, 4
    $region33: #{offline_rl_policy_forward.1} parent=1 // pred_fallthru
      _
    // Predicated region
    $region34: #{offline_rl_policy_forward.1} parent=1 // pred_check
      _
    $region35: #{offline_rl_policy_forward.1} parent=1 // pred_check_branch
      %84 = sbr.rel (0) target = $region37
    $region36: #{offline_rl_policy_forward.1} parent=1 // pred_region
      _
    $region37: #{offline_rl_policy_forward.1} parent=1 // pred_fallthru
      _
    // Predicated region
    $region38: #{offline_rl_policy_forward.1} parent=1 // pred_check
      _
    $region39: #{offline_rl_policy_forward.1} parent=1 // pred_check_branch
      %86 = sbr.rel (0) target = $region41
    $region40: #{offline_rl_policy_forward.1} parent=1 // pred_region
      %87 = dma.done [#allocation4], 2688
    $region41: #{offline_rl_policy_forward.1} parent=1 // pred_fallthru
      _
    // Predicated region
    $region42: #{offline_rl_policy_forward.1} parent=1 // pred_check
      _
    $region43: #{offline_rl_policy_forward.1} parent=1 // pred_check_branch
      %89 = sbr.rel (0) target = $region45
    $region44: #{offline_rl_policy_forward.1} parent=1 // pred_region
      %90 = dma.done [#allocation6], 512
    $region45: #{offline_rl_policy_forward.1} parent=1 // pred_fallthru
      _
    // Predicated region
    $region46: #{offline_rl_policy_forward.1} parent=1 // pred_check
      _
    $region47: #{offline_rl_policy_forward.1} parent=1 // pred_check_branch
      %92 = sbr.rel (0) target = $region49
    $region48: #{offline_rl_policy_forward.1} parent=1 // pred_region
      %93 = dma.done [#allocation6], 7168
    $region49: #{offline_rl_policy_forward.1} parent=1 // pred_fallthru
      _
    // Predicated region
    $region50: #{offline_rl_policy_forward.1} parent=1 // pred_check
      _
    $region51: #{offline_rl_policy_forward.1} parent=1 // pred_check_branch
      %95 = sbr.rel (0) target = $region53
    $region52: #{offline_rl_policy_forward.1} parent=1 // pred_region
      %96 = dma.done [#allocation9], 3072
    $region53: #{offline_rl_policy_forward.1} parent=1 // pred_fallthru
      _
    // Predicated region
    $region54: #{offline_rl_policy_forward.1} parent=1 // pred_check
      _
    $region55: #{offline_rl_policy_forward.1} parent=1 // pred_check_branch
      %98 = sbr.rel (0) target = $region57
    $region56: #{offline_rl_policy_forward.1} parent=1 // pred_region
      %99 = dma.done [#allocation9], 4096
    $region57: #{offline_rl_policy_forward.1} parent=1 // pred_fallthru
      _
    %v101 = vld [vmem:[%s0] sm:$0xff]
    %v102 = vld [vmem:[%s0 + $0x8] sm:$0xff]
    %v103 = vld [vmem:[#allocation3 + $0x4] ss:$0 sm:$0xff]
    %v104 = vld [vmem:[#allocation3 + $0x5] ss:$0 sm:$0xff]
    %v105 = vld [vmem:[#allocation3] ss:$0 sm:$0xff]
    %107 = vset.pattern.permute.xlu0 64
    %108 = vperm.xlu0 %107, %v102
    %v109 = vpop.permute.xlu0 %108
    %v111 = vmul.f32 %v109, %v105
    %v112 = vld [vmem:[#allocation3 + $0x1] ss:$0 sm:$0xff]
    %v113 = vadd.f32 %v111, %v112
    %v114 = vadd.f32 %v113, %v101
    %115 = vadd.xlane.f32.xlu0 %v114
    %v116 = vpop.xlane.xlu0 %115
    %v117 = vrcp.pop 128.0
    %v118 = vmul.f32 %v116, %v117
    %v119 = vsub.f32 %v114, %v118
    %v120 = vmul.f32 %v119, %v119
    %121 = vadd.xlane.f32.xlu0 %v120
    %v122 = vpop.xlane.xlu0 %121
    %v123 = vmul.f32 %v122, %v117
    %v124 = vadd.f32 %v123, 1e-05
    %v125 = vrsqrt.pop %v124
    %v126 = vmul.f32 %v119, %v125
    %v127 = vmul.f32 %v126, %v103
    %v128 = vadd.f32 %v127, %v104
    %129 = vst [vmem:[#allocation2] sm:$0xff] %v128
    %v130 = vld [vmem:[#allocation3 + $0x2] ss:$0 sm:$0xff]
    %131 = vset.pattern.permute.xlu0 65
    %132 = vperm.xlu0 %131, %v102
    %v133 = vpop.permute.xlu0 %132
    %v135 = vmul.f32 %v133, %v130
    %v136 = vld [vmem:[#allocation3 + $0x3] ss:$0 sm:$0xff]
    %v137 = vadd.f32 %v135, %v136
    %v138 = vadd.f32 %v137, %v101
    %139 = vadd.xlane.f32.xlu0 %v138
    %v140 = vpop.xlane.xlu0 %139
    %v141 = vmul.f32 %v140, %v117
    %v142 = vsub.f32 %v138, %v141
    %v143 = vmul.f32 %v142, %v142
    %144 = vadd.xlane.f32.xlu0 %v143
    %v145 = vpop.xlane.xlu0 %144
    %v146 = vmul.f32 %v145, %v117
    %v147 = vadd.f32 %v146, 1e-05
    %v148 = vrsqrt.pop %v147
    %v149 = vmul.f32 %v142, %v148
    %v150 = vmul.f32 %v149, %v103
    %v151 = vadd.f32 %v150, %v104
    %152 = vst [vmem:[#allocation2 + $0x40] sm:$0xff] %v151
    %v153 = vpack.c.bf16 %v102, %v102
    %v154 = vld [vmem:[#allocation5] sm:$0xf]
    %v155 = vld [vmem:[#allocation5 + $0x4] sm:$0xf]
    %v156 = vld [vmem:[#allocation5 + $0x8] sm:$0xf]
    %v157 = vld [vmem:[#allocation5 + $0xc] sm:$0xf]
    %v158 = vld [vmem:[#allocation5 + $0x10] sm:$0xf]
    %v159 = vld [vmem:[#allocation5 + $0x14] sm:$0xf]
    %v160 = vld [vmem:[#allocation5 + $0x18] sm:$0xf]
    %v161 = vld [vmem:[#allocation5 + $0x1c] sm:$0xf]
    %v162 = vld [vmem:[#allocation3 + $0x3c] ss:$0 sm:$0xff]
    %v171 = vunpack.c.l.b16 %v154
    %v172 = vunpack.c.l.b16 %v155
    %v173 = vunpack.c.l.b16 %v156
    %v174 = vunpack.c.l.b16 %v157
    %v175 = vunpack.c.l.b16 %v158
    %v176 = vunpack.c.l.b16 %v159
    %v177 = vunpack.c.l.b16 %v160
    %v178 = vunpack.c.l.b16 %v161
    %v179 = vpack.c.b16 %v172, %v171
    %v180 = vpack.c.b16 %v174, %v173
    %v181 = vpack.c.b16 %v176, %v175
    %v182 = vpack.c.b16 %v178, %v177
    %vm187 = vcmask 523264
    %v189 = vsel %vm187, %v153, 0
    %191 = vmatprep.subr.bf16.mxu0 0
    %192 = vmatpush1.bf16.msra.mxu0 0
    %193 = vmatprep.subr.bf16.mxu0 0
    %194 = vmatpush1.bf16.msra.mxu0 0
    %195 = vmatprep.subr.bf16.mxu0 0
    %196 = vmatpush1.bf16.msra.mxu0 0
    %197 = vmatprep.subr.bf16.mxu0 0
    %198 = vmatpush1.bf16.msra.mxu0 0
    %199 = vmatprep.subr.bf16.mxu0 0
    %200 = vmatpush1.bf16.msra.mxu0 %v182
    %201 = vmatprep.subr.bf16.mxu0 0
    %202 = vmatpush1.bf16.msra.mxu0 %v181
    %203 = vmatprep.subr.bf16.mxu0 0
    %204 = vmatpush1.bf16.msra.mxu0 %v180
    %205 = vmatprep.subr.bf16.mxu0 0
    %206 = vmatpush1.bf16.msra.mxu0 %v179
    %207 = vmatprep.subr.bf16.mxu0 0
    %208 = vmatpush2.bf16.msra.mxu0 0
    %209 = vmatprep.subr.bf16.mxu0 0
    %210 = vmatpush2.bf16.msra.mxu0 0
    %211 = vmatprep.subr.bf16.mxu0 0
    %212 = vmatpush2.bf16.msra.mxu0 0
    %213 = vmatprep.subr.bf16.mxu0 0
    %214 = vmatpush2.bf16.msra.mxu0 0
    %215 = vmatprep.subr.bf16.mxu0 0
    %216 = vmatpush2.bf16.msra.mxu0 0
    %217 = vmatprep.subr.bf16.mxu0 0
    %218 = vmatpush2.bf16.msra.mxu0 0
    %219 = vmatprep.subr.bf16.mxu0 0
    %220 = vmatpush2.bf16.msra.mxu0 0
    %221 = vmatprep.subr.bf16.mxu0 0
    %222 = vmatpush2.bf16.msra.mxu0 0
    %223 = vmatprep.mubr.bf16.mxu0 0
    %224 = vmatmul.mubr.bf16.gmra.mxu0 %v189
    %v225 = vpop.f32.mrf.mxu0
    %v226 = vadd.f32 %v162, %v225
    %v227 = vpop.f32.mrf.mxu0
    %v228 = vpop.f32.mrf.mxu0
    %v229 = vpop.f32.mrf.mxu0
    %230 = vdwg.mxu0
    %v231 = vmax.f32 %v226, 0.0
    %v232 = vpack.c.bf16 %v231, %v231
    %v233 = vld [vmem:[#allocation7] sm:$0xff]
    %v234 = vld [vmem:[#allocation7 + $0x8] sm:$0xff]
    %v235 = vld [vmem:[#allocation7 + $0x10] sm:$0xff]
    %v236 = vld [vmem:[#allocation7 + $0x18] sm:$0xf]
    %v237 = vld [vmem:[#allocation7 + $0x1c] sm:$0xff]
    %v238 = vld [vmem:[#allocation7 + $0x24] sm:$0xff]
    %v239 = vld [vmem:[#allocation7 + $0x2c] sm:$0xff]
    %v240 = vld [vmem:[#allocation7 + $0x34] sm:$0xf]
    %v241 = vld [vmem:[#allocation7 + $0x38] sm:$0xff]
    %v242 = vld [vmem:[#allocation7 + $0x40] sm:$0xff]
    %v243 = vld [vmem:[#allocation7 + $0x48] sm:$0xff]
    %v244 = vld [vmem:[#allocation7 + $0x50] sm:$0xf]
    %v245 = vld [vmem:[#allocation7 + $0x54] sm:$0xff]
    %v246 = vld [vmem:[#allocation7 + $0x5c] sm:$0xff]
    %v247 = vld [vmem:[#allocation7 + $0x64] sm:$0xff]
    %v248 = vld [vmem:[#allocation7 + $0x6c] sm:$0xf]
    %v249 = vld [vmem:[#allocation7 + $0x70] sm:$0xff]
    %v250 = vld [vmem:[#allocation7 + $0x78] sm:$0xff]
    %v251 = vld [vmem:[#allocation7 + $0x80] sm:$0xff]
    %v252 = vld [vmem:[#allocation7 + $0x88] sm:$0xf]
    %v253 = vld [vmem:[#allocation7 + $0x8c] sm:$0xff]
    %v254 = vld [vmem:[#allocation7 + $0x94] sm:$0xff]
    %v255 = vld [vmem:[#allocation7 + $0x9c] sm:$0xff]
    %v256 = vld [vmem:[#allocation7 + $0xa4] sm:$0xf]
    %v257 = vld [vmem:[#allocation7 + $0xa8] sm:$0xff]
    %v258 = vld [vmem:[#allocation7 + $0xb0] sm:$0xff]
    %v259 = vld [vmem:[#allocation7 + $0xb8] sm:$0xff]
    %v260 = vld [vmem:[#allocation7 + $0xc0] sm:$0xf]
    %v261 = vld [vmem:[#allocation7 + $0xc4] sm:$0xff]
    %v262 = vld [vmem:[#allocation7 + $0xcc] sm:$0xff]
    %v263 = vld [vmem:[#allocation7 + $0xd4] sm:$0xff]
    %v264 = vld [vmem:[#allocation7 + $0xdc] sm:$0xf]
    %v265 = vld [vmem:[#allocation7 + $0xe0] sm:$0xff]
    %v266 = vld [vmem:[#allocation7 + $0xe8] sm:$0xff]
    %v267 = vld [vmem:[#allocation7 + $0xf0] sm:$0xff]
    %v268 = vld [vmem:[#allocation7 + $0xf8] sm:$0xf]
    %v269 = vld [vmem:[#allocation7 + $0xfc] sm:$0xff]
    %v270 = vld [vmem:[#allocation7 + $0x104] sm:$0xff]
    %v271 = vld [vmem:[#allocation7 + $0x10c] sm:$0xff]
    %v272 = vld [vmem:[#allocation7 + $0x114] sm:$0xf]
    %v273 = vld [vmem:[#allocation7 + $0x118] sm:$0xff]
    %v274 = vld [vmem:[#allocation7 + $0x120] sm:$0xff]
    %v275 = vld [vmem:[#allocation7 + $0x128] sm:$0xff]
    %v276 = vld [vmem:[#allocation7 + $0x130] sm:$0xf]
    %v277 = vld [vmem:[#allocation7 + $0x134] sm:$0xff]
    %v278 = vld [vmem:[#allocation7 + $0x13c] sm:$0xff]
    %v279 = vld [vmem:[#allocation7 + $0x144] sm:$0xff]
    %v280 = vld [vmem:[#allocation7 + $0x14c] sm:$0xf]
    %v281 = vld [vmem:[#allocation7 + $0x150] sm:$0xff]
    %v282 = vld [vmem:[#allocation7 + $0x158] sm:$0xff]
    %v283 = vld [vmem:[#allocation7 + $0x160] sm:$0xff]
    %v284 = vld [vmem:[#allocation7 + $0x168] sm:$0xf]
    %v285 = vld [vmem:[#allocation7 + $0x16c] sm:$0xff]
    %v286 = vld [vmem:[#allocation7 + $0x174] sm:$0xff]
    %v287 = vld [vmem:[#allocation7 + $0x17c] sm:$0xff]
    %v288 = vld [vmem:[#allocation7 + $0x184] sm:$0xf]
    %v289 = vld [vmem:[#allocation7 + $0x188] sm:$0xff]
    %v290 = vld [vmem:[#allocation7 + $0x190] sm:$0xff]
    %v291 = vld [vmem:[#allocation7 + $0x198] sm:$0xff]
    %v292 = vld [vmem:[#allocation7 + $0x1a0] sm:$0xf]
    %v293 = vld [vmem:[#allocation7 + $0x1a4] sm:$0xff]
    %v294 = vld [vmem:[#allocation7 + $0x1ac] sm:$0xff]
    %v295 = vld [vmem:[#allocation7 + $0x1b4] sm:$0xff]
    %v296 = vld [vmem:[#allocation7 + $0x1bc] sm:$0xf]
    %s297 = scalar_lea.vmem [#allocation3], 61
    %v298 = vld [vmem:[%s297] ss:$8 sm:$0xf]
    %v299 = vld [vmem:[%s297] ss:$8 sm:$0xf0]
    %v300 = vor.u32 %v298, %v299
    %v302 = vlaneseq
    %v303 = vshrl.u32 %v302, 7
    %v304 = vsub.s32 0, %v303
    %v305 = vrot.slane %v300, %v304
    %v306 = vlaneseq
    %v307 = vshrl.u32 %v306, 7
    %v308 = vsub.s32 1, %v307
    %v309 = vrot.slane %v300, %v308
    %v310 = vlaneseq
    %v311 = vshrl.u32 %v310, 7
    %v312 = vsub.s32 2, %v311
    %v313 = vrot.slane %v300, %v312
    %v314 = vlaneseq
    %v315 = vshrl.u32 %v314, 7
    %v316 = vsub.s32 3, %v315
    %v317 = vrot.slane %v300, %v316
    %v318 = vlaneseq
    %v319 = vshrl.u32 %v318, 7
    %v320 = vsub.s32 4, %v319
    %v321 = vrot.slane %v300, %v320
    %v322 = vlaneseq
    %v323 = vshrl.u32 %v322, 7
    %v324 = vsub.s32 5, %v323
    %v325 = vrot.slane %v300, %v324
    %v326 = vlaneseq
    %v327 = vshrl.u32 %v326, 7
    %v328 = vsub.s32 6, %v327
    %v329 = vrot.slane %v300, %v328
    %v401 = vunpack.c.l.b16 %v233
    %v402 = vunpack.c.h.b16 %v233
    %v403 = vunpack.c.l.b16 %v234
    %v404 = vunpack.c.h.b16 %v234
    %v405 = vunpack.c.l.b16 %v235
    %v406 = vunpack.c.h.b16 %v235
    %v407 = vunpack.c.l.b16 %v236
    %v408 = vunpack.c.l.b16 %v237
    %v409 = vunpack.c.h.b16 %v237
    %v410 = vunpack.c.l.b16 %v238
    %v411 = vunpack.c.h.b16 %v238
    %v412 = vunpack.c.l.b16 %v239
    %v413 = vunpack.c.h.b16 %v239
    %v414 = vunpack.c.l.b16 %v240
    %v415 = vunpack.c.l.b16 %v241
    %v416 = vunpack.c.h.b16 %v241
    %v417 = vunpack.c.l.b16 %v242
    %v418 = vunpack.c.h.b16 %v242
    %v419 = vunpack.c.l.b16 %v243
    %v420 = vunpack.c.h.b16 %v243
    %v421 = vunpack.c.l.b16 %v244
    %v422 = vunpack.c.l.b16 %v245
    %v423 = vunpack.c.h.b16 %v245
    %v424 = vunpack.c.l.b16 %v246
    %v425 = vunpack.c.h.b16 %v246
    %v426 = vunpack.c.l.b16 %v247
    %v427 = vunpack.c.h.b16 %v247
    %v428 = vunpack.c.l.b16 %v248
    %v429 = vunpack.c.l.b16 %v249
    %v430 = vunpack.c.h.b16 %v249
    %v431 = vunpack.c.l.b16 %v250
    %v432 = vunpack.c.h.b16 %v250
    %v433 = vunpack.c.l.b16 %v251
    %v434 = vunpack.c.h.b16 %v251
    %v435 = vunpack.c.l.b16 %v252
    %v436 = vunpack.c.l.b16 %v253
    %v437 = vunpack.c.h.b16 %v253
    %v438 = vunpack.c.l.b16 %v254
    %v439 = vunpack.c.h.b16 %v254
    %v440 = vunpack.c.l.b16 %v255
    %v441 = vunpack.c.h.b16 %v255
    %v442 = vunpack.c.l.b16 %v256
    %v443 = vunpack.c.l.b16 %v257
    %v444 = vunpack.c.h.b16 %v257
    %v445 = vunpack.c.l.b16 %v258
    %v446 = vunpack.c.h.b16 %v258
    %v447 = vunpack.c.l.b16 %v259
    %v448 = vunpack.c.h.b16 %v259
    %v449 = vunpack.c.l.b16 %v260
    %v450 = vunpack.c.l.b16 %v261
    %v451 = vunpack.c.h.b16 %v261
    %v452 = vunpack.c.l.b16 %v262
    %v453 = vunpack.c.h.b16 %v262
    %v454 = vunpack.c.l.b16 %v263
    %v455 = vunpack.c.h.b16 %v263
    %v456 = vunpack.c.l.b16 %v264
    %v457 = vunpack.c.l.b16 %v265
    %v458 = vunpack.c.h.b16 %v265
    %v459 = vunpack.c.l.b16 %v266
    %v460 = vunpack.c.h.b16 %v266
    %v461 = vunpack.c.l.b16 %v267
    %v462 = vunpack.c.h.b16 %v267
    %v463 = vunpack.c.l.b16 %v268
    %v464 = vunpack.c.l.b16 %v269
    %v465 = vunpack.c.h.b16 %v269
    %v466 = vunpack.c.l.b16 %v270
    %v467 = vunpack.c.h.b16 %v270
    %v468 = vunpack.c.l.b16 %v271
    %v469 = vunpack.c.h.b16 %v271
    %v470 = vunpack.c.l.b16 %v272
    %v471 = vunpack.c.l.b16 %v273
    %v472 = vunpack.c.h.b16 %v273
    %v473 = vunpack.c.l.b16 %v274
    %v474 = vunpack.c.h.b16 %v274
    %v475 = vunpack.c.l.b16 %v275
    %v476 = vunpack.c.h.b16 %v275
    %v477 = vunpack.c.l.b16 %v276
    %v478 = vunpack.c.l.b16 %v277
    %v479 = vunpack.c.h.b16 %v277
    %v480 = vunpack.c.l.b16 %v278
    %v481 = vunpack.c.h.b16 %v278
    %v482 = vunpack.c.l.b16 %v279
    %v483 = vunpack.c.h.b16 %v279
    %v484 = vunpack.c.l.b16 %v280
    %v485 = vunpack.c.l.b16 %v281
    %v486 = vunpack.c.h.b16 %v281
    %v487 = vunpack.c.l.b16 %v282
    %v488 = vunpack.c.h.b16 %v282
    %v489 = vunpack.c.l.b16 %v283
    %v490 = vunpack.c.h.b16 %v283
    %v491 = vunpack.c.l.b16 %v284
    %v492 = vunpack.c.l.b16 %v285
    %v493 = vunpack.c.h.b16 %v285
    %v494 = vunpack.c.l.b16 %v286
    %v495 = vunpack.c.h.b16 %v286
    %v496 = vunpack.c.l.b16 %v287
    %v497 = vunpack.c.h.b16 %v287
    %v498 = vunpack.c.l.b16 %v288
    %v499 = vunpack.c.l.b16 %v289
    %v500 = vunpack.c.h.b16 %v289
    %v501 = vunpack.c.l.b16 %v290
    %v502 = vunpack.c.h.b16 %v290
    %v503 = vunpack.c.l.b16 %v291
    %v504 = vunpack.c.h.b16 %v291
    %v505 = vunpack.c.l.b16 %v292
    %v506 = vunpack.c.l.b16 %v293
    %v507 = vunpack.c.h.b16 %v293
    %v508 = vunpack.c.l.b16 %v294
    %v509 = vunpack.c.h.b16 %v294
    %v510 = vunpack.c.l.b16 %v295
    %v511 = vunpack.c.h.b16 %v295
    %v512 = vunpack.c.l.b16 %v296
    %v513 = vpack.c.b16 %v408, %v401
    %v514 = vpack.c.b16 %v409, %v402
    %v515 = vpack.c.b16 %v410, %v403
    %v516 = vpack.c.b16 %v411, %v404
    %v517 = vpack.c.b16 %v412, %v405
    %v518 = vpack.c.b16 %v413, %v406
    %v519 = vpack.c.b16 %v414, %v407
    %v520 = vpack.c.b16 %v422, %v415
    %v521 = vpack.c.b16 %v423, %v416
    %v522 = vpack.c.b16 %v424, %v417
    %v523 = vpack.c.b16 %v425, %v418
    %v524 = vpack.c.b16 %v426, %v419
    %v525 = vpack.c.b16 %v427, %v420
    %v526 = vpack.c.b16 %v428, %v421
    %v527 = vpack.c.b16 %v436, %v429
    %v528 = vpack.c.b16 %v437, %v430
    %v529 = vpack.c.b16 %v438, %v431
    %v530 = vpack.c.b16 %v439, %v432
    %v531 = vpack.c.b16 %v440, %v433
    %v532 = vpack.c.b16 %v441, %v434
    %v533 = vpack.c.b16 %v442, %v435
    %v534 = vpack.c.b16 %v450, %v443
    %v535 = vpack.c.b16 %v451, %v444
    %v536 = vpack.c.b16 %v452, %v445
    %v537 = vpack.c.b16 %v453, %v446
    %v538 = vpack.c.b16 %v454, %v447
    %v539 = vpack.c.b16 %v455, %v448
    %v540 = vpack.c.b16 %v456, %v449
    %v541 = vpack.c.b16 %v464, %v457
    %v542 = vpack.c.b16 %v465, %v458
    %v543 = vpack.c.b16 %v466, %v459
    %v544 = vpack.c.b16 %v467, %v460
    %v545 = vpack.c.b16 %v468, %v461
    %v546 = vpack.c.b16 %v469, %v462
    %v547 = vpack.c.b16 %v470, %v463
    %v548 = vpack.c.b16 %v478, %v471
    %v549 = vpack.c.b16 %v479, %v472
    %v550 = vpack.c.b16 %v480, %v473
    %v551 = vpack.c.b16 %v481, %v474
    %v552 = vpack.c.b16 %v482, %v475
    %v553 = vpack.c.b16 %v483, %v476
    %v554 = vpack.c.b16 %v484, %v477
    %v555 = vpack.c.b16 %v492, %v485
    %v556 = vpack.c.b16 %v493, %v486
    %v557 = vpack.c.b16 %v494, %v487
    %v558 = vpack.c.b16 %v495, %v488
    %v559 = vpack.c.b16 %v496, %v489
    %v560 = vpack.c.b16 %v497, %v490
    %v561 = vpack.c.b16 %v498, %v491
    %v562 = vpack.c.b16 %v506, %v499
    %v563 = vpack.c.b16 %v507, %v500
    %v564 = vpack.c.b16 %v508, %v501
    %v565 = vpack.c.b16 %v509, %v502
    %v566 = vpack.c.b16 %v510, %v503
    %v567 = vpack.c.b16 %v511, %v504
    %v568 = vpack.c.b16 %v512, %v505
    %625 = vmatprep.subr.bf16.mxu0 %v563
    %626 = vmatpush1.bf16.msra.mxu0 %v562
    %627 = vmatprep.subr.bf16.mxu0 %v556
    %628 = vmatpush1.bf16.msra.mxu0 %v555
    %629 = vmatprep.subr.bf16.mxu0 %v549
    %630 = vmatpush1.bf16.msra.mxu0 %v548
    %631 = vmatprep.subr.bf16.mxu0 %v542
    %632 = vmatpush1.bf16.msra.mxu0 %v541
    %633 = vmatprep.subr.bf16.mxu0 %v535
    %634 = vmatpush1.bf16.msra.mxu0 %v534
    %635 = vmatprep.subr.bf16.mxu0 %v528
    %636 = vmatpush1.bf16.msra.mxu0 %v527
    %637 = vmatprep.subr.bf16.mxu0 %v521
    %638 = vmatpush1.bf16.msra.mxu0 %v520
    %639 = vmatprep.subr.bf16.mxu0 %v514
    %640 = vmatpush1.bf16.msra.mxu0 %v513
    %641 = vmatprep.subr.bf16.mxu0 0
    %642 = vmatpush2.bf16.msra.mxu0 0
    %643 = vmatprep.subr.bf16.mxu0 0
    %644 = vmatpush2.bf16.msra.mxu0 0
    %645 = vmatprep.subr.bf16.mxu0 0
    %646 = vmatpush2.bf16.msra.mxu0 0
    %647 = vmatprep.subr.bf16.mxu0 0
    %648 = vmatpush2.bf16.msra.mxu0 0
    %649 = vmatprep.subr.bf16.mxu0 0
    %650 = vmatpush2.bf16.msra.mxu0 0
    %651 = vmatprep.subr.bf16.mxu0 0
    %652 = vmatpush2.bf16.msra.mxu0 0
    %653 = vmatprep.subr.bf16.mxu0 0
    %654 = vmatpush2.bf16.msra.mxu0 0
    %655 = vmatprep.subr.bf16.mxu0 0
    %656 = vmatpush2.bf16.msra.mxu0 0
    %657 = vmatprep.mubr.bf16.mxu0 0
    %658 = vmatmul.mubr.bf16.gmra.mxu0 %v232
    %v659 = vpop.f32.mrf.mxu0
    %v660 = vadd.f32 %v305, %v659
    %v661 = vpop.f32.mrf.mxu0
    %v662 = vadd.f32 %v309, %v661
    %v663 = vpop.f32.mrf.mxu0
    %v664 = vpop.f32.mrf.mxu0
    %665 = vdwg.mxu0
    %666 = vmatprep.subr.bf16.mxu0 %v565
    %667 = vmatpush1.bf16.msra.mxu0 %v564
    %668 = vmatprep.subr.bf16.mxu0 %v558
    %669 = vmatpush1.bf16.msra.mxu0 %v557
    %670 = vmatprep.subr.bf16.mxu0 %v551
    %671 = vmatpush1.bf16.msra.mxu0 %v550
    %672 = vmatprep.subr.bf16.mxu0 %v544
    %673 = vmatpush1.bf16.msra.mxu0 %v543
    %674 = vmatprep.subr.bf16.mxu0 %v537
    %675 = vmatpush1.bf16.msra.mxu0 %v536
    %676 = vmatprep.subr.bf16.mxu0 %v530
    %677 = vmatpush1.bf16.msra.mxu0 %v529
    %678 = vmatprep.subr.bf16.mxu0 %v523
    %679 = vmatpush1.bf16.msra.mxu0 %v522
    %680 = vmatprep.subr.bf16.mxu0 %v516
    %681 = vmatpush1.bf16.msra.mxu0 %v515
    %682 = vmatprep.subr.bf16.mxu0 0
    %683 = vmatpush2.bf16.msra.mxu0 0
    %684 = vmatprep.subr.bf16.mxu0 0
    %685 = vmatpush2.bf16.msra.mxu0 0
    %686 = vmatprep.subr.bf16.mxu0 0
    %687 = vmatpush2.bf16.msra.mxu0 0
    %688 = vmatprep.subr.bf16.mxu0 0
    %689 = vmatpush2.bf16.msra.mxu0 0
    %690 = vmatprep.subr.bf16.mxu0 0
    %691 = vmatpush2.bf16.msra.mxu0 0
    %692 = vmatprep.subr.bf16.mxu0 0
    %693 = vmatpush2.bf16.msra.mxu0 0
    %694 = vmatprep.subr.bf16.mxu0 0
    %695 = vmatpush2.bf16.msra.mxu0 0
    %696 = vmatprep.subr.bf16.mxu0 0
    %697 = vmatpush2.bf16.msra.mxu0 0
    %698 = vmatprep.mubr.bf16.mxu0 0
    %699 = vmatmul.mubr.bf16.gmra.mxu0 %v232
    %v700 = vpop.f32.mrf.mxu0
    %v701 = vadd.f32 %v313, %v700
    %v702 = vpop.f32.mrf.mxu0
    %v703 = vadd.f32 %v317, %v702
    %v704 = vpop.f32.mrf.mxu0
    %v705 = vpop.f32.mrf.mxu0
    %706 = vdwg.mxu0
    %707 = vmatprep.subr.bf16.mxu0 %v567
    %708 = vmatpush1.bf16.msra.mxu0 %v566
    %709 = vmatprep.subr.bf16.mxu0 %v560
    %710 = vmatpush1.bf16.msra.mxu0 %v559
    %711 = vmatprep.subr.bf16.mxu0 %v553
    %712 = vmatpush1.bf16.msra.mxu0 %v552
    %713 = vmatprep.subr.bf16.mxu0 %v546
    %714 = vmatpush1.bf16.msra.mxu0 %v545
    %715 = vmatprep.subr.bf16.mxu0 %v539
    %716 = vmatpush1.bf16.msra.mxu0 %v538
    %717 = vmatprep.subr.bf16.mxu0 %v532
    %718 = vmatpush1.bf16.msra.mxu0 %v531
    %719 = vmatprep.subr.bf16.mxu0 %v525
    %720 = vmatpush1.bf16.msra.mxu0 %v524
    %721 = vmatprep.subr.bf16.mxu0 %v518
    %722 = vmatpush1.bf16.msra.mxu0 %v517
    %723 = vmatprep.subr.bf16.mxu0 0
    %724 = vmatpush2.bf16.msra.mxu0 0
    %725 = vmatprep.subr.bf16.mxu0 0
    %726 = vmatpush2.bf16.msra.mxu0 0
    %727 = vmatprep.subr.bf16.mxu0 0
    %728 = vmatpush2.bf16.msra.mxu0 0
    %729 = vmatprep.subr.bf16.mxu0 0
    %730 = vmatpush2.bf16.msra.mxu0 0
    %731 = vmatprep.subr.bf16.mxu0 0
    %732 = vmatpush2.bf16.msra.mxu0 0
    %733 = vmatprep.subr.bf16.mxu0 0
    %734 = vmatpush2.bf16.msra.mxu0 0
    %735 = vmatprep.subr.bf16.mxu0 0
    %736 = vmatpush2.bf16.msra.mxu0 0
    %737 = vmatprep.subr.bf16.mxu0 0
    %738 = vmatpush2.bf16.msra.mxu0 0
    %739 = vmatprep.mubr.bf16.mxu0 0
    %740 = vmatmul.mubr.bf16.gmra.mxu0 %v232
    %v741 = vpop.f32.mrf.mxu0
    %v742 = vadd.f32 %v321, %v741
    %v743 = vpop.f32.mrf.mxu0
    %v744 = vadd.f32 %v325, %v743
    %v745 = vpop.f32.mrf.mxu0
    %v746 = vpop.f32.mrf.mxu0
    %747 = vdwg.mxu0
    %748 = vmatprep.subr.bf16.mxu0 0
    %749 = vmatpush1.bf16.msra.mxu0 %v568
    %750 = vmatprep.subr.bf16.mxu0 0
    %751 = vmatpush1.bf16.msra.mxu0 %v561
    %752 = vmatprep.subr.bf16.mxu0 0
    %753 = vmatpush1.bf16.msra.mxu0 %v554
    %754 = vmatprep.subr.bf16.mxu0 0
    %755 = vmatpush1.bf16.msra.mxu0 %v547
    %756 = vmatprep.subr.bf16.mxu0 0
    %757 = vmatpush1.bf16.msra.mxu0 %v540
    %758 = vmatprep.subr.bf16.mxu0 0
    %759 = vmatpush1.bf16.msra.mxu0 %v533
    %760 = vmatprep.subr.bf16.mxu0 0
    %761 = vmatpush1.bf16.msra.mxu0 %v526
    %762 = vmatprep.subr.bf16.mxu0 0
    %763 = vmatpush1.bf16.msra.mxu0 %v519
    %764 = vmatprep.subr.bf16.mxu0 0
    %765 = vmatpush2.bf16.msra.mxu0 0
    %766 = vmatprep.subr.bf16.mxu0 0
    %767 = vmatpush2.bf16.msra.mxu0 0
    %768 = vmatprep.subr.bf16.mxu0 0
    %769 = vmatpush2.bf16.msra.mxu0 0
    %770 = vmatprep.subr.bf16.mxu0 0
    %771 = vmatpush2.bf16.msra.mxu0 0
    %772 = vmatprep.subr.bf16.mxu0 0
    %773 = vmatpush2.bf16.msra.mxu0 0
    %774 = vmatprep.subr.bf16.mxu0 0
    %775 = vmatpush2.bf16.msra.mxu0 0
    %776 = vmatprep.subr.bf16.mxu0 0
    %777 = vmatpush2.bf16.msra.mxu0 0
    %778 = vmatprep.subr.bf16.mxu0 0
    %779 = vmatpush2.bf16.msra.mxu0 0
    %780 = vmatprep.mubr.bf16.mxu0 0
    %781 = vmatmul.mubr.bf16.gmra.mxu0 %v232
    %v782 = vpop.f32.mrf.mxu0
    %v783 = vadd.f32 %v329, %v782
    %v784 = vpop.f32.mrf.mxu0
    %v785 = vpop.f32.mrf.mxu0
    %v786 = vpop.f32.mrf.mxu0
    %787 = vdwg.mxu0
    %v788 = vadd.f32 %v660, %v101
    %789 = vadd.xlane.f32.xlu0 %v788
    %v790 = vpop.xlane.xlu0 %789
    %v791 = vmul.f32 %v790, %v117
    %v792 = vsub.f32 %v788, %v791
    %v793 = vmul.f32 %v792, %v792
    %794 = vadd.xlane.f32.xlu0 %v793
    %v795 = vpop.xlane.xlu0 %794
    %v796 = vmul.f32 %v795, %v117
    %v797 = vadd.f32 %v796, 1e-05
    %v798 = vrsqrt.pop %v797
    %v799 = vmul.f32 %v792, %v798
    %v800 = vmul.f32 %v799, %v103
    %v801 = vadd.f32 %v800, %v104
    %802 = vst [vmem:[#allocation2 + $0x8] sm:$0xff] %v801
    %v803 = vadd.f32 %v662, %v101
    %804 = vadd.xlane.f32.xlu0 %v803
    %v805 = vpop.xlane.xlu0 %804
    %v806 = vmul.f32 %v805, %v117
    %v807 = vsub.f32 %v803, %v806
    %v808 = vmul.f32 %v807, %v807
    %809 = vadd.xlane.f32.xlu0 %v808
    %v810 = vpop.xlane.xlu0 %809
    %v811 = vmul.f32 %v810, %v117
    %v812 = vadd.f32 %v811, 1e-05
    %v813 = vrsqrt.pop %v812
    %v814 = vmul.f32 %v807, %v813
    %v815 = vmul.f32 %v814, %v103
    %v816 = vadd.f32 %v815, %v104
    %817 = vst [vmem:[#allocation2 + $0x10] sm:$0xff] %v816
    %v818 = vadd.f32 %v701, %v101
    %819 = vadd.xlane.f32.xlu0 %v818
    %v820 = vpop.xlane.xlu0 %819
    %v821 = vmul.f32 %v820, %v117
    %v822 = vsub.f32 %v818, %v821
    %v823 = vmul.f32 %v822, %v822
    %824 = vadd.xlane.f32.xlu0 %v823
    %v825 = vpop.xlane.xlu0 %824
    %v826 = vmul.f32 %v825, %v117
    %v827 = vadd.f32 %v826, 1e-05
    %v828 = vrsqrt.pop %v827
    %v829 = vmul.f32 %v822, %v828
    %v830 = vmul.f32 %v829, %v103
    %v831 = vadd.f32 %v830, %v104
    %832 = vst [vmem:[#allocation2 + $0x18] sm:$0xff] %v831
    %v833 = vadd.f32 %v703, %v101
    %834 = vadd.xlane.f32.xlu0 %v833
    %v835 = vpop.xlane.xlu0 %834
    %v836 = vmul.f32 %v835, %v117
    %v837 = vsub.f32 %v833, %v836
    %v838 = vmul.f32 %v837, %v837
    %839 = vadd.xlane.f32.xlu0 %v838
    %v840 = vpop.xlane.xlu0 %839
    %v841 = vmul.f32 %v840, %v117
    %v842 = vadd.f32 %v841, 1e-05
    %v843 = vrsqrt.pop %v842
    %v844 = vmul.f32 %v837, %v843
    %v845 = vmul.f32 %v844, %v103
    %v846 = vadd.f32 %v845, %v104
    %847 = vst [vmem:[#allocation2 + $0x20] sm:$0xff] %v846
    %v848 = vadd.f32 %v742, %v101
    %849 = vadd.xlane.f32.xlu0 %v848
    %v850 = vpop.xlane.xlu0 %849
    %v851 = vmul.f32 %v850, %v117
    %v852 = vsub.f32 %v848, %v851
    %v853 = vmul.f32 %v852, %v852
    %854 = vadd.xlane.f32.xlu0 %v853
    %v855 = vpop.xlane.xlu0 %854
    %v856 = vmul.f32 %v855, %v117
    %v857 = vadd.f32 %v856, 1e-05
    %v858 = vrsqrt.pop %v857
    %v859 = vmul.f32 %v852, %v858
    %v860 = vmul.f32 %v859, %v103
    %v861 = vadd.f32 %v860, %v104
    %862 = vst [vmem:[#allocation2 + $0x28] sm:$0xff] %v861
    %v863 = vadd.f32 %v744, %v101
    %864 = vadd.xlane.f32.xlu0 %v863
    %v865 = vpop.xlane.xlu0 %864
    %v866 = vmul.f32 %v865, %v117
    %v867 = vsub.f32 %v863, %v866
    %v868 = vmul.f32 %v867, %v867
    %869 = vadd.xlane.f32.xlu0 %v868
    %v870 = vpop.xlane.xlu0 %869
    %v871 = vmul.f32 %v870, %v117
    %v872 = vadd.f32 %v871, 1e-05
    %v873 = vrsqrt.pop %v872
    %v874 = vmul.f32 %v867, %v873
    %v875 = vmul.f32 %v874, %v103
    %v876 = vadd.f32 %v875, %v104
    %877 = vst [vmem:[#allocation2 + $0x30] sm:$0xff] %v876
    %v878 = vadd.f32 %v783, %v101
    %879 = vadd.xlane.f32.xlu0 %v878
    %v880 = vpop.xlane.xlu0 %879
    %v881 = vmul.f32 %v880, %v117
    %v882 = vsub.f32 %v878, %v881
    %v883 = vmul.f32 %v882, %v882
    %884 = vadd.xlane.f32.xlu0 %v883
    %v885 = vpop.xlane.xlu0 %884
    %v886 = vmul.f32 %v885, %v117
    %v887 = vadd.f32 %v886, 1e-05
    %v888 = vrsqrt.pop %v887
    %v889 = vmul.f32 %v882, %v888
    %v890 = vmul.f32 %v889, %v103
    %v891 = vadd.f32 %v890, %v104
    %892 = vst [vmem:[#allocation2 + $0x38] sm:$0xff] %v891
    %v893 = vld [vmem:[#allocation2] sm:$0xff]
    %v894 = vld [vmem:[#allocation2 + $0x8] sm:$0xff]
    %v895 = vld [vmem:[#allocation2 + $0x10] sm:$0xff]
    %v896 = vld [vmem:[#allocation2 + $0x18] sm:$0xff]
    %v897 = vld [vmem:[#allocation2 + $0x20] sm:$0xff]
    %v898 = vld [vmem:[#allocation2 + $0x28] sm:$0xff]
    %v899 = vld [vmem:[#allocation2 + $0x30] sm:$0xff]
    %v900 = vld [vmem:[#allocation2 + $0x38] sm:$0xff]
    %v901 = vld [vmem:[#allocation2 + $0x40] sm:$0xff]
    %v902 = vld [vmem:[#allocation3 + $0x6] ss:$0 sm:$0xff]
    %v903 = vld [vmem:[#allocation3 + $0x7] ss:$0 sm:$0xff]
    %904 = vadd.xlane.f32.xlu0 %v893
    %v905 = vpop.xlane.xlu0 %904
    %906 = vadd.xlane.f32.xlu0 %v894
    %v907 = vpop.xlane.xlu0 %906
    %908 = vadd.xlane.f32.xlu0 %v895
    %v909 = vpop.xlane.xlu0 %908
    %910 = vadd.xlane.f32.xlu0 %v896
    %v911 = vpop.xlane.xlu0 %910
    %912 = vadd.xlane.f32.xlu0 %v897
    %v913 = vpop.xlane.xlu0 %912
    %914 = vadd.xlane.f32.xlu0 %v898
    %v915 = vpop.xlane.xlu0 %914
    %916 = vadd.xlane.f32.xlu0 %v899
    %v917 = vpop.xlane.xlu0 %916
    %918 = vadd.xlane.f32.xlu0 %v900
    %v919 = vpop.xlane.xlu0 %918
    %920 = vadd.xlane.f32.xlu0 %v901
    %v921 = vpop.xlane.xlu0 %920
    %v922 = vmul.f32 %v905, %v117
    %v923 = vmul.f32 %v907, %v117
    %v924 = vmul.f32 %v909, %v117
    %v925 = vmul.f32 %v911, %v117
    %v926 = vmul.f32 %v913, %v117
    %v927 = vmul.f32 %v915, %v117
    %v928 = vmul.f32 %v917, %v117
    %v929 = vmul.f32 %v919, %v117
    %v930 = vmul.f32 %v921, %v117
    %v931 = vsub.f32 %v893, %v922
    %v932 = vsub.f32 %v894, %v923
    %v933 = vsub.f32 %v895, %v924
    %v934 = vsub.f32 %v896, %v925
    %v935 = vsub.f32 %v897, %v926
    %v936 = vsub.f32 %v898, %v927
    %v937 = vsub.f32 %v899, %v928
    %v938 = vsub.f32 %v900, %v929
    %v939 = vsub.f32 %v901, %v930
    %v940 = vmul.f32 %v931, %v931
    %v941 = vmul.f32 %v932, %v932
    %v942 = vmul.f32 %v933, %v933
    %v943 = vmul.f32 %v934, %v934
    %v944 = vmul.f32 %v935, %v935
    %v945 = vmul.f32 %v936, %v936
    %v946 = vmul.f32 %v937, %v937
    %v947 = vmul.f32 %v938, %v938
    %v948 = vmul.f32 %v939, %v939
    %949 = vadd.xlane.f32.xlu0 %v940
    %v950 = vpop.xlane.xlu0 %949
    %951 = vadd.xlane.f32.xlu0 %v941
    %v952 = vpop.xlane.xlu0 %951
    %953 = vadd.xlane.f32.xlu0 %v942
    %v954 = vpop.xlane.xlu0 %953
    %955 = vadd.xlane.f32.xlu0 %v943
    %v956 = vpop.xlane.xlu0 %955
    %957 = vadd.xlane.f32.xlu0 %v944
    %v958 = vpop.xlane.xlu0 %957
    %959 = vadd.xlane.f32.xlu0 %v945
    %v960 = vpop.xlane.xlu0 %959
    %961 = vadd.xlane.f32.xlu0 %v946
    %v962 = vpop.xlane.xlu0 %961
    %963 = vadd.xlane.f32.xlu0 %v947
    %v964 = vpop.xlane.xlu0 %963
    %965 = vadd.xlane.f32.xlu0 %v948
    %v966 = vpop.xlane.xlu0 %965
    %v967 = vmul.f32 %v950, %v117
    %v968 = vmul.f32 %v952, %v117
    %v969 = vmul.f32 %v954, %v117
    %v970 = vmul.f32 %v956, %v117
    %v971 = vmul.f32 %v958, %v117
    %v972 = vmul.f32 %v960, %v117
    %v973 = vmul.f32 %v962, %v117
    %v974 = vmul.f32 %v964, %v117
    %v975 = vmul.f32 %v966, %v117
    %v976 = vadd.f32 %v967, 1e-05
    %v977 = vadd.f32 %v968, 1e-05
    %v978 = vadd.f32 %v969, 1e-05
    %v979 = vadd.f32 %v970, 1e-05
    %v980 = vadd.f32 %v971, 1e-05
    %v981 = vadd.f32 %v972, 1e-05
    %v982 = vadd.f32 %v973, 1e-05
    %v983 = vadd.f32 %v974, 1e-05
    %v984 = vadd.f32 %v975, 1e-05
    %v985 = vrsqrt.pop %v976
    %v986 = vrsqrt.pop %v977
    %v987 = vrsqrt.pop %v978
    %v988 = vrsqrt.pop %v979
    %v989 = vrsqrt.pop %v980
    %v990 = vrsqrt.pop %v981
    %v991 = vrsqrt.pop %v982
    %v992 = vrsqrt.pop %v983
    %v993 = vrsqrt.pop %v984
    %v994 = vmul.f32 %v931, %v985
    %v995 = vmul.f32 %v932, %v986
    %v996 = vmul.f32 %v933, %v987
    %v997 = vmul.f32 %v934, %v988
    %v998 = vmul.f32 %v935, %v989
    %v999 = vmul.f32 %v936, %v990
    %v1000 = vmul.f32 %v937, %v991
    %v1001 = vmul.f32 %v938, %v992
    %v1002 = vmul.f32 %v939, %v993
    %v1003 = vmul.f32 %v994, %v902
    %v1004 = vmul.f32 %v995, %v902
    %v1005 = vmul.f32 %v996, %v902
    %v1006 = vmul.f32 %v997, %v902
    %v1007 = vmul.f32 %v998, %v902
    %v1008 = vmul.f32 %v999, %v902
    %v1009 = vmul.f32 %v1000, %v902
    %v1010 = vmul.f32 %v1001, %v902
    %v1011 = vmul.f32 %v1002, %v902
    %v1012 = vadd.f32 %v1003, %v903
    %v1013 = vadd.f32 %v1004, %v903
    %v1014 = vadd.f32 %v1005, %v903
    %v1015 = vadd.f32 %v1006, %v903
    %v1016 = vadd.f32 %v1007, %v903
    %v1017 = vadd.f32 %v1008, %v903
    %v1018 = vadd.f32 %v1009, %v903
    %v1019 = vadd.f32 %v1010, %v903
    %v1020 = vadd.f32 %v1011, %v903
    %v1021 = vpack.c.bf16 %v1013, %v1012
    %v1022 = vpack.c.bf16 %v1015, %v1014
    %v1023 = vpack.c.bf16 %v1017, %v1016
    %v1024 = vpack.c.bf16 %v1019, %v1018
    %v1025 = vpack.c.bf16 %v1020, %v1020
    %v1026 = vld [vmem:[#allocation8] sm:$0xff]
    %v1027 = vld [vmem:[#allocation8 + $0x8] sm:$0xf]
    %v1028 = vld [vmem:[#allocation8 + $0xc] sm:$0xff]
    %v1029 = vld [vmem:[#allocation8 + $0x14] sm:$0xf]
    %v1030 = vld [vmem:[#allocation8 + $0x18] sm:$0xff]
    %v1031 = vld [vmem:[#allocation8 + $0x20] sm:$0xf]
    %v1032 = vld [vmem:[#allocation8 + $0x24] sm:$0xff]
    %v1033 = vld [vmem:[#allocation8 + $0x2c] sm:$0xf]
    %v1034 = vld [vmem:[#allocation8 + $0x30] sm:$0xff]
    %v1035 = vld [vmem:[#allocation8 + $0x38] sm:$0xf]
    %v1036 = vld [vmem:[#allocation8 + $0x3c] sm:$0xff]
    %v1037 = vld [vmem:[#allocation8 + $0x44] sm:$0xf]
    %v1038 = vld [vmem:[#allocation8 + $0x48] sm:$0xff]
    %v1039 = vld [vmem:[#allocation8 + $0x50] sm:$0xf]
    %v1040 = vld [vmem:[#allocation8 + $0x54] sm:$0xff]
    %v1041 = vld [vmem:[#allocation8 + $0x5c] sm:$0xf]
    %v1042 = vld [vmem:[#allocation8 + $0x60] sm:$0xff]
    %v1043 = vld [vmem:[#allocation8 + $0x68] sm:$0xf]
    %v1044 = vld [vmem:[#allocation8 + $0x6c] sm:$0xff]
    %v1045 = vld [vmem:[#allocation8 + $0x74] sm:$0xf]
    %v1046 = vld [vmem:[#allocation8 + $0x78] sm:$0xff]
    %v1047 = vld [vmem:[#allocation8 + $0x80] sm:$0xf]
    %v1048 = vld [vmem:[#allocation8 + $0x84] sm:$0xff]
    %v1049 = vld [vmem:[#allocation8 + $0x8c] sm:$0xf]
    %v1050 = vld [vmem:[#allocation8 + $0x90] sm:$0xff]
    %v1051 = vld [vmem:[#allocation8 + $0x98] sm:$0xf]
    %v1052 = vld [vmem:[#allocation8 + $0x9c] sm:$0xff]
    %v1053 = vld [vmem:[#allocation8 + $0xa4] sm:$0xf]
    %v1054 = vld [vmem:[#allocation8 + $0xa8] sm:$0xff]
    %v1055 = vld [vmem:[#allocation8 + $0xb0] sm:$0xf]
    %v1056 = vld [vmem:[#allocation8 + $0xb4] sm:$0xff]
    %v1057 = vld [vmem:[#allocation8 + $0xbc] sm:$0xf]
    %s1058 = scalar_lea.vmem [#allocation3], 62
    %v1059 = vld [vmem:[%s1058] ss:$8 sm:$0x7]
    %v1061 = vlaneseq
    %v1062 = vshrl.u32 %v1061, 7
    %v1063 = vsub.s32 0, %v1062
    %v1064 = vrot.slane %v1059, %v1063
    %v1065 = vlaneseq
    %v1066 = vshrl.u32 %v1065, 7
    %v1067 = vsub.s32 1, %v1066
    %v1068 = vrot.slane %v1059, %v1067
    %v1069 = vlaneseq
    %v1070 = vshrl.u32 %v1069, 7
    %v1071 = vsub.s32 2, %v1070
    %v1072 = vrot.slane %v1059, %v1071
    %v1108 = vunpack.c.l.b16 %v1026
    %v1109 = vunpack.c.h.b16 %v1026
    %v1110 = vunpack.c.l.b16 %v1027
    %v1111 = vunpack.c.l.b16 %v1028
    %v1112 = vunpack.c.h.b16 %v1028
    %v1113 = vunpack.c.l.b16 %v1029
    %v1114 = vunpack.c.l.b16 %v1030
    %v1115 = vunpack.c.h.b16 %v1030
    %v1116 = vunpack.c.l.b16 %v1031
    %v1117 = vunpack.c.l.b16 %v1032
    %v1118 = vunpack.c.h.b16 %v1032
    %v1119 = vunpack.c.l.b16 %v1033
    %v1120 = vunpack.c.l.b16 %v1034
    %v1121 = vunpack.c.h.b16 %v1034
    %v1122 = vunpack.c.l.b16 %v1035
    %v1123 = vunpack.c.l.b16 %v1036
    %v1124 = vunpack.c.h.b16 %v1036
    %v1125 = vunpack.c.l.b16 %v1037
    %v1126 = vunpack.c.l.b16 %v1038
    %v1127 = vunpack.c.h.b16 %v1038
    %v1128 = vunpack.c.l.b16 %v1039
    %v1129 = vunpack.c.l.b16 %v1040
    %v1130 = vunpack.c.h.b16 %v1040
    %v1131 = vunpack.c.l.b16 %v1041
    %v1132 = vunpack.c.l.b16 %v1042
    %v1133 = vunpack.c.h.b16 %v1042
    %v1134 = vunpack.c.l.b16 %v1043
    %v1135 = vunpack.c.l.b16 %v1044
    %v1136 = vunpack.c.h.b16 %v1044
    %v1137 = vunpack.c.l.b16 %v1045
    %v1138 = vunpack.c.l.b16 %v1046
    %v1139 = vunpack.c.h.b16 %v1046
    %v1140 = vunpack.c.l.b16 %v1047
    %v1141 = vunpack.c.l.b16 %v1048
    %v1142 = vunpack.c.h.b16 %v1048
    %v1143 = vunpack.c.l.b16 %v1049
    %v1144 = vunpack.c.l.b16 %v1050
    %v1145 = vunpack.c.h.b16 %v1050
    %v1146 = vunpack.c.l.b16 %v1051
    %v1147 = vunpack.c.l.b16 %v1052
    %v1148 = vunpack.c.h.b16 %v1052
    %v1149 = vunpack.c.l.b16 %v1053
    %v1150 = vunpack.c.l.b16 %v1054
    %v1151 = vunpack.c.h.b16 %v1054
    %v1152 = vunpack.c.l.b16 %v1055
    %v1153 = vunpack.c.l.b16 %v1056
    %v1154 = vunpack.c.h.b16 %v1056
    %v1155 = vunpack.c.l.b16 %v1057
    %v1156 = vpack.c.b16 %v1111, %v1108
    %v1157 = vpack.c.b16 %v1112, %v1109
    %v1158 = vpack.c.b16 %v1113, %v1110
    %v1159 = vpack.c.b16 %v1117, %v1114
    %v1160 = vpack.c.b16 %v1118, %v1115
    %v1161 = vpack.c.b16 %v1119, %v1116
    %v1162 = vpack.c.b16 %v1123, %v1120
    %v1163 = vpack.c.b16 %v1124, %v1121
    %v1164 = vpack.c.b16 %v1125, %v1122
    %v1165 = vpack.c.b16 %v1129, %v1126
    %v1166 = vpack.c.b16 %v1130, %v1127
    %v1167 = vpack.c.b16 %v1131, %v1128
    %v1168 = vpack.c.b16 %v1135, %v1132
    %v1169 = vpack.c.b16 %v1136, %v1133
    %v1170 = vpack.c.b16 %v1137, %v1134
    %v1171 = vpack.c.b16 %v1141, %v1138
    %v1172 = vpack.c.b16 %v1142, %v1139
    %v1173 = vpack.c.b16 %v1143, %v1140
    %v1174 = vpack.c.b16 %v1147, %v1144
    %v1175 = vpack.c.b16 %v1148, %v1145
    %v1176 = vpack.c.b16 %v1149, %v1146
    %v1177 = vpack.c.b16 %v1153, %v1150
    %v1178 = vpack.c.b16 %v1154, %v1151
    %v1179 = vpack.c.b16 %v1155, %v1152
    %1204 = vmatprep.subr.bf16.mxu0 %v1178
    %1205 = vmatpush1.bf16.msra.mxu0 %v1177
    %1206 = vmatprep.subr.bf16.mxu0 %v1175
    %1207 = vmatpush1.bf16.msra.mxu0 %v1174
    %1208 = vmatprep.subr.bf16.mxu0 %v1172
    %1209 = vmatpush1.bf16.msra.mxu0 %v1171
    %1210 = vmatprep.subr.bf16.mxu0 %v1169
    %1211 = vmatpush1.bf16.msra.mxu0 %v1168
    %1212 = vmatprep.subr.bf16.mxu0 %v1166
    %1213 = vmatpush1.bf16.msra.mxu0 %v1165
    %1214 = vmatprep.subr.bf16.mxu0 %v1163
    %1215 = vmatpush1.bf16.msra.mxu0 %v1162
    %1216 = vmatprep.subr.bf16.mxu0 %v1160
    %1217 = vmatpush1.bf16.msra.mxu0 %v1159
    %1218 = vmatprep.subr.bf16.mxu0 %v1157
    %1219 = vmatpush1.bf16.msra.mxu0 %v1156
    %1220 = vmatprep.subr.bf16.mxu0 0
    %1221 = vmatpush2.bf16.msra.mxu0 0
    %1222 = vmatprep.subr.bf16.mxu0 0
    %1223 = vmatpush2.bf16.msra.mxu0 0
    %1224 = vmatprep.subr.bf16.mxu0 0
    %1225 = vmatpush2.bf16.msra.mxu0 0
    %1226 = vmatprep.subr.bf16.mxu0 0
    %1227 = vmatpush2.bf16.msra.mxu0 0
    %1228 = vmatprep.subr.bf16.mxu0 0
    %1229 = vmatpush2.bf16.msra.mxu0 0
    %1230 = vmatprep.subr.bf16.mxu0 0
    %1231 = vmatpush2.bf16.msra.mxu0 0
    %1232 = vmatprep.subr.bf16.mxu0 0
    %1233 = vmatpush2.bf16.msra.mxu0 0
    %1234 = vmatprep.subr.bf16.mxu0 0
    %1235 = vmatpush2.bf16.msra.mxu0 0
    %1236 = vmatprep.mubr.bf16.mxu0 0
    %1237 = vmatmul.mubr.bf16.gmra.mxu0 %v1021
    %v1238 = vpop.f32.mrf.mxu0
    %v1239 = vadd.f32 %v1064, %v1238
    %v1240 = vpop.f32.mrf.mxu0
    %v1241 = vadd.f32 %v1068, %v1240
    %v1242 = vpop.f32.mrf.mxu0
    %v1243 = vadd.f32 %v1064, %v1242
    %v1244 = vpop.f32.mrf.mxu0
    %v1245 = vadd.f32 %v1068, %v1244
    %1246 = vmatprep.mubr.bf16.mxu0 0
    %1247 = vmatmul.mubr.bf16.gmra.mxu0 %v1022
    %v1248 = vpop.f32.mrf.mxu0
    %v1249 = vadd.f32 %v1064, %v1248
    %v1250 = vpop.f32.mrf.mxu0
    %v1251 = vadd.f32 %v1068, %v1250
    %v1252 = vpop.f32.mrf.mxu0
    %v1253 = vadd.f32 %v1064, %v1252
    %v1254 = vpop.f32.mrf.mxu0
    %v1255 = vadd.f32 %v1068, %v1254
    %1256 = vmatprep.mubr.bf16.mxu0 0
    %1257 = vmatmul.mubr.bf16.gmra.mxu0 %v1023
    %v1258 = vpop.f32.mrf.mxu0
    %v1259 = vadd.f32 %v1064, %v1258
    %v1260 = vpop.f32.mrf.mxu0
    %v1261 = vadd.f32 %v1068, %v1260
    %v1262 = vpop.f32.mrf.mxu0
    %v1263 = vadd.f32 %v1064, %v1262
    %v1264 = vpop.f32.mrf.mxu0
    %v1265 = vadd.f32 %v1068, %v1264
    %1266 = vmatprep.mubr.bf16.mxu0 0
    %1267 = vmatmul.mubr.bf16.gmra.mxu0 %v1024
    %v1268 = vpop.f32.mrf.mxu0
    %v1269 = vadd.f32 %v1064, %v1268
    %v1270 = vpop.f32.mrf.mxu0
    %v1271 = vadd.f32 %v1068, %v1270
    %v1272 = vpop.f32.mrf.mxu0
    %v1273 = vadd.f32 %v1064, %v1272
    %v1274 = vpop.f32.mrf.mxu0
    %v1275 = vadd.f32 %v1068, %v1274
    %1276 = vmatprep.mubr.bf16.mxu0 0
    %1277 = vmatmul.mubr.bf16.gmra.mxu0 %v1025
    %v1278 = vpop.f32.mrf.mxu0
    %v1279 = vadd.f32 %v1064, %v1278
    %v1280 = vpop.f32.mrf.mxu0
    %v1281 = vadd.f32 %v1068, %v1280
    %v1282 = vpop.f32.mrf.mxu0
    %v1283 = vpop.f32.mrf.mxu0
    %1284 = vdwg.mxu0
    %1285 = vmatprep.subr.bf16.mxu0 0
    %1286 = vmatpush1.bf16.msra.mxu0 %v1179
    %1287 = vmatprep.subr.bf16.mxu0 0
    %1288 = vmatpush1.bf16.msra.mxu0 %v1176
    %1289 = vmatprep.subr.bf16.mxu0 0
    %1290 = vmatpush1.bf16.msra.mxu0 %v1173
    %1291 = vmatprep.subr.bf16.mxu0 0
    %1292 = vmatpush1.bf16.msra.mxu0 %v1170
    %1293 = vmatprep.subr.bf16.mxu0 0
    %1294 = vmatpush1.bf16.msra.mxu0 %v1167
    %1295 = vmatprep.subr.bf16.mxu0 0
    %1296 = vmatpush1.bf16.msra.mxu0 %v1164
    %1297 = vmatprep.subr.bf16.mxu0 0
    %1298 = vmatpush1.bf16.msra.mxu0 %v1161
    %1299 = vmatprep.subr.bf16.mxu0 0
    %1300 = vmatpush1.bf16.msra.mxu0 %v1158
    %1301 = vmatprep.subr.bf16.mxu0 0
    %1302 = vmatpush2.bf16.msra.mxu0 0
    %1303 = vmatprep.subr.bf16.mxu0 0
    %1304 = vmatpush2.bf16.msra.mxu0 0
    %1305 = vmatprep.subr.bf16.mxu0 0
    %1306 = vmatpush2.bf16.msra.mxu0 0
    %1307 = vmatprep.subr.bf16.mxu0 0
    %1308 = vmatpush2.bf16.msra.mxu0 0
    %1309 = vmatprep.subr.bf16.mxu0 0
    %1310 = vmatpush2.bf16.msra.mxu0 0
    %1311 = vmatprep.subr.bf16.mxu0 0
    %1312 = vmatpush2.bf16.msra.mxu0 0
    %1313 = vmatprep.subr.bf16.mxu0 0
    %1314 = vmatpush2.bf16.msra.mxu0 0
    %1315 = vmatprep.subr.bf16.mxu0 0
    %1316 = vmatpush2.bf16.msra.mxu0 0
    %1317 = vmatprep.mubr.bf16.mxu0 0
    %1318 = vmatmul.mubr.bf16.gmra.mxu0 %v1021
    %v1319 = vpop.f32.mrf.mxu0
    %v1320 = vadd.f32 %v1072, %v1319
    %v1321 = vpop.f32.mrf.mxu0
    %v1322 = vpop.f32.mrf.mxu0
    %v1323 = vadd.f32 %v1072, %v1322
    %v1324 = vpop.f32.mrf.mxu0
    %1325 = vmatprep.mubr.bf16.mxu0 0
    %1326 = vmatmul.mubr.bf16.gmra.mxu0 %v1022
    %v1327 = vpop.f32.mrf.mxu0
    %v1328 = vadd.f32 %v1072, %v1327
    %v1329 = vpop.f32.mrf.mxu0
    %v1330 = vpop.f32.mrf.mxu0
    %v1331 = vadd.f32 %v1072, %v1330
    %v1332 = vpop.f32.mrf.mxu0
    %1333 = vmatprep.mubr.bf16.mxu0 0
    %1334 = vmatmul.mubr.bf16.gmra.mxu0 %v1023
    %v1335 = vpop.f32.mrf.mxu0
    %v1336 = vadd.f32 %v1072, %v1335
    %v1337 = vpop.f32.mrf.mxu0
    %v1338 = vpop.f32.mrf.mxu0
    %v1339 = vadd.f32 %v1072, %v1338
    %v1340 = vpop.f32.mrf.mxu0
    %1341 = vmatprep.mubr.bf16.mxu0 0
    %1342 = vmatmul.mubr.bf16.gmra.mxu0 %v1024
    %v1343 = vpop.f32.mrf.mxu0
    %v1344 = vadd.f32 %v1072, %v1343
    %v1345 = vpop.f32.mrf.mxu0
    %v1346 = vpop.f32.mrf.mxu0
    %v1347 = vadd.f32 %v1072, %v1346
    %v1348 = vpop.f32.mrf.mxu0
    %1349 = vmatprep.mubr.bf16.mxu0 0
    %1350 = vmatmul.mubr.bf16.gmra.mxu0 %v1025
    %v1351 = vpop.f32.mrf.mxu0
    %v1352 = vadd.f32 %v1072, %v1351
    %v1353 = vpop.f32.mrf.mxu0
    %v1354 = vpop.f32.mrf.mxu0
    %v1355 = vpop.f32.mrf.mxu0
    %1356 = vdwg.mxu0
    %v1357 = vpack.c.bf16 %v1243, %v1239
    %v1358 = vpack.c.bf16 %v1253, %v1249
    %v1359 = vpack.c.bf16 %v1263, %v1259
    %v1360 = vpack.c.bf16 %v1273, %v1269
    %v1361 = vpack.c.bf16 %v1279, %v1279
    %v1362 = vpack.c.bf16 %v1245, %v1241
    %v1363 = vpack.c.bf16 %v1255, %v1251
    %v1364 = vpack.c.bf16 %v1265, %v1261
    %v1365 = vpack.c.bf16 %v1275, %v1271
    %v1366 = vpack.c.bf16 %v1281, %v1281
    %1367 = vmatprep.subr.bf16.mxu0 0
    %1368 = vmatpush1.bf16.xpose.msra.mxu0 0
    %1369 = vmatprep.subr.bf16.mxu0 0
    %1370 = vmatpush1.bf16.xpose.msra.mxu0 0
    %1371 = vmatprep.subr.bf16.mxu0 0
    %1372 = vmatpush1.bf16.xpose.msra.mxu0 0
    %1373 = vmatprep.subr.bf16.mxu0 0
    %1374 = vmatpush1.bf16.xpose.msra.mxu0 %v1366
    %1375 = vmatprep.subr.bf16.mxu0 0
    %1376 = vmatpush1.bf16.xpose.msra.mxu0 %v1365
    %1377 = vmatprep.subr.bf16.mxu0 0
    %1378 = vmatpush1.bf16.xpose.msra.mxu0 %v1364
    %1379 = vmatprep.subr.bf16.mxu0 0
    %1380 = vmatpush1.bf16.xpose.msra.mxu0 %v1363
    %1381 = vmatprep.subr.bf16.mxu0 0
    %1382 = vmatpush1.bf16.xpose.msra.mxu0 %v1362
    %1383 = vmatprep.subr.bf16.mxu0 0
    %1384 = vmatpush2.bf16.xpose.msra.mxu0 0
    %1385 = vmatprep.subr.bf16.mxu0 0
    %1386 = vmatpush2.bf16.xpose.msra.mxu0 0
    %1387 = vmatprep.subr.bf16.mxu0 0
    %1388 = vmatpush2.bf16.xpose.msra.mxu0 0
    %1389 = vmatprep.subr.bf16.mxu0 0
    %1390 = vmatpush2.bf16.xpose.msra.mxu0 0
    %1391 = vmatprep.subr.bf16.mxu0 0
    %1392 = vmatpush2.bf16.xpose.msra.mxu0 0
    %1393 = vmatprep.subr.bf16.mxu0 0
    %1394 = vmatpush2.bf16.xpose.msra.mxu0 0
    %1395 = vmatprep.subr.bf16.mxu0 0
    %1396 = vmatpush2.bf16.xpose.msra.mxu0 0
    %1397 = vmatprep.subr.bf16.mxu0 0
    %1398 = vmatpush2.bf16.xpose.msra.mxu0 0
    %1399 = vmatprep.mubr.bf16.mxu0 0
    %1400 = vmatmul.mubr.bf16.gmra.mxu0 %v1357
    %v1401 = vpop.f32.mrf.mxu0
    %v1402 = vadd.f32 0.0, %v1401
    %v1403 = vpop.f32.mrf.mxu0
    %v1404 = vpop.f32.mrf.mxu0
    %v1405 = vadd.f32 0.0, %v1404
    %v1406 = vpop.f32.mrf.mxu0
    %1407 = vmatprep.mubr.bf16.mxu0 0
    %1408 = vmatmul.mubr.bf16.gmra.mxu0 %v1358
    %v1409 = vpop.f32.mrf.mxu0
    %v1410 = vadd.f32 0.0, %v1409
    %v1411 = vpop.f32.mrf.mxu0
    %v1412 = vpop.f32.mrf.mxu0
    %v1413 = vadd.f32 0.0, %v1412
    %v1414 = vpop.f32.mrf.mxu0
    %1415 = vmatprep.mubr.bf16.mxu0 0
    %1416 = vmatmul.mubr.bf16.gmra.mxu0 %v1359
    %v1417 = vpop.f32.mrf.mxu0
    %v1418 = vadd.f32 0.0, %v1417
    %v1419 = vpop.f32.mrf.mxu0
    %v1420 = vpop.f32.mrf.mxu0
    %v1421 = vadd.f32 0.0, %v1420
    %v1422 = vpop.f32.mrf.mxu0
    %1423 = vmatprep.mubr.bf16.mxu0 0
    %1424 = vmatmul.mubr.bf16.gmra.mxu0 %v1360
    %v1425 = vpop.f32.mrf.mxu0
    %v1426 = vadd.f32 0.0, %v1425
    %v1427 = vpop.f32.mrf.mxu0
    %v1428 = vpop.f32.mrf.mxu0
    %v1429 = vadd.f32 0.0, %v1428
    %v1430 = vpop.f32.mrf.mxu0
    %1431 = vmatprep.mubr.bf16.mxu0 0
    %1432 = vmatmul.mubr.bf16.gmra.mxu0 %v1361
    %v1433 = vpop.f32.mrf.mxu0
    %v1434 = vadd.f32 0.0, %v1433
    %v1435 = vpop.f32.mrf.mxu0
    %v1436 = vpop.f32.mrf.mxu0
    %v1437 = vpop.f32.mrf.mxu0
    %1438 = vdwg.mxu0
    %v1439 = vlaneseq
    %v1440 = vshrl.u32 %v1439, 7
    %v1441 = vadd.s32 %v1440, 8
    %v1442 = vadd.s32 %v1440, 16
    %v1443 = vadd.s32 %v1440, 24
    %v1444 = vadd.s32 %v1440, 32
    %v1445 = vadd.s32 %v1440, 40
    %v1446 = vadd.s32 %v1440, 48
    %v1447 = vadd.s32 %v1440, 56
    %v1448 = vadd.s32 %v1440, 64
    %v1449 = vcvt.s32.f32 %v1440
    %v1450 = vcvt.s32.f32 %v1441
    %v1451 = vcvt.s32.f32 %v1442
    %v1452 = vcvt.s32.f32 %v1443
    %v1453 = vcvt.s32.f32 %v1444
    %v1454 = vcvt.s32.f32 %v1445
    %v1455 = vcvt.s32.f32 %v1446
    %v1456 = vcvt.s32.f32 %v1447
    %v1457 = vcvt.s32.f32 %v1448
    %v1458 = vlaneseq
    %v1459 = vand.u32 %v1458, 127
    %v1460 = vcvt.s32.f32 %v1459
    %v1461 = vadd.f32 %v1449, 0.5
    %v1462 = vadd.f32 %v1450, 0.5
    %v1463 = vadd.f32 %v1451, 0.5
    %v1464 = vadd.f32 %v1452, 0.5
    %v1465 = vadd.f32 %v1453, 0.5
    %v1466 = vadd.f32 %v1454, 0.5
    %v1467 = vadd.f32 %v1455, 0.5
    %v1468 = vadd.f32 %v1456, 0.5
    %v1469 = vadd.f32 %v1457, 0.5
    %v1470 = vmul.f32 %v1461, 0.125
    %v1471 = vmul.f32 %v1462, 0.125
    %v1472 = vmul.f32 %v1463, 0.125
    %v1473 = vmul.f32 %v1464, 0.125
    %v1474 = vmul.f32 %v1465, 0.125
    %v1475 = vmul.f32 %v1466, 0.125
    %v1476 = vmul.f32 %v1467, 0.125
    %v1477 = vmul.f32 %v1468, 0.125
    %v1478 = vmul.f32 %v1469, 0.125
    %v1479 = vfloor.f32 %v1470
    %v1480 = vfloor.f32 %v1471
    %v1481 = vfloor.f32 %v1472
    %v1482 = vfloor.f32 %v1473
    %v1483 = vfloor.f32 %v1474
    %v1484 = vfloor.f32 %v1475
    %v1485 = vfloor.f32 %v1476
    %v1486 = vfloor.f32 %v1477
    %v1487 = vfloor.f32 %v1478
    %v1488 = vadd.f32 %v1460, 0.5
    %v1489 = vmul.f32 %v1488, 0.125
    %v1490 = vfloor.f32 %v1489
    %v1491 = vmul.f32 %v1479, 8.0
    %v1492 = vmul.f32 %v1480, 8.0
    %v1493 = vmul.f32 %v1481, 8.0
    %v1494 = vmul.f32 %v1482, 8.0
    %v1495 = vmul.f32 %v1483, 8.0
    %v1496 = vmul.f32 %v1484, 8.0
    %v1497 = vmul.f32 %v1485, 8.0
    %v1498 = vmul.f32 %v1486, 8.0
    %v1499 = vmul.f32 %v1487, 8.0
    %v1500 = vsub.f32 %v1449, %v1491
    %v1501 = vsub.f32 %v1450, %v1492
    %v1502 = vsub.f32 %v1451, %v1493
    %v1503 = vsub.f32 %v1452, %v1494
    %v1504 = vsub.f32 %v1453, %v1495
    %v1505 = vsub.f32 %v1454, %v1496
    %v1506 = vsub.f32 %v1455, %v1497
    %v1507 = vsub.f32 %v1456, %v1498
    %v1508 = vsub.f32 %v1457, %v1499
    %v1509 = vmul.f32 %v1500, 9.0
    %v1510 = vmul.f32 %v1501, 9.0
    %v1511 = vmul.f32 %v1502, 9.0
    %v1512 = vmul.f32 %v1503, 9.0
    %v1513 = vmul.f32 %v1504, 9.0
    %v1514 = vmul.f32 %v1505, 9.0
    %v1515 = vmul.f32 %v1506, 9.0
    %v1516 = vmul.f32 %v1507, 9.0
    %v1517 = vmul.f32 %v1508, 9.0
    %v1518 = vadd.f32 %v1509, %v1479
    %v1519 = vadd.f32 %v1510, %v1480
    %v1520 = vadd.f32 %v1511, %v1481
    %v1521 = vadd.f32 %v1512, %v1482
    %v1522 = vadd.f32 %v1513, %v1483
    %v1523 = vadd.f32 %v1514, %v1484
    %v1524 = vadd.f32 %v1515, %v1485
    %v1525 = vadd.f32 %v1516, %v1486
    %v1526 = vadd.f32 %v1517, %v1487
    %v1527 = vmul.f32 %v1490, 8.0
    %v1528 = vsub.f32 %v1460, %v1527
    %v1529 = vmul.f32 %v1528, 9.0
    %v1530 = vadd.f32 %v1529, %v1490
    %vm1531 = vcmp.ge.f32.partialorder %v1518, %v1530
    %vm1532 = vcmp.ge.f32.partialorder %v1519, %v1530
    %vm1533 = vcmp.ge.f32.partialorder %v1520, %v1530
    %vm1534 = vcmp.ge.f32.partialorder %v1521, %v1530
    %vm1535 = vcmp.ge.f32.partialorder %v1522, %v1530
    %vm1536 = vcmp.ge.f32.partialorder %v1523, %v1530
    %vm1537 = vcmp.ge.f32.partialorder %v1524, %v1530
    %vm1538 = vcmp.ge.f32.partialorder %v1525, %v1530
    %vm1539 = vcmp.ge.f32.partialorder %v1526, %v1530
    %v1540 = vsel %vm1531, %v1402, -1e+30
    %v1541 = vsel %vm1532, %v1405, -1e+30
    %v1542 = vsel %vm1533, %v1410, -1e+30
    %v1543 = vsel %vm1534, %v1413, -1e+30
    %v1544 = vsel %vm1535, %v1418, -1e+30
    %v1545 = vsel %vm1536, %v1421, -1e+30
    %v1546 = vsel %vm1537, %v1426, -1e+30
    %v1547 = vsel %vm1538, %v1429, -1e+30
    %v1548 = vsel %vm1539, %v1434, -1e+30
    %vm1549 = vcmask 588800
    %v1550 = vsel %vm1549, %v1540, -inf
    %1551 = vmax.xlane.f32.xlu0 %v1550
    %v1552 = vpop.xlane.xlu0 %1551
    %v1553 = vsel %vm1549, %v1541, -inf
    %1554 = vmax.xlane.f32.xlu0 %v1553
    %v1555 = vpop.xlane.xlu0 %1554
    %v1556 = vsel %vm1549, %v1542, -inf
    %1557 = vmax.xlane.f32.xlu0 %v1556
    %v1558 = vpop.xlane.xlu0 %1557
    %v1559 = vsel %vm1549, %v1543, -inf
    %1560 = vmax.xlane.f32.xlu0 %v1559
    %v1561 = vpop.xlane.xlu0 %1560
    %v1562 = vsel %vm1549, %v1544, -inf
    %1563 = vmax.xlane.f32.xlu0 %v1562
    %v1564 = vpop.xlane.xlu0 %1563
    %v1565 = vsel %vm1549, %v1545, -inf
    %1566 = vmax.xlane.f32.xlu0 %v1565
    %v1567 = vpop.xlane.xlu0 %1566
    %v1568 = vsel %vm1549, %v1546, -inf
    %1569 = vmax.xlane.f32.xlu0 %v1568
    %v1570 = vpop.xlane.xlu0 %1569
    %v1571 = vsel %vm1549, %v1547, -inf
    %1572 = vmax.xlane.f32.xlu0 %v1571
    %v1573 = vpop.xlane.xlu0 %1572
    %v1574 = vsel %vm1549, %v1548, -inf
    %1575 = vmax.xlane.f32.xlu0 %v1574
    %v1576 = vpop.xlane.xlu0 %1575
    %v1577 = vsub.f32 %v1540, %v1552
    %v1578 = vsub.f32 %v1541, %v1555
    %v1579 = vsub.f32 %v1542, %v1558
    %v1580 = vsub.f32 %v1543, %v1561
    %v1581 = vsub.f32 %v1544, %v1564
    %v1582 = vsub.f32 %v1545, %v1567
    %v1583 = vsub.f32 %v1546, %v1570
    %v1584 = vsub.f32 %v1547, %v1573
    %v1585 = vsub.f32 %v1548, %v1576
    %v1586 = vmul.f32 %v1577, 1.442695
    %v1587 = vpow.pop %v1586
    %v1588 = vmul.f32 %v1578, 1.442695
    %v1589 = vpow.pop %v1588
    %v1590 = vmul.f32 %v1579, 1.442695
    %v1591 = vpow.pop %v1590
    %v1592 = vmul.f32 %v1580, 1.442695
    %v1593 = vpow.pop %v1592
    %v1594 = vmul.f32 %v1581, 1.442695
    %v1595 = vpow.pop %v1594
    %v1596 = vmul.f32 %v1582, 1.442695
    %v1597 = vpow.pop %v1596
    %v1598 = vmul.f32 %v1583, 1.442695
    %v1599 = vpow.pop %v1598
    %v1600 = vmul.f32 %v1584, 1.442695
    %v1601 = vpow.pop %v1600
    %v1602 = vmul.f32 %v1585, 1.442695
    %v1603 = vpow.pop %v1602
    %v1604 = vsel %vm1549, %v1587, 0.0
    %1605 = vadd.xlane.f32.xlu0 %v1604
    %v1606 = vpop.xlane.xlu0 %1605
    %v1607 = vsel %vm1549, %v1589, 0.0
    %1608 = vadd.xlane.f32.xlu0 %v1607
    %v1609 = vpop.xlane.xlu0 %1608
    %v1610 = vsel %vm1549, %v1591, 0.0
    %1611 = vadd.xlane.f32.xlu0 %v1610
    %v1612 = vpop.xlane.xlu0 %1611
    %v1613 = vsel %vm1549, %v1593, 0.0
    %1614 = vadd.xlane.f32.xlu0 %v1613
    %v1615 = vpop.xlane.xlu0 %1614
    %v1616 = vsel %vm1549, %v1595, 0.0
    %1617 = vadd.xlane.f32.xlu0 %v1616
    %v1618 = vpop.xlane.xlu0 %1617
    %v1619 = vsel %vm1549, %v1597, 0.0
    %1620 = vadd.xlane.f32.xlu0 %v1619
    %v1621 = vpop.xlane.xlu0 %1620
    %v1622 = vsel %vm1549, %v1599, 0.0
    %1623 = vadd.xlane.f32.xlu0 %v1622
    %v1624 = vpop.xlane.xlu0 %1623
    %v1625 = vsel %vm1549, %v1601, 0.0
    %1626 = vadd.xlane.f32.xlu0 %v1625
    %v1627 = vpop.xlane.xlu0 %1626
    %v1628 = vsel %vm1549, %v1603, 0.0
    %1629 = vadd.xlane.f32.xlu0 %v1628
    %v1630 = vpop.xlane.xlu0 %1629
    %v1631 = vrcp.pop %v1606
    %v1632 = vrcp.pop %v1609
    %v1633 = vrcp.pop %v1612
    %v1634 = vrcp.pop %v1615
    %v1635 = vrcp.pop %v1618
    %v1636 = vrcp.pop %v1621
    %v1637 = vrcp.pop %v1624
    %v1638 = vrcp.pop %v1627
    %v1639 = vrcp.pop %v1630
    %v1640 = vmul.f32 %v1587, %v1631
    %v1641 = vmul.f32 %v1589, %v1632
    %v1642 = vmul.f32 %v1591, %v1633
    %v1643 = vmul.f32 %v1593, %v1634
    %v1644 = vmul.f32 %v1595, %v1635
    %v1645 = vmul.f32 %v1597, %v1636
    %v1646 = vmul.f32 %v1599, %v1637
    %v1647 = vmul.f32 %v1601, %v1638
    %v1648 = vmul.f32 %v1603, %v1639
    %v1649 = vpack.c.bf16 %v1641, %v1640
    %v1650 = vpack.c.bf16 %v1643, %v1642
    %v1651 = vpack.c.bf16 %v1645, %v1644
    %v1652 = vpack.c.bf16 %v1647, %v1646
    %v1653 = vpack.c.bf16 %v1648, %v1648
    %v1654 = vpack.c.bf16 %v1323, %v1320
    %v1655 = vpack.c.bf16 %v1331, %v1328
    %v1656 = vpack.c.bf16 %v1339, %v1336
    %v1657 = vpack.c.bf16 %v1347, %v1344
    %v1658 = vpack.c.bf16 %v1352, %v1352
    %v1660 = vsel %vm1549, %v1649, 0
    %v1663 = vsel %vm1549, %v1650, 0
    %v1666 = vsel %vm1549, %v1651, 0
    %v1669 = vsel %vm1549, %v1652, 0
    %v1672 = vsel %vm1549, %v1653, 0
    %vm1674 = vcmask 1043456
    %v1676 = vsel %vm1674, %v1658, 0
    %1678 = vmatprep.subr.bf16.mxu0 0
    %1679 = vmatpush1.bf16.msra.mxu0 0
    %1680 = vmatprep.subr.bf16.mxu0 0
    %1681 = vmatpush1.bf16.msra.mxu0 0
    %1682 = vmatprep.subr.bf16.mxu0 0
    %1683 = vmatpush1.bf16.msra.mxu0 0
    %1684 = vmatprep.subr.bf16.mxu0 0
    %1685 = vmatpush1.bf16.msra.mxu0 %v1676
    %1686 = vmatprep.subr.bf16.mxu0 0
    %1687 = vmatpush1.bf16.msra.mxu0 %v1657
    %1688 = vmatprep.subr.bf16.mxu0 0
    %1689 = vmatpush1.bf16.msra.mxu0 %v1656
    %1690 = vmatprep.subr.bf16.mxu0 0
    %1691 = vmatpush1.bf16.msra.mxu0 %v1655
    %1692 = vmatprep.subr.bf16.mxu0 0
    %1693 = vmatpush1.bf16.msra.mxu0 %v1654
    %1694 = vmatprep.subr.bf16.mxu0 0
    %1695 = vmatpush2.bf16.msra.mxu0 0
    %1696 = vmatprep.subr.bf16.mxu0 0
    %1697 = vmatpush2.bf16.msra.mxu0 0
    %1698 = vmatprep.subr.bf16.mxu0 0
    %1699 = vmatpush2.bf16.msra.mxu0 0
    %1700 = vmatprep.subr.bf16.mxu0 0
    %1701 = vmatpush2.bf16.msra.mxu0 0
    %1702 = vmatprep.subr.bf16.mxu0 0
    %1703 = vmatpush2.bf16.msra.mxu0 0
    %1704 = vmatprep.subr.bf16.mxu0 0
    %1705 = vmatpush2.bf16.msra.mxu0 0
    %1706 = vmatprep.subr.bf16.mxu0 0
    %1707 = vmatpush2.bf16.msra.mxu0 0
    %1708 = vmatprep.subr.bf16.mxu0 0
    %1709 = vmatpush2.bf16.msra.mxu0 0
    %1710 = vmatprep.mubr.bf16.mxu0 0
    %1711 = vmatmul.mubr.bf16.gmra.mxu0 %v1660
    %v1712 = vpop.f32.mrf.mxu0
    %v1713 = vadd.f32 0.0, %v1712
    %v1714 = vpop.f32.mrf.mxu0
    %v1715 = vpop.f32.mrf.mxu0
    %v1716 = vadd.f32 0.0, %v1715
    %v1717 = vpop.f32.mrf.mxu0
    %1718 = vmatprep.mubr.bf16.mxu0 0
    %1719 = vmatmul.mubr.bf16.gmra.mxu0 %v1663
    %v1720 = vpop.f32.mrf.mxu0
    %v1721 = vadd.f32 0.0, %v1720
    %v1722 = vpop.f32.mrf.mxu0
    %v1723 = vpop.f32.mrf.mxu0
    %v1724 = vadd.f32 0.0, %v1723
    %v1725 = vpop.f32.mrf.mxu0
    %1726 = vmatprep.mubr.bf16.mxu0 0
    %1727 = vmatmul.mubr.bf16.gmra.mxu0 %v1666
    %v1728 = vpop.f32.mrf.mxu0
    %v1729 = vadd.f32 0.0, %v1728
    %v1730 = vpop.f32.mrf.mxu0
    %v1731 = vpop.f32.mrf.mxu0
    %v1732 = vadd.f32 0.0, %v1731
    %v1733 = vpop.f32.mrf.mxu0
    %1734 = vmatprep.mubr.bf16.mxu0 0
    %1735 = vmatmul.mubr.bf16.gmra.mxu0 %v1669
    %v1736 = vpop.f32.mrf.mxu0
    %v1737 = vadd.f32 0.0, %v1736
    %v1738 = vpop.f32.mrf.mxu0
    %v1739 = vpop.f32.mrf.mxu0
    %v1740 = vadd.f32 0.0, %v1739
    %v1741 = vpop.f32.mrf.mxu0
    %1742 = vmatprep.mubr.bf16.mxu0 0
    %1743 = vmatmul.mubr.bf16.gmra.mxu0 %v1672
    %v1744 = vpop.f32.mrf.mxu0
    %v1745 = vadd.f32 0.0, %v1744
    %v1746 = vpop.f32.mrf.mxu0
    %v1747 = vpop.f32.mrf.mxu0
    %v1748 = vpop.f32.mrf.mxu0
    %1749 = vdwg.mxu0
    %v1750 = vpack.c.bf16 %v1716, %v1713
    %v1751 = vpack.c.bf16 %v1724, %v1721
    %v1752 = vpack.c.bf16 %v1732, %v1729
    %v1753 = vpack.c.bf16 %v1740, %v1737
    %v1754 = vpack.c.bf16 %v1745, %v1745
    %v1755 = vld [vmem:[%s5] sm:$0xf]
    %v1756 = vld [vmem:[%s5 + $0x4] sm:$0xf]
    %v1757 = vld [vmem:[%s5 + $0x8] sm:$0xf]
    %v1758 = vld [vmem:[%s5 + $0xc] sm:$0xf]
    %v1759 = vld [vmem:[%s5 + $0x10] sm:$0xf]
    %v1760 = vld [vmem:[%s5 + $0x14] sm:$0xf]
    %v1761 = vld [vmem:[%s5 + $0x18] sm:$0xf]
    %v1762 = vld [vmem:[%s5 + $0x1c] sm:$0xf]
    %v1763 = vld [vmem:[%s5 + $0x20] sm:$0xf]
    %v1764 = vld [vmem:[%s5 + $0x24] sm:$0xf]
    %v1765 = vld [vmem:[%s5 + $0x28] sm:$0xf]
    %v1766 = vld [vmem:[%s5 + $0x2c] sm:$0xf]
    %v1767 = vld [vmem:[%s5 + $0x30] sm:$0xf]
    %v1768 = vld [vmem:[%s5 + $0x34] sm:$0xf]
    %v1769 = vld [vmem:[%s5 + $0x38] sm:$0xf]
    %v1770 = vld [vmem:[%s5 + $0x3c] sm:$0xf]
    %v1771 = vld [vmem:[#allocation3 + $0x3a] ss:$0 sm:$0xff]
    %v1788 = vunpack.c.l.b16 %v1755
    %v1789 = vunpack.c.l.b16 %v1756
    %v1790 = vunpack.c.l.b16 %v1757
    %v1791 = vunpack.c.l.b16 %v1758
    %v1792 = vunpack.c.l.b16 %v1759
    %v1793 = vunpack.c.l.b16 %v1760
    %v1794 = vunpack.c.l.b16 %v1761
    %v1795 = vunpack.c.l.b16 %v1762
    %v1796 = vunpack.c.l.b16 %v1763
    %v1797 = vunpack.c.l.b16 %v1764
    %v1798 = vunpack.c.l.b16 %v1765
    %v1799 = vunpack.c.l.b16 %v1766
    %v1800 = vunpack.c.l.b16 %v1767
    %v1801 = vunpack.c.l.b16 %v1768
    %v1802 = vunpack.c.l.b16 %v1769
    %v1803 = vunpack.c.l.b16 %v1770
    %v1804 = vpack.c.b16 %v1789, %v1788
    %v1805 = vpack.c.b16 %v1791, %v1790
    %v1806 = vpack.c.b16 %v1793, %v1792
    %v1807 = vpack.c.b16 %v1795, %v1794
    %v1808 = vpack.c.b16 %v1797, %v1796
    %v1809 = vpack.c.b16 %v1799, %v1798
    %v1810 = vpack.c.b16 %v1801, %v1800
    %v1811 = vpack.c.b16 %v1803, %v1802
    %1820 = vmatprep.subr.bf16.mxu0 0
    %1821 = vmatpush1.bf16.msra.mxu0 %v1811
    %1822 = vmatprep.subr.bf16.mxu0 0
    %1823 = vmatpush1.bf16.msra.mxu0 %v1810
    %1824 = vmatprep.subr.bf16.mxu0 0
    %1825 = vmatpush1.bf16.msra.mxu0 %v1809
    %1826 = vmatprep.subr.bf16.mxu0 0
    %1827 = vmatpush1.bf16.msra.mxu0 %v1808
    %1828 = vmatprep.subr.bf16.mxu0 0
    %1829 = vmatpush1.bf16.msra.mxu0 %v1807
    %1830 = vmatprep.subr.bf16.mxu0 0
    %1831 = vmatpush1.bf16.msra.mxu0 %v1806
    %1832 = vmatprep.subr.bf16.mxu0 0
    %1833 = vmatpush1.bf16.msra.mxu0 %v1805
    %1834 = vmatprep.subr.bf16.mxu0 0
    %1835 = vmatpush1.bf16.msra.mxu0 %v1804
    %1836 = vmatprep.subr.bf16.mxu0 0
    %1837 = vmatpush2.bf16.msra.mxu0 0
    %1838 = vmatprep.subr.bf16.mxu0 0
    %1839 = vmatpush2.bf16.msra.mxu0 0
    %1840 = vmatprep.subr.bf16.mxu0 0
    %1841 = vmatpush2.bf16.msra.mxu0 0
    %1842 = vmatprep.subr.bf16.mxu0 0
    %1843 = vmatpush2.bf16.msra.mxu0 0
    %1844 = vmatprep.subr.bf16.mxu0 0
    %1845 = vmatpush2.bf16.msra.mxu0 0
    %1846 = vmatprep.subr.bf16.mxu0 0
    %1847 = vmatpush2.bf16.msra.mxu0 0
    %1848 = vmatprep.subr.bf16.mxu0 0
    %1849 = vmatpush2.bf16.msra.mxu0 0
    %1850 = vmatprep.subr.bf16.mxu0 0
    %1851 = vmatpush2.bf16.msra.mxu0 0
    %1852 = vmatprep.mubr.bf16.mxu0 0
    %1853 = vmatmul.mubr.bf16.gmra.mxu0 %v1750
    %v1854 = vpop.f32.mrf.mxu0
    %v1855 = vadd.f32 %v1771, %v1854
    %v1856 = vpop.f32.mrf.mxu0
    %v1857 = vpop.f32.mrf.mxu0
    %v1858 = vadd.f32 %v1771, %v1857
    %v1859 = vpop.f32.mrf.mxu0
    %1860 = vmatprep.mubr.bf16.mxu0 0
    %1861 = vmatmul.mubr.bf16.gmra.mxu0 %v1751
    %v1862 = vpop.f32.mrf.mxu0
    %v1863 = vadd.f32 %v1771, %v1862
    %v1864 = vpop.f32.mrf.mxu0
    %v1865 = vpop.f32.mrf.mxu0
    %v1866 = vadd.f32 %v1771, %v1865
    %v1867 = vpop.f32.mrf.mxu0
    %1868 = vmatprep.mubr.bf16.mxu0 0
    %1869 = vmatmul.mubr.bf16.gmra.mxu0 %v1752
    %v1870 = vpop.f32.mrf.mxu0
    %v1871 = vadd.f32 %v1771, %v1870
    %v1872 = vpop.f32.mrf.mxu0
    %v1873 = vpop.f32.mrf.mxu0
    %v1874 = vadd.f32 %v1771, %v1873
    %v1875 = vpop.f32.mrf.mxu0
    %1876 = vmatprep.mubr.bf16.mxu0 0
    %1877 = vmatmul.mubr.bf16.gmra.mxu0 %v1753
    %v1878 = vpop.f32.mrf.mxu0
    %v1879 = vadd.f32 %v1771, %v1878
    %v1880 = vpop.f32.mrf.mxu0
    %v1881 = vpop.f32.mrf.mxu0
    %v1882 = vadd.f32 %v1771, %v1881
    %v1883 = vpop.f32.mrf.mxu0
    %1884 = vmatprep.mubr.bf16.mxu0 0
    %1885 = vmatmul.mubr.bf16.gmra.mxu0 %v1754
    %v1886 = vpop.f32.mrf.mxu0
    %v1887 = vadd.f32 %v1771, %v1886
    %v1888 = vpop.f32.mrf.mxu0
    %v1889 = vpop.f32.mrf.mxu0
    %v1890 = vpop.f32.mrf.mxu0
    %1891 = vdwg.mxu0
    %v1892 = vadd.f32 %v893, %v1855
    %v1893 = vadd.f32 %v894, %v1858
    %v1894 = vadd.f32 %v895, %v1863
    %v1895 = vadd.f32 %v896, %v1866
    %v1896 = vadd.f32 %v897, %v1871
    %v1897 = vadd.f32 %v898, %v1874
    %v1898 = vadd.f32 %v899, %v1879
    %v1899 = vadd.f32 %v900, %v1882
    %v1900 = vadd.f32 %v901, %v1887
    %v1901 = vld [vmem:[#allocation3 + $0x38] ss:$0 sm:$0xff]
    %v1902 = vld [vmem:[#allocation3 + $0x39] ss:$0 sm:$0xff]
    %1903 = vadd.xlane.f32.xlu0 %v1892
    %v1904 = vpop.xlane.xlu0 %1903
    %1905 = vadd.xlane.f32.xlu0 %v1893
    %v1906 = vpop.xlane.xlu0 %1905
    %1907 = vadd.xlane.f32.xlu0 %v1894
    %v1908 = vpop.xlane.xlu0 %1907
    %1909 = vadd.xlane.f32.xlu0 %v1895
    %v1910 = vpop.xlane.xlu0 %1909
    %1911 = vadd.xlane.f32.xlu0 %v1896
    %v1912 = vpop.xlane.xlu0 %1911
    %1913 = vadd.xlane.f32.xlu0 %v1897
    %v1914 = vpop.xlane.xlu0 %1913
    %1915 = vadd.xlane.f32.xlu0 %v1898
    %v1916 = vpop.xlane.xlu0 %1915
    %1917 = vadd.xlane.f32.xlu0 %v1899
    %v1918 = vpop.xlane.xlu0 %1917
    %1919 = vadd.xlane.f32.xlu0 %v1900
    %v1920 = vpop.xlane.xlu0 %1919
    %v1921 = vmul.f32 %v1904, %v117
    %v1922 = vmul.f32 %v1906, %v117
    %v1923 = vmul.f32 %v1908, %v117
    %v1924 = vmul.f32 %v1910, %v117
    %v1925 = vmul.f32 %v1912, %v117
    %v1926 = vmul.f32 %v1914, %v117
    %v1927 = vmul.f32 %v1916, %v117
    %v1928 = vmul.f32 %v1918, %v117
    %v1929 = vmul.f32 %v1920, %v117
    %v1930 = vsub.f32 %v1892, %v1921
    %v1931 = vsub.f32 %v1893, %v1922
    %v1932 = vsub.f32 %v1894, %v1923
    %v1933 = vsub.f32 %v1895, %v1924
    %v1934 = vsub.f32 %v1896, %v1925
    %v1935 = vsub.f32 %v1897, %v1926
    %v1936 = vsub.f32 %v1898, %v1927
    %v1937 = vsub.f32 %v1899, %v1928
    %v1938 = vsub.f32 %v1900, %v1929
    %v1939 = vmul.f32 %v1930, %v1930
    %v1940 = vmul.f32 %v1931, %v1931
    %v1941 = vmul.f32 %v1932, %v1932
    %v1942 = vmul.f32 %v1933, %v1933
    %v1943 = vmul.f32 %v1934, %v1934
    %v1944 = vmul.f32 %v1935, %v1935
    %v1945 = vmul.f32 %v1936, %v1936
    %v1946 = vmul.f32 %v1937, %v1937
    %v1947 = vmul.f32 %v1938, %v1938
    %1948 = vadd.xlane.f32.xlu0 %v1939
    %v1949 = vpop.xlane.xlu0 %1948
    %1950 = vadd.xlane.f32.xlu0 %v1940
    %v1951 = vpop.xlane.xlu0 %1950
    %1952 = vadd.xlane.f32.xlu0 %v1941
    %v1953 = vpop.xlane.xlu0 %1952
    %1954 = vadd.xlane.f32.xlu0 %v1942
    %v1955 = vpop.xlane.xlu0 %1954
    %1956 = vadd.xlane.f32.xlu0 %v1943
    %v1957 = vpop.xlane.xlu0 %1956
    %1958 = vadd.xlane.f32.xlu0 %v1944
    %v1959 = vpop.xlane.xlu0 %1958
    %1960 = vadd.xlane.f32.xlu0 %v1945
    %v1961 = vpop.xlane.xlu0 %1960
    %1962 = vadd.xlane.f32.xlu0 %v1946
    %v1963 = vpop.xlane.xlu0 %1962
    %1964 = vadd.xlane.f32.xlu0 %v1947
    %v1965 = vpop.xlane.xlu0 %1964
    %v1966 = vmul.f32 %v1949, %v117
    %v1967 = vmul.f32 %v1951, %v117
    %v1968 = vmul.f32 %v1953, %v117
    %v1969 = vmul.f32 %v1955, %v117
    %v1970 = vmul.f32 %v1957, %v117
    %v1971 = vmul.f32 %v1959, %v117
    %v1972 = vmul.f32 %v1961, %v117
    %v1973 = vmul.f32 %v1963, %v117
    %v1974 = vmul.f32 %v1965, %v117
    %v1975 = vadd.f32 %v1966, 1e-05
    %v1976 = vadd.f32 %v1967, 1e-05
    %v1977 = vadd.f32 %v1968, 1e-05
    %v1978 = vadd.f32 %v1969, 1e-05
    %v1979 = vadd.f32 %v1970, 1e-05
    %v1980 = vadd.f32 %v1971, 1e-05
    %v1981 = vadd.f32 %v1972, 1e-05
    %v1982 = vadd.f32 %v1973, 1e-05
    %v1983 = vadd.f32 %v1974, 1e-05
    %v1984 = vrsqrt.pop %v1975
    %v1985 = vrsqrt.pop %v1976
    %v1986 = vrsqrt.pop %v1977
    %v1987 = vrsqrt.pop %v1978
    %v1988 = vrsqrt.pop %v1979
    %v1989 = vrsqrt.pop %v1980
    %v1990 = vrsqrt.pop %v1981
    %v1991 = vrsqrt.pop %v1982
    %v1992 = vrsqrt.pop %v1983
    %v1993 = vmul.f32 %v1930, %v1984
    %v1994 = vmul.f32 %v1931, %v1985
    %v1995 = vmul.f32 %v1932, %v1986
    %v1996 = vmul.f32 %v1933, %v1987
    %v1997 = vmul.f32 %v1934, %v1988
    %v1998 = vmul.f32 %v1935, %v1989
    %v1999 = vmul.f32 %v1936, %v1990
    %v2000 = vmul.f32 %v1937, %v1991
    %v2001 = vmul.f32 %v1938, %v1992
    %v2002 = vmul.f32 %v1993, %v1901
    %v2003 = vmul.f32 %v1994, %v1901
    %v2004 = vmul.f32 %v1995, %v1901
    %v2005 = vmul.f32 %v1996, %v1901
    %v2006 = vmul.f32 %v1997, %v1901
    %v2007 = vmul.f32 %v1998, %v1901
    %v2008 = vmul.f32 %v1999, %v1901
    %v2009 = vmul.f32 %v2000, %v1901
    %v2010 = vmul.f32 %v2001, %v1901
    %v2011 = vadd.f32 %v2002, %v1902
    %v2012 = vadd.f32 %v2003, %v1902
    %v2013 = vadd.f32 %v2004, %v1902
    %v2014 = vadd.f32 %v2005, %v1902
    %v2015 = vadd.f32 %v2006, %v1902
    %v2016 = vadd.f32 %v2007, %v1902
    %v2017 = vadd.f32 %v2008, %v1902
    %v2018 = vadd.f32 %v2009, %v1902
    %v2019 = vadd.f32 %v2010, %v1902
    %v2020 = vpack.c.bf16 %v2012, %v2011
    %v2021 = vpack.c.bf16 %v2014, %v2013
    %v2022 = vpack.c.bf16 %v2016, %v2015
    %v2023 = vpack.c.bf16 %v2018, %v2017
    %v2024 = vpack.c.bf16 %v2019, %v2019
    %v2025 = vld [vmem:[%s6] sm:$0xff]
    %v2026 = vld [vmem:[%s6 + $0x8] sm:$0xff]
    %v2027 = vld [vmem:[%s6 + $0x10] sm:$0xff]
    %v2028 = vld [vmem:[%s6 + $0x18] sm:$0xff]
    %v2029 = vld [vmem:[%s6 + $0x20] sm:$0xff]
    %v2030 = vld [vmem:[%s6 + $0x28] sm:$0xff]
    %v2031 = vld [vmem:[%s6 + $0x30] sm:$0xff]
    %v2032 = vld [vmem:[%s6 + $0x38] sm:$0xff]
    %v2033 = vld [vmem:[%s6 + $0x40] sm:$0xff]
    %v2034 = vld [vmem:[%s6 + $0x48] sm:$0xff]
    %v2035 = vld [vmem:[%s6 + $0x50] sm:$0xff]
    %v2036 = vld [vmem:[%s6 + $0x58] sm:$0xff]
    %v2037 = vld [vmem:[%s6 + $0x60] sm:$0xff]
    %v2038 = vld [vmem:[%s6 + $0x68] sm:$0xff]
    %v2039 = vld [vmem:[%s6 + $0x70] sm:$0xff]
    %v2040 = vld [vmem:[%s6 + $0x78] sm:$0xff]
    %v2041 = vld [vmem:[%s6 + $0x80] sm:$0xff]
    %v2042 = vld [vmem:[%s6 + $0x88] sm:$0xff]
    %v2043 = vld [vmem:[%s6 + $0x90] sm:$0xff]
    %v2044 = vld [vmem:[%s6 + $0x98] sm:$0xff]
    %v2045 = vld [vmem:[%s6 + $0xa0] sm:$0xff]
    %v2046 = vld [vmem:[%s6 + $0xa8] sm:$0xff]
    %v2047 = vld [vmem:[%s6 + $0xb0] sm:$0xff]
    %v2048 = vld [vmem:[%s6 + $0xb8] sm:$0xff]
    %v2049 = vld [vmem:[%s6 + $0xc0] sm:$0xff]
    %v2050 = vld [vmem:[%s6 + $0xc8] sm:$0xff]
    %v2051 = vld [vmem:[%s6 + $0xd0] sm:$0xff]
    %v2052 = vld [vmem:[%s6 + $0xd8] sm:$0xff]
    %v2053 = vld [vmem:[%s6 + $0xe0] sm:$0xff]
    %v2054 = vld [vmem:[%s6 + $0xe8] sm:$0xff]
    %v2055 = vld [vmem:[%s6 + $0xf0] sm:$0xff]
    %v2056 = vld [vmem:[%s6 + $0xf8] sm:$0xff]
    %s2057 = scalar_lea.vmem [#allocation3], 63
    %v2058 = vld [vmem:[%s2057] ss:$8 sm:$0xf]
    %v2060 = vlaneseq
    %v2061 = vshrl.u32 %v2060, 7
    %v2062 = vsub.s32 0, %v2061
    %v2063 = vrot.slane %v2058, %v2062
    %v2064 = vlaneseq
    %v2065 = vshrl.u32 %v2064, 7
    %v2066 = vsub.s32 1, %v2065
    %v2067 = vrot.slane %v2058, %v2066
    %v2068 = vlaneseq
    %v2069 = vshrl.u32 %v2068, 7
    %v2070 = vsub.s32 2, %v2069
    %v2071 = vrot.slane %v2058, %v2070
    %v2072 = vlaneseq
    %v2073 = vshrl.u32 %v2072, 7
    %v2074 = vsub.s32 3, %v2073
    %v2075 = vrot.slane %v2058, %v2074
    %v2112 = vunpack.c.l.b16 %v2025
    %v2113 = vunpack.c.h.b16 %v2025
    %v2114 = vunpack.c.l.b16 %v2026
    %v2115 = vunpack.c.h.b16 %v2026
    %v2116 = vunpack.c.l.b16 %v2027
    %v2117 = vunpack.c.h.b16 %v2027
    %v2118 = vunpack.c.l.b16 %v2028
    %v2119 = vunpack.c.h.b16 %v2028
    %v2120 = vunpack.c.l.b16 %v2029
    %v2121 = vunpack.c.h.b16 %v2029
    %v2122 = vunpack.c.l.b16 %v2030
    %v2123 = vunpack.c.h.b16 %v2030
    %v2124 = vunpack.c.l.b16 %v2031
    %v2125 = vunpack.c.h.b16 %v2031
    %v2126 = vunpack.c.l.b16 %v2032
    %v2127 = vunpack.c.h.b16 %v2032
    %v2128 = vunpack.c.l.b16 %v2033
    %v2129 = vunpack.c.h.b16 %v2033
    %v2130 = vunpack.c.l.b16 %v2034
    %v2131 = vunpack.c.h.b16 %v2034
    %v2132 = vunpack.c.l.b16 %v2035
    %v2133 = vunpack.c.h.b16 %v2035
    %v2134 = vunpack.c.l.b16 %v2036
    %v2135 = vunpack.c.h.b16 %v2036
    %v2136 = vunpack.c.l.b16 %v2037
    %v2137 = vunpack.c.h.b16 %v2037
    %v2138 = vunpack.c.l.b16 %v2038
    %v2139 = vunpack.c.h.b16 %v2038
    %v2140 = vunpack.c.l.b16 %v2039
    %v2141 = vunpack.c.h.b16 %v2039
    %v2142 = vunpack.c.l.b16 %v2040
    %v2143 = vunpack.c.h.b16 %v2040
    %v2144 = vunpack.c.l.b16 %v2041
    %v2145 = vunpack.c.h.b16 %v2041
    %v2146 = vunpack.c.l.b16 %v2042
    %v2147 = vunpack.c.h.b16 %v2042
    %v2148 = vunpack.c.l.b16 %v2043
    %v2149 = vunpack.c.h.b16 %v2043
    %v2150 = vunpack.c.l.b16 %v2044
    %v2151 = vunpack.c.h.b16 %v2044
    %v2152 = vunpack.c.l.b16 %v2045
    %v2153 = vunpack.c.h.b16 %v2045
    %v2154 = vunpack.c.l.b16 %v2046
    %v2155 = vunpack.c.h.b16 %v2046
    %v2156 = vunpack.c.l.b16 %v2047
    %v2157 = vunpack.c.h.b16 %v2047
    %v2158 = vunpack.c.l.b16 %v2048
    %v2159 = vunpack.c.h.b16 %v2048
    %v2160 = vunpack.c.l.b16 %v2049
    %v2161 = vunpack.c.h.b16 %v2049
    %v2162 = vunpack.c.l.b16 %v2050
    %v2163 = vunpack.c.h.b16 %v2050
    %v2164 = vunpack.c.l.b16 %v2051
    %v2165 = vunpack.c.h.b16 %v2051
    %v2166 = vunpack.c.l.b16 %v2052
    %v2167 = vunpack.c.h.b16 %v2052
    %v2168 = vunpack.c.l.b16 %v2053
    %v2169 = vunpack.c.h.b16 %v2053
    %v2170 = vunpack.c.l.b16 %v2054
    %v2171 = vunpack.c.h.b16 %v2054
    %v2172 = vunpack.c.l.b16 %v2055
    %v2173 = vunpack.c.h.b16 %v2055
    %v2174 = vunpack.c.l.b16 %v2056
    %v2175 = vunpack.c.h.b16 %v2056
    %v2176 = vpack.c.b16 %v2116, %v2112
    %v2177 = vpack.c.b16 %v2117, %v2113
    %v2178 = vpack.c.b16 %v2118, %v2114
    %v2179 = vpack.c.b16 %v2119, %v2115
    %v2180 = vpack.c.b16 %v2124, %v2120
    %v2181 = vpack.c.b16 %v2125, %v2121
    %v2182 = vpack.c.b16 %v2126, %v2122
    %v2183 = vpack.c.b16 %v2127, %v2123
    %v2184 = vpack.c.b16 %v2132, %v2128
    %v2185 = vpack.c.b16 %v2133, %v2129
    %v2186 = vpack.c.b16 %v2134, %v2130
    %v2187 = vpack.c.b16 %v2135, %v2131
    %v2188 = vpack.c.b16 %v2140, %v2136
    %v2189 = vpack.c.b16 %v2141, %v2137
    %v2190 = vpack.c.b16 %v2142, %v2138
    %v2191 = vpack.c.b16 %v2143, %v2139
    %v2192 = vpack.c.b16 %v2148, %v2144
    %v2193 = vpack.c.b16 %v2149, %v2145
    %v2194 = vpack.c.b16 %v2150, %v2146
    %v2195 = vpack.c.b16 %v2151, %v2147
    %v2196 = vpack.c.b16 %v2156, %v2152
    %v2197 = vpack.c.b16 %v2157, %v2153
    %v2198 = vpack.c.b16 %v2158, %v2154
    %v2199 = vpack.c.b16 %v2159, %v2155
    %v2200 = vpack.c.b16 %v2164, %v2160
    %v2201 = vpack.c.b16 %v2165, %v2161
    %v2202 = vpack.c.b16 %v2166, %v2162
    %v2203 = vpack.c.b16 %v2167, %v2163
    %v2204 = vpack.c.b16 %v2172, %v2168
    %v2205 = vpack.c.b16 %v2173, %v2169
    %v2206 = vpack.c.b16 %v2174, %v2170
    %v2207 = vpack.c.b16 %v2175, %v2171
    %2240 = vmatprep.subr.bf16.mxu0 %v2205
    %2241 = vmatpush1.bf16.msra.mxu0 %v2204
    %2242 = vmatprep.subr.bf16.mxu0 %v2201
    %2243 = vmatpush1.bf16.msra.mxu0 %v2200
    %2244 = vmatprep.subr.bf16.mxu0 %v2197
    %2245 = vmatpush1.bf16.msra.mxu0 %v2196
    %2246 = vmatprep.subr.bf16.mxu0 %v2193
    %2247 = vmatpush1.bf16.msra.mxu0 %v2192
    %2248 = vmatprep.subr.bf16.mxu0 %v2189
    %2249 = vmatpush1.bf16.msra.mxu0 %v2188
    %2250 = vmatprep.subr.bf16.mxu0 %v2185
    %2251 = vmatpush1.bf16.msra.mxu0 %v2184
    %2252 = vmatprep.subr.bf16.mxu0 %v2181
    %2253 = vmatpush1.bf16.msra.mxu0 %v2180
    %2254 = vmatprep.subr.bf16.mxu0 %v2177
    %2255 = vmatpush1.bf16.msra.mxu0 %v2176
    %2256 = vmatprep.subr.bf16.mxu0 0
    %2257 = vmatpush2.bf16.msra.mxu0 0
    %2258 = vmatprep.subr.bf16.mxu0 0
    %2259 = vmatpush2.bf16.msra.mxu0 0
    %2260 = vmatprep.subr.bf16.mxu0 0
    %2261 = vmatpush2.bf16.msra.mxu0 0
    %2262 = vmatprep.subr.bf16.mxu0 0
    %2263 = vmatpush2.bf16.msra.mxu0 0
    %2264 = vmatprep.subr.bf16.mxu0 0
    %2265 = vmatpush2.bf16.msra.mxu0 0
    %2266 = vmatprep.subr.bf16.mxu0 0
    %2267 = vmatpush2.bf16.msra.mxu0 0
    %2268 = vmatprep.subr.bf16.mxu0 0
    %2269 = vmatpush2.bf16.msra.mxu0 0
    %2270 = vmatprep.subr.bf16.mxu0 0
    %2271 = vmatpush2.bf16.msra.mxu0 0
    %2272 = vmatprep.mubr.bf16.mxu0 0
    %2273 = vmatmul.mubr.bf16.gmra.mxu0 %v2020
    %v2274 = vpop.f32.mrf.mxu0
    %v2275 = vadd.f32 %v2063, %v2274
    %v2276 = vpop.f32.mrf.mxu0
    %v2277 = vadd.f32 %v2067, %v2276
    %v2278 = vpop.f32.mrf.mxu0
    %v2279 = vadd.f32 %v2063, %v2278
    %v2280 = vpop.f32.mrf.mxu0
    %v2281 = vadd.f32 %v2067, %v2280
    %2282 = vmatprep.mubr.bf16.mxu0 0
    %2283 = vmatmul.mubr.bf16.gmra.mxu0 %v2021
    %v2284 = vpop.f32.mrf.mxu0
    %v2285 = vadd.f32 %v2063, %v2284
    %v2286 = vpop.f32.mrf.mxu0
    %v2287 = vadd.f32 %v2067, %v2286
    %v2288 = vpop.f32.mrf.mxu0
    %v2289 = vadd.f32 %v2063, %v2288
    %v2290 = vpop.f32.mrf.mxu0
    %v2291 = vadd.f32 %v2067, %v2290
    %2292 = vmatprep.mubr.bf16.mxu0 0
    %2293 = vmatmul.mubr.bf16.gmra.mxu0 %v2022
    %v2294 = vpop.f32.mrf.mxu0
    %v2295 = vadd.f32 %v2063, %v2294
    %v2296 = vpop.f32.mrf.mxu0
    %v2297 = vadd.f32 %v2067, %v2296
    %v2298 = vpop.f32.mrf.mxu0
    %v2299 = vadd.f32 %v2063, %v2298
    %v2300 = vpop.f32.mrf.mxu0
    %v2301 = vadd.f32 %v2067, %v2300
    %2302 = vmatprep.mubr.bf16.mxu0 0
    %2303 = vmatmul.mubr.bf16.gmra.mxu0 %v2023
    %v2304 = vpop.f32.mrf.mxu0
    %v2305 = vadd.f32 %v2063, %v2304
    %v2306 = vpop.f32.mrf.mxu0
    %v2307 = vadd.f32 %v2067, %v2306
    %v2308 = vpop.f32.mrf.mxu0
    %v2309 = vadd.f32 %v2063, %v2308
    %v2310 = vpop.f32.mrf.mxu0
    %v2311 = vadd.f32 %v2067, %v2310
    %2312 = vmatprep.mubr.bf16.mxu0 0
    %2313 = vmatmul.mubr.bf16.gmra.mxu0 %v2024
    %v2314 = vpop.f32.mrf.mxu0
    %v2315 = vadd.f32 %v2063, %v2314
    %v2316 = vpop.f32.mrf.mxu0
    %v2317 = vadd.f32 %v2067, %v2316
    %v2318 = vpop.f32.mrf.mxu0
    %v2319 = vpop.f32.mrf.mxu0
    %2320 = vdwg.mxu0
    %2321 = vmatprep.subr.bf16.mxu0 %v2207
    %2322 = vmatpush1.bf16.msra.mxu0 %v2206
    %2323 = vmatprep.subr.bf16.mxu0 %v2203
    %2324 = vmatpush1.bf16.msra.mxu0 %v2202
    %2325 = vmatprep.subr.bf16.mxu0 %v2199
    %2326 = vmatpush1.bf16.msra.mxu0 %v2198
    %2327 = vmatprep.subr.bf16.mxu0 %v2195
    %2328 = vmatpush1.bf16.msra.mxu0 %v2194
    %2329 = vmatprep.subr.bf16.mxu0 %v2191
    %2330 = vmatpush1.bf16.msra.mxu0 %v2190
    %2331 = vmatprep.subr.bf16.mxu0 %v2187
    %2332 = vmatpush1.bf16.msra.mxu0 %v2186
    %2333 = vmatprep.subr.bf16.mxu0 %v2183
    %2334 = vmatpush1.bf16.msra.mxu0 %v2182
    %2335 = vmatprep.subr.bf16.mxu0 %v2179
    %2336 = vmatpush1.bf16.msra.mxu0 %v2178
    %2337 = vmatprep.subr.bf16.mxu0 0
    %2338 = vmatpush2.bf16.msra.mxu0 0
    %2339 = vmatprep.subr.bf16.mxu0 0
    %2340 = vmatpush2.bf16.msra.mxu0 0
    %2341 = vmatprep.subr.bf16.mxu0 0
    %2342 = vmatpush2.bf16.msra.mxu0 0
    %2343 = vmatprep.subr.bf16.mxu0 0
    %2344 = vmatpush2.bf16.msra.mxu0 0
    %2345 = vmatprep.subr.bf16.mxu0 0
    %2346 = vmatpush2.bf16.msra.mxu0 0
    %2347 = vmatprep.subr.bf16.mxu0 0
    %2348 = vmatpush2.bf16.msra.mxu0 0
    %2349 = vmatprep.subr.bf16.mxu0 0
    %2350 = vmatpush2.bf16.msra.mxu0 0
    %2351 = vmatprep.subr.bf16.mxu0 0
    %2352 = vmatpush2.bf16.msra.mxu0 0
    %2353 = vmatprep.mubr.bf16.mxu0 0
    %2354 = vmatmul.mubr.bf16.gmra.mxu0 %v2020
    %v2355 = vpop.f32.mrf.mxu0
    %v2356 = vadd.f32 %v2071, %v2355
    %v2357 = vpop.f32.mrf.mxu0
    %v2358 = vadd.f32 %v2075, %v2357
    %v2359 = vpop.f32.mrf.mxu0
    %v2360 = vadd.f32 %v2071, %v2359
    %v2361 = vpop.f32.mrf.mxu0
    %v2362 = vadd.f32 %v2075, %v2361
    %2363 = vmatprep.mubr.bf16.mxu0 0
    %2364 = vmatmul.mubr.bf16.gmra.mxu0 %v2021
    %v2365 = vpop.f32.mrf.mxu0
    %v2366 = vadd.f32 %v2071, %v2365
    %v2367 = vpop.f32.mrf.mxu0
    %v2368 = vadd.f32 %v2075, %v2367
    %v2369 = vpop.f32.mrf.mxu0
    %v2370 = vadd.f32 %v2071, %v2369
    %v2371 = vpop.f32.mrf.mxu0
    %v2372 = vadd.f32 %v2075, %v2371
    %2373 = vmatprep.mubr.bf16.mxu0 0
    %2374 = vmatmul.mubr.bf16.gmra.mxu0 %v2022
    %v2375 = vpop.f32.mrf.mxu0
    %v2376 = vadd.f32 %v2071, %v2375
    %v2377 = vpop.f32.mrf.mxu0
    %v2378 = vadd.f32 %v2075, %v2377
    %v2379 = vpop.f32.mrf.mxu0
    %v2380 = vadd.f32 %v2071, %v2379
    %v2381 = vpop.f32.mrf.mxu0
    %v2382 = vadd.f32 %v2075, %v2381
    %2383 = vmatprep.mubr.bf16.mxu0 0
    %2384 = vmatmul.mubr.bf16.gmra.mxu0 %v2023
    %v2385 = vpop.f32.mrf.mxu0
    %v2386 = vadd.f32 %v2071, %v2385
    %v2387 = vpop.f32.mrf.mxu0
    %v2388 = vadd.f32 %v2075, %v2387
    %v2389 = vpop.f32.mrf.mxu0
    %v2390 = vadd.f32 %v2071, %v2389
    %v2391 = vpop.f32.mrf.mxu0
    %v2392 = vadd.f32 %v2075, %v2391
    %2393 = vmatprep.mubr.bf16.mxu0 0
    %2394 = vmatmul.mubr.bf16.gmra.mxu0 %v2024
    %v2395 = vpop.f32.mrf.mxu0
    %v2396 = vadd.f32 %v2071, %v2395
    %v2397 = vpop.f32.mrf.mxu0
    %v2398 = vadd.f32 %v2075, %v2397
    %v2399 = vpop.f32.mrf.mxu0
    %v2400 = vpop.f32.mrf.mxu0
    %2401 = vdwg.mxu0
    %v2402 = vmul.f32 %v2275, 0.5
    %v2403 = vmul.f32 %v2277, 0.5
    %v2404 = vmul.f32 %v2356, 0.5
    %v2405 = vmul.f32 %v2358, 0.5
    %v2406 = vmul.f32 %v2279, 0.5
    %v2407 = vmul.f32 %v2281, 0.5
    %v2408 = vmul.f32 %v2360, 0.5
    %v2409 = vmul.f32 %v2362, 0.5
    %v2410 = vmul.f32 %v2285, 0.5
    %v2411 = vmul.f32 %v2287, 0.5
    %v2412 = vmul.f32 %v2366, 0.5
    %v2413 = vmul.f32 %v2368, 0.5
    %v2414 = vmul.f32 %v2289, 0.5
    %v2415 = vmul.f32 %v2291, 0.5
    %v2416 = vmul.f32 %v2370, 0.5
    %v2417 = vmul.f32 %v2372, 0.5
    %v2418 = vmul.f32 %v2295, 0.5
    %v2419 = vmul.f32 %v2297, 0.5
    %v2420 = vmul.f32 %v2376, 0.5
    %v2421 = vmul.f32 %v2378, 0.5
    %v2422 = vmul.f32 %v2299, 0.5
    %v2423 = vmul.f32 %v2301, 0.5
    %v2424 = vmul.f32 %v2380, 0.5
    %v2425 = vmul.f32 %v2382, 0.5
    %v2426 = vmul.f32 %v2305, 0.5
    %v2427 = vmul.f32 %v2307, 0.5
    %v2428 = vmul.f32 %v2386, 0.5
    %v2429 = vmul.f32 %v2388, 0.5
    %v2430 = vmul.f32 %v2309, 0.5
    %v2431 = vmul.f32 %v2311, 0.5
    %v2432 = vmul.f32 %v2390, 0.5
    %v2433 = vmul.f32 %v2392, 0.5
    %v2434 = vmul.f32 %v2315, 0.5
    %v2435 = vmul.f32 %v2317, 0.5
    %v2436 = vmul.f32 %v2396, 0.5
    %v2437 = vmul.f32 %v2398, 0.5
    %v2438 = vmul.f32 %v2275, 0.044715
    %v2439 = vmul.f32 %v2277, 0.044715
    %v2440 = vmul.f32 %v2356, 0.044715
    %v2441 = vmul.f32 %v2358, 0.044715
    %v2442 = vmul.f32 %v2279, 0.044715
    %v2443 = vmul.f32 %v2281, 0.044715
    %v2444 = vmul.f32 %v2360, 0.044715
    %v2445 = vmul.f32 %v2362, 0.044715
    %v2446 = vmul.f32 %v2285, 0.044715
    %v2447 = vmul.f32 %v2287, 0.044715
    %v2448 = vmul.f32 %v2366, 0.044715
    %v2449 = vmul.f32 %v2368, 0.044715
    %v2450 = vmul.f32 %v2289, 0.044715
    %v2451 = vmul.f32 %v2291, 0.044715
    %v2452 = vmul.f32 %v2370, 0.044715
    %v2453 = vmul.f32 %v2372, 0.044715
    %v2454 = vmul.f32 %v2295, 0.044715
    %v2455 = vmul.f32 %v2297, 0.044715
    %v2456 = vmul.f32 %v2376, 0.044715
    %v2457 = vmul.f32 %v2378, 0.044715
    %v2458 = vmul.f32 %v2299, 0.044715
    %v2459 = vmul.f32 %v2301, 0.044715
    %v2460 = vmul.f32 %v2380, 0.044715
    %v2461 = vmul.f32 %v2382, 0.044715
    %v2462 = vmul.f32 %v2305, 0.044715
    %v2463 = vmul.f32 %v2307, 0.044715
    %v2464 = vmul.f32 %v2386, 0.044715
    %v2465 = vmul.f32 %v2388, 0.044715
    %v2466 = vmul.f32 %v2309, 0.044715
    %v2467 = vmul.f32 %v2311, 0.044715
    %v2468 = vmul.f32 %v2390, 0.044715
    %v2469 = vmul.f32 %v2392, 0.044715
    %v2470 = vmul.f32 %v2315, 0.044715
    %v2471 = vmul.f32 %v2317, 0.044715
    %v2472 = vmul.f32 %v2396, 0.044715
    %v2473 = vmul.f32 %v2398, 0.044715
    %v2474 = vmul.f32 %v2438, %v2275
    %v2475 = vmul.f32 %v2439, %v2277
    %v2476 = vmul.f32 %v2440, %v2356
    %v2477 = vmul.f32 %v2441, %v2358
    %v2478 = vmul.f32 %v2442, %v2279
    %v2479 = vmul.f32 %v2443, %v2281
    %v2480 = vmul.f32 %v2444, %v2360
    %v2481 = vmul.f32 %v2445, %v2362
    %v2482 = vmul.f32 %v2446, %v2285
    %v2483 = vmul.f32 %v2447, %v2287
    %v2484 = vmul.f32 %v2448, %v2366
    %v2485 = vmul.f32 %v2449, %v2368
    %v2486 = vmul.f32 %v2450, %v2289
    %v2487 = vmul.f32 %v2451, %v2291
    %v2488 = vmul.f32 %v2452, %v2370
    %v2489 = vmul.f32 %v2453, %v2372
    %v2490 = vmul.f32 %v2454, %v2295
    %v2491 = vmul.f32 %v2455, %v2297
    %v2492 = vmul.f32 %v2456, %v2376
    %v2493 = vmul.f32 %v2457, %v2378
    %v2494 = vmul.f32 %v2458, %v2299
    %v2495 = vmul.f32 %v2459, %v2301
    %v2496 = vmul.f32 %v2460, %v2380
    %v2497 = vmul.f32 %v2461, %v2382
    %v2498 = vmul.f32 %v2462, %v2305
    %v2499 = vmul.f32 %v2463, %v2307
    %v2500 = vmul.f32 %v2464, %v2386
    %v2501 = vmul.f32 %v2465, %v2388
    %v2502 = vmul.f32 %v2466, %v2309
    %v2503 = vmul.f32 %v2467, %v2311
    %v2504 = vmul.f32 %v2468, %v2390
    %v2505 = vmul.f32 %v2469, %v2392
    %v2506 = vmul.f32 %v2470, %v2315
    %v2507 = vmul.f32 %v2471, %v2317
    %v2508 = vmul.f32 %v2472, %v2396
    %v2509 = vmul.f32 %v2473, %v2398
    %v2510 = vmul.f32 %v2474, %v2275
    %v2511 = vmul.f32 %v2475, %v2277
    %v2512 = vmul.f32 %v2476, %v2356
    %v2513 = vmul.f32 %v2477, %v2358
    %v2514 = vmul.f32 %v2478, %v2279
    %v2515 = vmul.f32 %v2479, %v2281
    %v2516 = vmul.f32 %v2480, %v2360
    %v2517 = vmul.f32 %v2481, %v2362
    %v2518 = vmul.f32 %v2482, %v2285
    %v2519 = vmul.f32 %v2483, %v2287
    %v2520 = vmul.f32 %v2484, %v2366
    %v2521 = vmul.f32 %v2485, %v2368
    %v2522 = vmul.f32 %v2486, %v2289
    %v2523 = vmul.f32 %v2487, %v2291
    %v2524 = vmul.f32 %v2488, %v2370
    %v2525 = vmul.f32 %v2489, %v2372
    %v2526 = vmul.f32 %v2490, %v2295
    %v2527 = vmul.f32 %v2491, %v2297
    %v2528 = vmul.f32 %v2492, %v2376
    %v2529 = vmul.f32 %v2493, %v2378
    %v2530 = vmul.f32 %v2494, %v2299
    %v2531 = vmul.f32 %v2495, %v2301
    %v2532 = vmul.f32 %v2496, %v2380
    %v2533 = vmul.f32 %v2497, %v2382
    %v2534 = vmul.f32 %v2498, %v2305
    %v2535 = vmul.f32 %v2499, %v2307
    %v2536 = vmul.f32 %v2500, %v2386
    %v2537 = vmul.f32 %v2501, %v2388
    %v2538 = vmul.f32 %v2502, %v2309
    %v2539 = vmul.f32 %v2503, %v2311
    %v2540 = vmul.f32 %v2504, %v2390
    %v2541 = vmul.f32 %v2505, %v2392
    %v2542 = vmul.f32 %v2506, %v2315
    %v2543 = vmul.f32 %v2507, %v2317
    %v2544 = vmul.f32 %v2508, %v2396
    %v2545 = vmul.f32 %v2509, %v2398
    %v2546 = vadd.f32 %v2275, %v2510
    %v2547 = vadd.f32 %v2277, %v2511
    %v2548 = vadd.f32 %v2356, %v2512
    %v2549 = vadd.f32 %v2358, %v2513
    %v2550 = vadd.f32 %v2279, %v2514
    %v2551 = vadd.f32 %v2281, %v2515
    %v2552 = vadd.f32 %v2360, %v2516
    %v2553 = vadd.f32 %v2362, %v2517
    %v2554 = vadd.f32 %v2285, %v2518
    %v2555 = vadd.f32 %v2287, %v2519
    %v2556 = vadd.f32 %v2366, %v2520
    %v2557 = vadd.f32 %v2368, %v2521
    %v2558 = vadd.f32 %v2289, %v2522
    %v2559 = vadd.f32 %v2291, %v2523
    %v2560 = vadd.f32 %v2370, %v2524
    %v2561 = vadd.f32 %v2372, %v2525
    %v2562 = vadd.f32 %v2295, %v2526
    %v2563 = vadd.f32 %v2297, %v2527
    %v2564 = vadd.f32 %v2376, %v2528
    %v2565 = vadd.f32 %v2378, %v2529
    %v2566 = vadd.f32 %v2299, %v2530
    %v2567 = vadd.f32 %v2301, %v2531
    %v2568 = vadd.f32 %v2380, %v2532
    %v2569 = vadd.f32 %v2382, %v2533
    %v2570 = vadd.f32 %v2305, %v2534
    %v2571 = vadd.f32 %v2307, %v2535
    %v2572 = vadd.f32 %v2386, %v2536
    %v2573 = vadd.f32 %v2388, %v2537
    %v2574 = vadd.f32 %v2309, %v2538
    %v2575 = vadd.f32 %v2311, %v2539
    %v2576 = vadd.f32 %v2390, %v2540
    %v2577 = vadd.f32 %v2392, %v2541
    %v2578 = vadd.f32 %v2315, %v2542
    %v2579 = vadd.f32 %v2317, %v2543
    %v2580 = vadd.f32 %v2396, %v2544
    %v2581 = vadd.f32 %v2398, %v2545
    %v2582 = vmul.f32 %v2546, 0.7978846
    %v2583 = vmul.f32 %v2547, 0.7978846
    %v2584 = vmul.f32 %v2548, 0.7978846
    %v2585 = vmul.f32 %v2549, 0.7978846
    %v2586 = vmul.f32 %v2550, 0.7978846
    %v2587 = vmul.f32 %v2551, 0.7978846
    %v2588 = vmul.f32 %v2552, 0.7978846
    %v2589 = vmul.f32 %v2553, 0.7978846
    %v2590 = vmul.f32 %v2554, 0.7978846
    %v2591 = vmul.f32 %v2555, 0.7978846
    %v2592 = vmul.f32 %v2556, 0.7978846
    %v2593 = vmul.f32 %v2557, 0.7978846
    %v2594 = vmul.f32 %v2558, 0.7978846
    %v2595 = vmul.f32 %v2559, 0.7978846
    %v2596 = vmul.f32 %v2560, 0.7978846
    %v2597 = vmul.f32 %v2561, 0.7978846
    %v2598 = vmul.f32 %v2562, 0.7978846
    %v2599 = vmul.f32 %v2563, 0.7978846
    %v2600 = vmul.f32 %v2564, 0.7978846
    %v2601 = vmul.f32 %v2565, 0.7978846
    %v2602 = vmul.f32 %v2566, 0.7978846
    %v2603 = vmul.f32 %v2567, 0.7978846
    %v2604 = vmul.f32 %v2568, 0.7978846
    %v2605 = vmul.f32 %v2569, 0.7978846
    %v2606 = vmul.f32 %v2570, 0.7978846
    %v2607 = vmul.f32 %v2571, 0.7978846
    %v2608 = vmul.f32 %v2572, 0.7978846
    %v2609 = vmul.f32 %v2573, 0.7978846
    %v2610 = vmul.f32 %v2574, 0.7978846
    %v2611 = vmul.f32 %v2575, 0.7978846
    %v2612 = vmul.f32 %v2576, 0.7978846
    %v2613 = vmul.f32 %v2577, 0.7978846
    %v2614 = vmul.f32 %v2578, 0.7978846
    %v2615 = vmul.f32 %v2579, 0.7978846
    %v2616 = vmul.f32 %v2580, 0.7978846
    %v2617 = vmul.f32 %v2581, 0.7978846
    %v2618 = vtanh.pop %v2582
    %v2619 = vtanh.pop %v2583
    %v2620 = vtanh.pop %v2584
    %v2621 = vtanh.pop %v2585
    %v2622 = vtanh.pop %v2586
    %v2623 = vtanh.pop %v2587
    %v2624 = vtanh.pop %v2588
    %v2625 = vtanh.pop %v2589
    %v2626 = vtanh.pop %v2590
    %v2627 = vtanh.pop %v2591
    %v2628 = vtanh.pop %v2592
    %v2629 = vtanh.pop %v2593
    %v2630 = vtanh.pop %v2594
    %v2631 = vtanh.pop %v2595
    %v2632 = vtanh.pop %v2596
    %v2633 = vtanh.pop %v2597
    %v2634 = vtanh.pop %v2598
    %v2635 = vtanh.pop %v2599
    %v2636 = vtanh.pop %v2600
    %v2637 = vtanh.pop %v2601
    %v2638 = vtanh.pop %v2602
    %v2639 = vtanh.pop %v2603
    %v2640 = vtanh.pop %v2604
    %v2641 = vtanh.pop %v2605
    %v2642 = vtanh.pop %v2606
    %v2643 = vtanh.pop %v2607
    %v2644 = vtanh.pop %v2608
    %v2645 = vtanh.pop %v2609
    %v2646 = vtanh.pop %v2610
    %v2647 = vtanh.pop %v2611
    %v2648 = vtanh.pop %v2612
    %v2649 = vtanh.pop %v2613
    %v2650 = vtanh.pop %v2614
    %v2651 = vtanh.pop %v2615
    %v2652 = vtanh.pop %v2616
    %v2653 = vtanh.pop %v2617
    %v2654 = vadd.f32 %v2618, 1.0
    %v2655 = vadd.f32 %v2619, 1.0
    %v2656 = vadd.f32 %v2620, 1.0
    %v2657 = vadd.f32 %v2621, 1.0
    %v2658 = vadd.f32 %v2622, 1.0
    %v2659 = vadd.f32 %v2623, 1.0
    %v2660 = vadd.f32 %v2624, 1.0
    %v2661 = vadd.f32 %v2625, 1.0
    %v2662 = vadd.f32 %v2626, 1.0
    %v2663 = vadd.f32 %v2627, 1.0
    %v2664 = vadd.f32 %v2628, 1.0
    %v2665 = vadd.f32 %v2629, 1.0
    %v2666 = vadd.f32 %v2630, 1.0
    %v2667 = vadd.f32 %v2631, 1.0
    %v2668 = vadd.f32 %v2632, 1.0
    %v2669 = vadd.f32 %v2633, 1.0
    %v2670 = vadd.f32 %v2634, 1.0
    %v2671 = vadd.f32 %v2635, 1.0
    %v2672 = vadd.f32 %v2636, 1.0
    %v2673 = vadd.f32 %v2637, 1.0
    %v2674 = vadd.f32 %v2638, 1.0
    %v2675 = vadd.f32 %v2639, 1.0
    %v2676 = vadd.f32 %v2640, 1.0
    %v2677 = vadd.f32 %v2641, 1.0
    %v2678 = vadd.f32 %v2642, 1.0
    %v2679 = vadd.f32 %v2643, 1.0
    %v2680 = vadd.f32 %v2644, 1.0
    %v2681 = vadd.f32 %v2645, 1.0
    %v2682 = vadd.f32 %v2646, 1.0
    %v2683 = vadd.f32 %v2647, 1.0
    %v2684 = vadd.f32 %v2648, 1.0
    %v2685 = vadd.f32 %v2649, 1.0
    %v2686 = vadd.f32 %v2650, 1.0
    %v2687 = vadd.f32 %v2651, 1.0
    %v2688 = vadd.f32 %v2652, 1.0
    %v2689 = vadd.f32 %v2653, 1.0
    %v2690 = vmul.f32 %v2402, %v2654
    %v2691 = vmul.f32 %v2403, %v2655
    %v2692 = vmul.f32 %v2404, %v2656
    %v2693 = vmul.f32 %v2405, %v2657
    %v2694 = vmul.f32 %v2406, %v2658
    %v2695 = vmul.f32 %v2407, %v2659
    %v2696 = vmul.f32 %v2408, %v2660
    %v2697 = vmul.f32 %v2409, %v2661
    %v2698 = vmul.f32 %v2410, %v2662
    %v2699 = vmul.f32 %v2411, %v2663
    %v2700 = vmul.f32 %v2412, %v2664
    %v2701 = vmul.f32 %v2413, %v2665
    %v2702 = vmul.f32 %v2414, %v2666
    %v2703 = vmul.f32 %v2415, %v2667
    %v2704 = vmul.f32 %v2416, %v2668
    %v2705 = vmul.f32 %v2417, %v2669
    %v2706 = vmul.f32 %v2418, %v2670
    %v2707 = vmul.f32 %v2419, %v2671
    %v2708 = vmul.f32 %v2420, %v2672
    %v2709 = vmul.f32 %v2421, %v2673
    %v2710 = vmul.f32 %v2422, %v2674
    %v2711 = vmul.f32 %v2423, %v2675
    %v2712 = vmul.f32 %v2424, %v2676
    %v2713 = vmul.f32 %v2425, %v2677
    %v2714 = vmul.f32 %v2426, %v2678
    %v2715 = vmul.f32 %v2427, %v2679
    %v2716 = vmul.f32 %v2428, %v2680
    %v2717 = vmul.f32 %v2429, %v2681
    %v2718 = vmul.f32 %v2430, %v2682
    %v2719 = vmul.f32 %v2431, %v2683
    %v2720 = vmul.f32 %v2432, %v2684
    %v2721 = vmul.f32 %v2433, %v2685
    %v2722 = vmul.f32 %v2434, %v2686
    %v2723 = vmul.f32 %v2435, %v2687
    %v2724 = vmul.f32 %v2436, %v2688
    %v2725 = vmul.f32 %v2437, %v2689
    %v2726 = vpack.c.bf16 %v2694, %v2690
    %v2727 = vpack.c.bf16 %v2695, %v2691
    %v2728 = vpack.c.bf16 %v2696, %v2692
    %v2729 = vpack.c.bf16 %v2697, %v2693
    %v2730 = vpack.c.bf16 %v2702, %v2698
    %v2731 = vpack.c.bf16 %v2703, %v2699
    %v2732 = vpack.c.bf16 %v2704, %v2700
    %v2733 = vpack.c.bf16 %v2705, %v2701
    %v2734 = vpack.c.bf16 %v2710, %v2706
    %v2735 = vpack.c.bf16 %v2711, %v2707
    %v2736 = vpack.c.bf16 %v2712, %v2708
    %v2737 = vpack.c.bf16 %v2713, %v2709
    %v2738 = vpack.c.bf16 %v2718, %v2714
    %v2739 = vpack.c.bf16 %v2719, %v2715
    %v2740 = vpack.c.bf16 %v2720, %v2716
    %v2741 = vpack.c.bf16 %v2721, %v2717
    %v2742 = vpack.c.bf16 %v2722, %v2722
    %v2743 = vpack.c.bf16 %v2723, %v2723
    %v2744 = vpack.c.bf16 %v2724, %v2724
    %v2745 = vpack.c.bf16 %v2725, %v2725
    %v2746 = vld [vmem:[#allocation10] sm:$0xf]
    %v2747 = vld [vmem:[#allocation10 + $0x4] sm:$0xf]
    %v2748 = vld [vmem:[#allocation10 + $0x8] sm:$0xf]
    %v2749 = vld [vmem:[#allocation10 + $0xc] sm:$0xf]
    %v2750 = vld [vmem:[#allocation10 + $0x10] sm:$0xf]
    %v2751 = vld [vmem:[#allocation10 + $0x14] sm:$0xf]
    %v2752 = vld [vmem:[#allocation10 + $0x18] sm:$0xf]
    %v2753 = vld [vmem:[#allocation10 + $0x1c] sm:$0xf]
    %v2754 = vld [vmem:[#allocation10 + $0x20] sm:$0xf]
    %v2755 = vld [vmem:[#allocation10 + $0x24] sm:$0xf]
    %v2756 = vld [vmem:[#allocation10 + $0x28] sm:$0xf]
    %v2757 = vld [vmem:[#allocation10 + $0x2c] sm:$0xf]
    %v2758 = vld [vmem:[#allocation10 + $0x30] sm:$0xf]
    %v2759 = vld [vmem:[#allocation10 + $0x34] sm:$0xf]
    %v2760 = vld [vmem:[#allocation10 + $0x38] sm:$0xf]
    %v2761 = vld [vmem:[#allocation10 + $0x3c] sm:$0xf]
    %v2762 = vld [vmem:[#allocation10 + $0x40] sm:$0xf]
    %v2763 = vld [vmem:[#allocation10 + $0x44] sm:$0xf]
    %v2764 = vld [vmem:[#allocation10 + $0x48] sm:$0xf]
    %v2765 = vld [vmem:[#allocation10 + $0x4c] sm:$0xf]
    %v2766 = vld [vmem:[#allocation10 + $0x50] sm:$0xf]
    %v2767 = vld [vmem:[#allocation10 + $0x54] sm:$0xf]
    %v2768 = vld [vmem:[#allocation10 + $0x58] sm:$0xf]
    %v2769 = vld [vmem:[#allocation10 + $0x5c] sm:$0xf]
    %v2770 = vld [vmem:[#allocation10 + $0x60] sm:$0xf]
    %v2771 = vld [vmem:[#allocation10 + $0x64] sm:$0xf]
    %v2772 = vld [vmem:[#allocation10 + $0x68] sm:$0xf]
    %v2773 = vld [vmem:[#allocation10 + $0x6c] sm:$0xf]
    %v2774 = vld [vmem:[#allocation10 + $0x70] sm:$0xf]
    %v2775 = vld [vmem:[#allocation10 + $0x74] sm:$0xf]
    %v2776 = vld [vmem:[#allocation10 + $0x78] sm:$0xf]
    %v2777 = vld [vmem:[#allocation10 + $0x7c] sm:$0xf]
    %v2778 = vld [vmem:[#allocation10 + $0x80] sm:$0xf]
    %v2779 = vld [vmem:[#allocation10 + $0x84] sm:$0xf]
    %v2780 = vld [vmem:[#allocation10 + $0x88] sm:$0xf]
    %v2781 = vld [vmem:[#allocation10 + $0x8c] sm:$0xf]
    %v2782 = vld [vmem:[#allocation10 + $0x90] sm:$0xf]
    %v2783 = vld [vmem:[#allocation10 + $0x94] sm:$0xf]
    %v2784 = vld [vmem:[#allocation10 + $0x98] sm:$0xf]
    %v2785 = vld [vmem:[#allocation10 + $0x9c] sm:$0xf]
    %v2786 = vld [vmem:[#allocation10 + $0xa0] sm:$0xf]
    %v2787 = vld [vmem:[#allocation10 + $0xa4] sm:$0xf]
    %v2788 = vld [vmem:[#allocation10 + $0xa8] sm:$0xf]
    %v2789 = vld [vmem:[#allocation10 + $0xac] sm:$0xf]
    %v2790 = vld [vmem:[#allocation10 + $0xb0] sm:$0xf]
    %v2791 = vld [vmem:[#allocation10 + $0xb4] sm:$0xf]
    %v2792 = vld [vmem:[#allocation10 + $0xb8] sm:$0xf]
    %v2793 = vld [vmem:[#allocation10 + $0xbc] sm:$0xf]
    %v2794 = vld [vmem:[#allocation10 + $0xc0] sm:$0xf]
    %v2795 = vld [vmem:[#allocation10 + $0xc4] sm:$0xf]
    %v2796 = vld [vmem:[#allocation10 + $0xc8] sm:$0xf]
    %v2797 = vld [vmem:[#allocation10 + $0xcc] sm:$0xf]
    %v2798 = vld [vmem:[#allocation10 + $0xd0] sm:$0xf]
    %v2799 = vld [vmem:[#allocation10 + $0xd4] sm:$0xf]
    %v2800 = vld [vmem:[#allocation10 + $0xd8] sm:$0xf]
    %v2801 = vld [vmem:[#allocation10 + $0xdc] sm:$0xf]
    %v2802 = vld [vmem:[#allocation10 + $0xe0] sm:$0xf]
    %v2803 = vld [vmem:[#allocation10 + $0xe4] sm:$0xf]
    %v2804 = vld [vmem:[#allocation10 + $0xe8] sm:$0xf]
    %v2805 = vld [vmem:[#allocation10 + $0xec] sm:$0xf]
    %v2806 = vld [vmem:[#allocation10 + $0xf0] sm:$0xf]
    %v2807 = vld [vmem:[#allocation10 + $0xf4] sm:$0xf]
    %v2808 = vld [vmem:[#allocation10 + $0xf8] sm:$0xf]
    %v2809 = vld [vmem:[#allocation10 + $0xfc] sm:$0xf]
    %v2810 = vld [vmem:[#allocation3 + $0x3b] ss:$0 sm:$0xff]
    %v2875 = vunpack.c.l.b16 %v2746
    %v2876 = vunpack.c.l.b16 %v2747
    %v2877 = vunpack.c.l.b16 %v2748
    %v2878 = vunpack.c.l.b16 %v2749
    %v2879 = vunpack.c.l.b16 %v2750
    %v2880 = vunpack.c.l.b16 %v2751
    %v2881 = vunpack.c.l.b16 %v2752
    %v2882 = vunpack.c.l.b16 %v2753
    %v2883 = vunpack.c.l.b16 %v2754
    %v2884 = vunpack.c.l.b16 %v2755
    %v2885 = vunpack.c.l.b16 %v2756
    %v2886 = vunpack.c.l.b16 %v2757
    %v2887 = vunpack.c.l.b16 %v2758
    %v2888 = vunpack.c.l.b16 %v2759
    %v2889 = vunpack.c.l.b16 %v2760
    %v2890 = vunpack.c.l.b16 %v2761
    %v2891 = vunpack.c.l.b16 %v2762
    %v2892 = vunpack.c.l.b16 %v2763
    %v2893 = vunpack.c.l.b16 %v2764
    %v2894 = vunpack.c.l.b16 %v2765
    %v2895 = vunpack.c.l.b16 %v2766
    %v2896 = vunpack.c.l.b16 %v2767
    %v2897 = vunpack.c.l.b16 %v2768
    %v2898 = vunpack.c.l.b16 %v2769
    %v2899 = vunpack.c.l.b16 %v2770
    %v2900 = vunpack.c.l.b16 %v2771
    %v2901 = vunpack.c.l.b16 %v2772
    %v2902 = vunpack.c.l.b16 %v2773
    %v2903 = vunpack.c.l.b16 %v2774
    %v2904 = vunpack.c.l.b16 %v2775
    %v2905 = vunpack.c.l.b16 %v2776
    %v2906 = vunpack.c.l.b16 %v2777
    %v2907 = vunpack.c.l.b16 %v2778
    %v2908 = vunpack.c.l.b16 %v2779
    %v2909 = vunpack.c.l.b16 %v2780
    %v2910 = vunpack.c.l.b16 %v2781
    %v2911 = vunpack.c.l.b16 %v2782
    %v2912 = vunpack.c.l.b16 %v2783
    %v2913 = vunpack.c.l.b16 %v2784
    %v2914 = vunpack.c.l.b16 %v2785
    %v2915 = vunpack.c.l.b16 %v2786
    %v2916 = vunpack.c.l.b16 %v2787
    %v2917 = vunpack.c.l.b16 %v2788
    %v2918 = vunpack.c.l.b16 %v2789
    %v2919 = vunpack.c.l.b16 %v2790
    %v2920 = vunpack.c.l.b16 %v2791
    %v2921 = vunpack.c.l.b16 %v2792
    %v2922 = vunpack.c.l.b16 %v2793
    %v2923 = vunpack.c.l.b16 %v2794
    %v2924 = vunpack.c.l.b16 %v2795
    %v2925 = vunpack.c.l.b16 %v2796
    %v2926 = vunpack.c.l.b16 %v2797
    %v2927 = vunpack.c.l.b16 %v2798
    %v2928 = vunpack.c.l.b16 %v2799
    %v2929 = vunpack.c.l.b16 %v2800
    %v2930 = vunpack.c.l.b16 %v2801
    %v2931 = vunpack.c.l.b16 %v2802
    %v2932 = vunpack.c.l.b16 %v2803
    %v2933 = vunpack.c.l.b16 %v2804
    %v2934 = vunpack.c.l.b16 %v2805
    %v2935 = vunpack.c.l.b16 %v2806
    %v2936 = vunpack.c.l.b16 %v2807
    %v2937 = vunpack.c.l.b16 %v2808
    %v2938 = vunpack.c.l.b16 %v2809
    %v2939 = vpack.c.b16 %v2876, %v2875
    %v2940 = vpack.c.b16 %v2878, %v2877
    %v2941 = vpack.c.b16 %v2880, %v2879
    %v2942 = vpack.c.b16 %v2882, %v2881
    %v2943 = vpack.c.b16 %v2884, %v2883
    %v2944 = vpack.c.b16 %v2886, %v2885
    %v2945 = vpack.c.b16 %v2888, %v2887
    %v2946 = vpack.c.b16 %v2890, %v2889
    %v2947 = vpack.c.b16 %v2892, %v2891
    %v2948 = vpack.c.b16 %v2894, %v2893
    %v2949 = vpack.c.b16 %v2896, %v2895
    %v2950 = vpack.c.b16 %v2898, %v2897
    %v2951 = vpack.c.b16 %v2900, %v2899
    %v2952 = vpack.c.b16 %v2902, %v2901
    %v2953 = vpack.c.b16 %v2904, %v2903
    %v2954 = vpack.c.b16 %v2906, %v2905
    %v2955 = vpack.c.b16 %v2908, %v2907
    %v2956 = vpack.c.b16 %v2910, %v2909
    %v2957 = vpack.c.b16 %v2912, %v2911
    %v2958 = vpack.c.b16 %v2914, %v2913
    %v2959 = vpack.c.b16 %v2916, %v2915
    %v2960 = vpack.c.b16 %v2918, %v2917
    %v2961 = vpack.c.b16 %v2920, %v2919
    %v2962 = vpack.c.b16 %v2922, %v2921
    %v2963 = vpack.c.b16 %v2924, %v2923
    %v2964 = vpack.c.b16 %v2926, %v2925
    %v2965 = vpack.c.b16 %v2928, %v2927
    %v2966 = vpack.c.b16 %v2930, %v2929
    %v2967 = vpack.c.b16 %v2932, %v2931
    %v2968 = vpack.c.b16 %v2934, %v2933
    %v2969 = vpack.c.b16 %v2936, %v2935
    %v2970 = vpack.c.b16 %v2938, %v2937
    %3003 = vmatprep.subr.bf16.mxu0 0
    %3004 = vmatpush1.bf16.msra.mxu0 %v2946
    %3005 = vmatprep.subr.bf16.mxu0 0
    %3006 = vmatpush1.bf16.msra.mxu0 %v2945
    %3007 = vmatprep.subr.bf16.mxu0 0
    %3008 = vmatpush1.bf16.msra.mxu0 %v2944
    %3009 = vmatprep.subr.bf16.mxu0 0
    %3010 = vmatpush1.bf16.msra.mxu0 %v2943
    %3011 = vmatprep.subr.bf16.mxu0 0
    %3012 = vmatpush1.bf16.msra.mxu0 %v2942
    %3013 = vmatprep.subr.bf16.mxu0 0
    %3014 = vmatpush1.bf16.msra.mxu0 %v2941
    %3015 = vmatprep.subr.bf16.mxu0 0
    %3016 = vmatpush1.bf16.msra.mxu0 %v2940
    %3017 = vmatprep.subr.bf16.mxu0 0
    %3018 = vmatpush1.bf16.msra.mxu0 %v2939
    %3019 = vmatprep.subr.bf16.mxu0 0
    %3020 = vmatpush2.bf16.msra.mxu0 %v2954
    %3021 = vmatprep.subr.bf16.mxu0 0
    %3022 = vmatpush2.bf16.msra.mxu0 %v2953
    %3023 = vmatprep.subr.bf16.mxu0 0
    %3024 = vmatpush2.bf16.msra.mxu0 %v2952
    %3025 = vmatprep.subr.bf16.mxu0 0
    %3026 = vmatpush2.bf16.msra.mxu0 %v2951
    %3027 = vmatprep.subr.bf16.mxu0 0
    %3028 = vmatpush2.bf16.msra.mxu0 %v2950
    %3029 = vmatprep.subr.bf16.mxu0 0
    %3030 = vmatpush2.bf16.msra.mxu0 %v2949
    %3031 = vmatprep.subr.bf16.mxu0 0
    %3032 = vmatpush2.bf16.msra.mxu0 %v2948
    %3033 = vmatprep.subr.bf16.mxu0 0
    %3034 = vmatpush2.bf16.msra.mxu0 %v2947
    %3035 = vmatprep.mubr.bf16.mxu0 %v2727
    %3036 = vmatmul.mubr.bf16.gmra.mxu0 %v2726
    %v3037 = vpop.f32.mrf.mxu0
    %v3038 = vpop.f32.mrf.mxu0
    %v3039 = vpop.f32.mrf.mxu0
    %v3040 = vpop.f32.mrf.mxu0
    %3041 = vmatprep.mubr.bf16.mxu0 %v2731
    %3042 = vmatmul.mubr.bf16.gmra.mxu0 %v2730
    %v3043 = vpop.f32.mrf.mxu0
    %v3044 = vpop.f32.mrf.mxu0
    %v3045 = vpop.f32.mrf.mxu0
    %v3046 = vpop.f32.mrf.mxu0
    %3047 = vmatprep.mubr.bf16.mxu0 %v2735
    %3048 = vmatmul.mubr.bf16.gmra.mxu0 %v2734
    %v3049 = vpop.f32.mrf.mxu0
    %v3050 = vpop.f32.mrf.mxu0
    %v3051 = vpop.f32.mrf.mxu0
    %v3052 = vpop.f32.mrf.mxu0
    %3053 = vmatprep.mubr.bf16.mxu0 %v2739
    %3054 = vmatmul.mubr.bf16.gmra.mxu0 %v2738
    %v3055 = vpop.f32.mrf.mxu0
    %v3056 = vpop.f32.mrf.mxu0
    %v3057 = vpop.f32.mrf.mxu0
    %v3058 = vadd.f32 %v2810, %v3057
    %v3059 = vpop.f32.mrf.mxu0
    %3060 = vmatprep.mubr.bf16.mxu0 %v2743
    %3061 = vmatmul.mubr.bf16.gmra.mxu0 %v2742
    %v3062 = vpop.f32.mrf.mxu0
    %v3063 = vpop.f32.mrf.mxu0
    %v3064 = vpop.f32.mrf.mxu0
    %v3065 = vpop.f32.mrf.mxu0
    %3066 = vdwg.mxu0
    %3067 = vmatprep.subr.bf16.mxu0 0
    %3068 = vmatpush1.bf16.msra.mxu0 %v2962
    %3069 = vmatprep.subr.bf16.mxu0 0
    %3070 = vmatpush1.bf16.msra.mxu0 %v2961
    %3071 = vmatprep.subr.bf16.mxu0 0
    %3072 = vmatpush1.bf16.msra.mxu0 %v2960
    %3073 = vmatprep.subr.bf16.mxu0 0
    %3074 = vmatpush1.bf16.msra.mxu0 %v2959
    %3075 = vmatprep.subr.bf16.mxu0 0
    %3076 = vmatpush1.bf16.msra.mxu0 %v2958
    %3077 = vmatprep.subr.bf16.mxu0 0
    %3078 = vmatpush1.bf16.msra.mxu0 %v2957
    %3079 = vmatprep.subr.bf16.mxu0 0
    %3080 = vmatpush1.bf16.msra.mxu0 %v2956
    %3081 = vmatprep.subr.bf16.mxu0 0
    %3082 = vmatpush1.bf16.msra.mxu0 %v2955
    %3083 = vmatprep.subr.bf16.mxu0 0
    %3084 = vmatpush2.bf16.msra.mxu0 %v2970
    %3085 = vmatprep.subr.bf16.mxu0 0
    %3086 = vmatpush2.bf16.msra.mxu0 %v2969
    %3087 = vmatprep.subr.bf16.mxu0 0
    %3088 = vmatpush2.bf16.msra.mxu0 %v2968
    %3089 = vmatprep.subr.bf16.mxu0 0
    %3090 = vmatpush2.bf16.msra.mxu0 %v2967
    %3091 = vmatprep.subr.bf16.mxu0 0
    %3092 = vmatpush2.bf16.msra.mxu0 %v2966
    %3093 = vmatprep.subr.bf16.mxu0 0
    %3094 = vmatpush2.bf16.msra.mxu0 %v2965
    %3095 = vmatprep.subr.bf16.mxu0 0
    %3096 = vmatpush2.bf16.msra.mxu0 %v2964
    %3097 = vmatprep.subr.bf16.mxu0 0
    %3098 = vmatpush2.bf16.msra.mxu0 %v2963
    %3099 = vmatprep.mubr.bf16.mxu0 %v2729
    %3100 = vmatmul.mubr.bf16.gmra.mxu0 %v2728
    %v3101 = vpop.f32.mrf.mxu0
    %v3102 = vpop.f32.mrf.mxu0
    %v3103 = vpop.f32.mrf.mxu0
    %v3104 = vpop.f32.mrf.mxu0
    %3105 = vmatprep.mubr.bf16.mxu0 %v2733
    %3106 = vmatmul.mubr.bf16.gmra.mxu0 %v2732
    %v3107 = vpop.f32.mrf.mxu0
    %v3108 = vpop.f32.mrf.mxu0
    %v3109 = vpop.f32.mrf.mxu0
    %v3110 = vpop.f32.mrf.mxu0
    %3111 = vmatprep.mubr.bf16.mxu0 %v2737
    %3112 = vmatmul.mubr.bf16.gmra.mxu0 %v2736
    %v3113 = vpop.f32.mrf.mxu0
    %v3114 = vpop.f32.mrf.mxu0
    %v3115 = vpop.f32.mrf.mxu0
    %v3116 = vpop.f32.mrf.mxu0
    %3117 = vmatprep.mubr.bf16.mxu0 %v2741
    %3118 = vmatmul.mubr.bf16.gmra.mxu0 %v2740
    %v3119 = vpop.f32.mrf.mxu0
    %v3120 = vpop.f32.mrf.mxu0
    %v3121 = vpop.f32.mrf.mxu0
    %v3122 = vadd.f32 %v3058, %v3121
    %v3123 = vpop.f32.mrf.mxu0
    %3124 = vmatprep.mubr.bf16.mxu0 %v2745
    %3125 = vmatmul.mubr.bf16.gmra.mxu0 %v2744
    %v3126 = vpop.f32.mrf.mxu0
    %v3127 = vpop.f32.mrf.mxu0
    %v3128 = vpop.f32.mrf.mxu0
    %v3129 = vpop.f32.mrf.mxu0
    %3130 = vdwg.mxu0
    %v3131 = vadd.f32 %v1899, %v3122
    %v3132 = vpack.c.bf16 %v3131, %v3131
    %v3133 = vld [vmem:[%s8] sm:$0xf]
    %v3134 = vld [vmem:[%s8 + $0x4] sm:$0xf]
    %v3135 = vld [vmem:[%s8 + $0x8] sm:$0xf]
    %v3136 = vld [vmem:[%s8 + $0xc] sm:$0xf]
    %v3137 = vld [vmem:[%s8 + $0x10] sm:$0xf]
    %v3138 = vld [vmem:[%s8 + $0x14] sm:$0xf]
    %v3139 = vld [vmem:[%s8 + $0x18] sm:$0xf]
    %v3140 = vld [vmem:[%s8 + $0x1c] sm:$0xf]
    %v3141 = vld [vmem:[%s8 + $0x20] sm:$0xf]
    %v3142 = vld [vmem:[%s8 + $0x24] sm:$0xf]
    %v3143 = vld [vmem:[%s8 + $0x28] sm:$0xf]
    %v3144 = vld [vmem:[%s8 + $0x2c] sm:$0xf]
    %v3145 = vld [vmem:[%s8 + $0x30] sm:$0xf]
    %v3146 = vld [vmem:[%s8 + $0x34] sm:$0xf]
    %v3147 = vld [vmem:[%s8 + $0x38] sm:$0xf]
    %v3148 = vld [vmem:[%s8 + $0x3c] sm:$0xf]
    %v3149 = vld [vmem:[#allocation3 + $0x70] ss:$0 sm:$0xff]
    %v3166 = vunpack.c.l.b16 %v3133
    %v3167 = vunpack.c.l.b16 %v3134
    %v3168 = vunpack.c.l.b16 %v3135
    %v3169 = vunpack.c.l.b16 %v3136
    %v3170 = vunpack.c.l.b16 %v3137
    %v3171 = vunpack.c.l.b16 %v3138
    %v3172 = vunpack.c.l.b16 %v3139
    %v3173 = vunpack.c.l.b16 %v3140
    %v3174 = vunpack.c.l.b16 %v3141
    %v3175 = vunpack.c.l.b16 %v3142
    %v3176 = vunpack.c.l.b16 %v3143
    %v3177 = vunpack.c.l.b16 %v3144
    %v3178 = vunpack.c.l.b16 %v3145
    %v3179 = vunpack.c.l.b16 %v3146
    %v3180 = vunpack.c.l.b16 %v3147
    %v3181 = vunpack.c.l.b16 %v3148
    %v3182 = vpack.c.b16 %v3167, %v3166
    %v3183 = vpack.c.b16 %v3169, %v3168
    %v3184 = vpack.c.b16 %v3171, %v3170
    %v3185 = vpack.c.b16 %v3173, %v3172
    %v3186 = vpack.c.b16 %v3175, %v3174
    %v3187 = vpack.c.b16 %v3177, %v3176
    %v3188 = vpack.c.b16 %v3179, %v3178
    %v3189 = vpack.c.b16 %v3181, %v3180
    %3198 = vmatprep.subr.bf16.mxu0 0
    %3199 = vmatpush1.bf16.msra.mxu0 %v3189
    %3200 = vmatprep.subr.bf16.mxu0 0
    %3201 = vmatpush1.bf16.msra.mxu0 %v3188
    %3202 = vmatprep.subr.bf16.mxu0 0
    %3203 = vmatpush1.bf16.msra.mxu0 %v3187
    %3204 = vmatprep.subr.bf16.mxu0 0
    %3205 = vmatpush1.bf16.msra.mxu0 %v3186
    %3206 = vmatprep.subr.bf16.mxu0 0
    %3207 = vmatpush1.bf16.msra.mxu0 %v3185
    %3208 = vmatprep.subr.bf16.mxu0 0
    %3209 = vmatpush1.bf16.msra.mxu0 %v3184
    %3210 = vmatprep.subr.bf16.mxu0 0
    %3211 = vmatpush1.bf16.msra.mxu0 %v3183
    %3212 = vmatprep.subr.bf16.mxu0 0
    %3213 = vmatpush1.bf16.msra.mxu0 %v3182
    %3214 = vmatprep.subr.bf16.mxu0 0
    %3215 = vmatpush2.bf16.msra.mxu0 0
    %3216 = vmatprep.subr.bf16.mxu0 0
    %3217 = vmatpush2.bf16.msra.mxu0 0
    %3218 = vmatprep.subr.bf16.mxu0 0
    %3219 = vmatpush2.bf16.msra.mxu0 0
    %3220 = vmatprep.subr.bf16.mxu0 0
    %3221 = vmatpush2.bf16.msra.mxu0 0
    %3222 = vmatprep.subr.bf16.mxu0 0
    %3223 = vmatpush2.bf16.msra.mxu0 0
    %3224 = vmatprep.subr.bf16.mxu0 0
    %3225 = vmatpush2.bf16.msra.mxu0 0
    %3226 = vmatprep.subr.bf16.mxu0 0
    %3227 = vmatpush2.bf16.msra.mxu0 0
    %3228 = vmatprep.subr.bf16.mxu0 0
    %3229 = vmatpush2.bf16.msra.mxu0 0
    %3230 = vmatprep.mubr.bf16.mxu0 0
    %3231 = vmatmul.mubr.bf16.gmra.mxu0 %v3132
    %v3232 = vpop.f32.mrf.mxu0
    %v3233 = vadd.f32 %v3149, %v3232
    %v3234 = vpop.f32.mrf.mxu0
    %v3235 = vpop.f32.mrf.mxu0
    %v3236 = vpop.f32.mrf.mxu0
    %3237 = vdwg.mxu0
    %3238 = vst [vmem:[%s9] sm:$0xff] %v3233
    // Predicated region
    $region58: #{offline_rl_policy_forward.1} parent=1 // pred_check
      _
    $region59: #{offline_rl_policy_forward.1} parent=1 // pred_check_branch
      %3240 = sbr.rel (0) target = $region61
    $region60: #{offline_rl_policy_forward.1} parent=1 // pred_region
      _
    $region61: #{offline_rl_policy_forward.1} parent=1 // pred_fallthru
      _
    // Predicated region
    $region62: #{offline_rl_policy_forward.1} parent=1 // pred_check
      _
    $region63: #{offline_rl_policy_forward.1} parent=1 // pred_check_branch
      %3242 = sbr.rel (0) target = $region65
    $region64: #{offline_rl_policy_forward.1} parent=1 // pred_region
      _
    $region65: #{offline_rl_policy_forward.1} parent=1 // pred_fallthru
      _
    %3243 = vsyncpa [#allocation4], 1
    %3244 = vsyncpa [#allocation6], 1
    %3245 = vsyncpa [#allocation9], 1

</llo_original>
